<compile_context>
chip_gen: v7x
topology: tpu7x:2x2x1
jax: 0.10.0
libtpu: 0.0.40
codegen_flags: <defaults>
</compile_context>

<pallas_src>
import functools

import numpy as np
import jax
import jax.numpy as jnp
from jax.experimental import pallas as pl
from jax.experimental.pallas import tpu as pltpu

EPS = 1e-5
NEG_SLOPE = 0.01          # nn.LeakyReLU default negative_slope
KH = KW = 3               # kernel_size
LANE = 128                # TPU lane width (channel padding target)
VMEM_LIMIT_BYTES = 48 * 1024 * 1024   # explicit budget, safe on v7x (64 MiB VMEM)


def _round_up(x, m):
    return (x + m - 1) // m * m


def _pick_row_tile(h):
    """Largest power-of-two row tile that divides H and gives >= 2 grid steps."""
    for th in (128, 64, 32, 16, 8):
        if h % th == 0 and h // th >= 2:
            return th
    return h


# --------------------------------------------------------------------------- #
# Kernel 1: per-(image, row-tile) 3x3 conv + LeakyReLU + BN partial statistics #
# --------------------------------------------------------------------------- #
def conv_lrelu_stats_kernel(xpad_ref, w_ref, y_ref, sum_ref, sq_ref, *, cin, th):
    """One output row-tile of conv3x3(pad=1) -> LeakyReLU, plus BN partials.

    xpad_ref: (1, H+2, W+2, Cphys)  padded image (constant over the row axis ->
                                    DMA'd once per image, re-used across tiles)
    w_ref   : (9, cin, Cpad)        per-tap weights, Cout zero-padded to 128k
    y_ref   : (1, TH, W, Cpad)      conv+LeakyReLU output tile (lane-dense)
    sum_ref : (1, 1, 1, Cpad)       per-tile per-channel sum of y
    sq_ref  : (1, 1, 1, Cpad)       per-tile per-channel sum of y^2
    """
    w_out = y_ref.shape[2]
    cpad = y_ref.shape[3]
    p = th * w_out

    # Halo row slice of the padded image for this tile: rows [r*TH, r*TH + TH+2).
    r0 = pl.multiple_of(pl.program_id(1) * th, th)
    xr = xpad_ref[0, pl.ds(r0, th + 2), :, :]          # (TH+2, W+2, Cphys)

    # 3x3 conv as 9 shifted-window MXU matmuls accumulated in f32.
    # Only the real `cin` input channels participate in the contraction (the
    # inter-stage activation is lane-padded to 128 channels of zeros).
    acc = jnp.zeros((p, cpad), dtype=jnp.float32)
    for dy in range(KH):
        for dx in range(KW):
            patch = xr[dy:dy + th, dx:dx + w_out, :cin]        # (TH, W, cin)
            acc += jnp.dot(patch.reshape(p, cin),
                           w_ref[dy * KW + dx],
                           preferred_element_type=jnp.float32)

    # LeakyReLU(negative_slope=0.01)
    y = jnp.where(acc >= 0.0, acc, NEG_SLOPE * acc)

    y_ref[...] = y.reshape(1, th, w_out, cpad).astype(y_ref.dtype)

    # BN partials for this tile (reduced globally in the wrapper).
    sum_ref[...] = jnp.sum(y, axis=0).reshape(1, 1, 1, cpad)
    sq_ref[...] = jnp.sum(y * y, axis=0).reshape(1, 1, 1, cpad)


def _conv_lrelu_stats(xp, w_taps, cin, th):
    """xp: (N, H+2, W+2, Cphys) f32; w_taps: (9, cin, Cpad) f32."""
    n, hp2, wp2, cphys = xp.shape
    h, w = hp2 - 2, wp2 - 2
    r = h // th
    cpad = w_taps.shape[-1]

    kern = functools.partial(conv_lrelu_stats_kernel, cin=cin, th=th)
    return pl.pallas_call(
        kern,
        out_shape=(
            jax.ShapeDtypeStruct((n, h, w, cpad), jnp.float32),   # y
            jax.ShapeDtypeStruct((n, r, 1, cpad), jnp.float32),   # per-tile sum
            jax.ShapeDtypeStruct((n, r, 1, cpad), jnp.float32),   # per-tile sumsq
        ),
        grid=(n, r),
        in_specs=[
            # Whole padded image per n; constant along the row-tile axis.
            pl.BlockSpec((1, hp2, wp2, cphys), lambda i, j: (i, 0, 0, 0)),
            # Small weight slab, constant index_map -> fetched once, stays resident.
            pl.BlockSpec((KH * KW, cin, cpad), lambda i, j: (0, 0, 0)),
        ],
        out_specs=(
            pl.BlockSpec((1, th, w, cpad), lambda i, j: (i, j, 0, 0)),
            pl.BlockSpec((1, 1, 1, cpad), lambda i, j: (i, j, 0, 0)),
            pl.BlockSpec((1, 1, 1, cpad), lambda i, j: (i, j, 0, 0)),
        ),
        compiler_params=pltpu.CompilerParams(
            dimension_semantics=("parallel", "parallel"),
            vmem_limit_bytes=VMEM_LIMIT_BYTES,
        ),
    )(xp, w_taps)


# --------------------------------------------------------------------------- #
# Kernel 2: tiled per-channel scale/shift (folded BatchNorm affine)            #
# --------------------------------------------------------------------------- #
def bn_scale_shift_kernel(y_ref, scale_ref, shift_ref, o_ref):
    """o = y * scale + shift, channels lane-dense (Cpad = 128k)."""
    o_ref[...] = (y_ref[...] * scale_ref[...] + shift_ref[...]).astype(o_ref.dtype)


def _bn_scale_shift(y, scale, shift, th):
    n, h, w, cpad = y.shape
    r = h // th
    return pl.pallas_call(
        bn_scale_shift_kernel,
        out_shape=jax.ShapeDtypeStruct((n, h, w, cpad), jnp.float32),
        grid=(n, r),
        in_specs=[
            pl.BlockSpec((1, th, w, cpad), lambda i, j: (i, j, 0, 0)),
            pl.BlockSpec((1, cpad), lambda i, j: (0, 0)),
            pl.BlockSpec((1, cpad), lambda i, j: (0, 0)),
        ],
        out_specs=pl.BlockSpec((1, th, w, cpad), lambda i, j: (i, j, 0, 0)),
        compiler_params=pltpu.CompilerParams(
            dimension_semantics=("parallel", "parallel"),
            vmem_limit_bytes=VMEM_LIMIT_BYTES,
        ),
    )(y, scale, shift)


# --------------------------------------------------------------------------- #
# One stage: conv3x3 -> LeakyReLU -> BatchNorm2d (training-mode statistics)    #
# --------------------------------------------------------------------------- #
def _stage(x_nhwc, w_hwio, gamma, beta, th):
    n, h, w, _cphys = x_nhwc.shape
    kh, kw, cin, cout = w_hwio.shape
    cpad = _round_up(cout, LANE)

    # Weights as a (9, cin, Cpad) slab; Cout zero-padded for lane-dense output.
    w_taps = jnp.pad(
        w_hwio.astype(jnp.float32).reshape(kh * kw, cin, cout),
        ((0, 0), (0, 0), (0, cpad - cout)))

    # Spatial zero padding (Conv2d padding=1).
    # TODO(synk): fold into the kernel via masked edge handling (extra HBM pass).
    xp = jnp.pad(x_nhwc, ((0, 0), (1, 1), (1, 1), (0, 0)))

    y, s1, s2 = _conv_lrelu_stats(xp, w_taps, cin, th)

    # Global BatchNorm statistics (biased var, training mode) from tile partials.
    cnt = float(n * h * w)
    ch_sum = jnp.sum(s1[..., 0, :cout], axis=(0, 1))
    ch_sq = jnp.sum(s2[..., 0, :cout], axis=(0, 1))
    mean = ch_sum / cnt
    var = jnp.maximum(ch_sq / cnt - mean * mean, 0.0)
    scale = gamma.astype(jnp.float32) * jax.lax.rsqrt(var + EPS)
    shift = beta.astype(jnp.float32) - mean * scale
    # Zero scale/shift on padded channels keeps them exactly 0 for the next stage.
    scale = jnp.pad(scale, (0, cpad - cout)).reshape(1, cpad)
    shift = jnp.pad(shift, (0, cpad - cout)).reshape(1, cpad)

    return _bn_scale_shift(y, scale, shift, th)


@jax.jit
def double_conv(x_nchw, params):
    """DoubleConv forward. NCHW in/out (transposed to NHWC for the kernels)."""
    x = jnp.transpose(x_nchw, (0, 2, 3, 1)).astype(jnp.float32)
    cout = params["w1"].shape[-1]
    th = _pick_row_tile(x.shape[1])
    z1 = _stage(x, params["w1"], params["g1"], params["b1"], th)
    # Stage 2 consumes the lane-padded NHWC activation directly; its kernel
    # slices the real `cout` input channels before the tap matmuls.
    z2 = _stage(z1, params["w2"], params["g2"], params["b2"], th)
    return jnp.transpose(z2[..., :cout], (0, 3, 1, 2))


# ----------------------- pure-JAX reference (for checking) ----------------------- #
def _ref_stage(x_nchw, w_hwio, gamma, beta):
    w_oihw = jnp.transpose(w_hwio, (3, 2, 0, 1))
    y = jax.lax.conv_general_dilated(
        x_nchw, w_oihw, window_strides=(1, 1), padding=((1, 1), (1, 1)),
        dimension_numbers=("NCHW", "OIHW", "NCHW"))
    y = jnp.where(y >= 0, y, NEG_SLOPE * y)
    mean = jnp.mean(y, axis=(0, 2, 3), keepdims=True)
    var = jnp.mean((y - mean) ** 2, axis=(0, 2, 3), keepdims=True)
    y = (y - mean) * jax.lax.rsqrt(var + EPS)
    return y * gamma.reshape(1, -1, 1, 1) + beta.reshape(1, -1, 1, 1)


def ref_double_conv(x_nchw, params):
    y = _ref_stage(x_nchw, params["w1"], params["g1"], params["b1"])
    return _ref_stage(y, params["w2"], params["g2"], params["b2"])


if __name__ == "__main__":
    N, Cin, Cout, H, W = 2, 4, 8, 16, 16

    key = jax.random.PRNGKey(0)
    kx, kw1, kw2, kg1, kb1, kg2, kb2 = jax.random.split(key, 7)

    x = jax.random.normal(kx, (N, Cin, H, W), dtype=jnp.float32)
    params = {
        # Conv weights stored HWIO (kh, kw, cin, cout), bias=False as in the module
        "w1": 0.1 * jax.random.normal(kw1, (KH, KW, Cin, Cout), dtype=jnp.float32),
        "w2": 0.1 * jax.random.normal(kw2, (KH, KW, Cout, Cout), dtype=jnp.float32),
        # BatchNorm affine params
        "g1": 1.0 + 0.1 * jax.random.normal(kg1, (Cout,), dtype=jnp.float32),
        "b1": 0.1 * jax.random.normal(kb1, (Cout,), dtype=jnp.float32),
        "g2": 1.0 + 0.1 * jax.random.normal(kg2, (Cout,), dtype=jnp.float32),
        "b2": 0.1 * jax.random.normal(kb2, (Cout,), dtype=jnp.float32),
    }

    out = jax.block_until_ready(double_conv(x, params))
    ref = jax.block_until_ready(ref_double_conv(x, params))

    assert out.shape == (N, Cout, H, W), out.shape
    np.testing.assert_allclose(np.asarray(out), np.asarray(ref),
                               rtol=2e-4, atol=2e-4)
    print("KERNEL_OK")
</pallas_src>

<mosaic_0001>
module attributes {stable_mosaic.version = 11 : i64} {
  func.func @conv_lrelu_stats_kernel(%arg0: i32, %arg1: i32, %arg2: memref<1x18x18x4xf32, #tpu.memory_space<vmem>>, %arg3: memref<9x4x128xf32, #tpu.memory_space<vmem>>, %arg4: memref<1x8x16x128xf32, #tpu.memory_space<vmem>>, %arg5: memref<1x1x1x128xf32, #tpu.memory_space<vmem>>, %arg6: memref<1x1x1x128xf32, #tpu.memory_space<vmem>>) attributes {dimension_semantics = [#tpu.dimension_semantics<parallel>, #tpu.dimension_semantics<parallel>], iteration_bounds = array<i64: 2, 2>, scalar_prefetch = 0 : i64, scratch_operands = 0 : i64, tpu.core_type = #tpu.core_type<tc>, window_params = [{transform_indices = @transform_0, window_bounds = array<i64: 1, 18, 18, 4>}, {pipeline_mode = #tpu.pipeline_mode<synchronous>, transform_indices = @transform_1, window_bounds = array<i64: 9, 4, 128>}, {transform_indices = @transform_2, window_bounds = array<i64: 1, 8, 16, 128>}, {transform_indices = @transform_3, window_bounds = array<i64: 1, 1, 1, 128>}, {transform_indices = @transform_4, window_bounds = array<i64: 1, 1, 1, 128>}]} {
    %c8_i32 = arith.constant 8 : i32
    %0 = arith.muli %arg1, %c8_i32 : i32
    %1 = tpu.assume_multiple %0, 8 : i32
    %c0 = arith.constant 0 : index
    %2 = arith.index_cast %1 : i32 to index
    %c0_0 = arith.constant 0 : index
    %c0_1 = arith.constant 0 : index
    %3 = vector.load %arg2[%c0, %2, %c0_0, %c0_1] : memref<1x18x18x4xf32, #tpu.memory_space<vmem>>, vector<1x10x18x4xf32>
    %4 = vector.shape_cast %3 : vector<1x10x18x4xf32> to vector<10x18x4xf32>
    %cst = arith.constant 0.000000e+00 : f32
    %5 = vector.broadcast %cst : f32 to vector<128x128xf32>
    %6 = vector.extract_strided_slice %4 {offsets = [0, 0, 0], sizes = [8, 16, 4], strides = [1, 1, 1]} : vector<10x18x4xf32> to vector<8x16x4xf32>
    %7 = vector.shape_cast %6 : vector<8x16x4xf32> to vector<128x4xf32>
    %c0_2 = arith.constant 0 : index
    %c0_3 = arith.constant 0 : index
    %c0_4 = arith.constant 0 : index
    %8 = vector.load %arg3[%c0_2, %c0_3, %c0_4] : memref<9x4x128xf32, #tpu.memory_space<vmem>>, vector<1x4x128xf32>
    %9 = vector.shape_cast %8 : vector<1x4x128xf32> to vector<4x128xf32>
    %cst_5 = arith.constant dense<0.000000e+00> : vector<128x128xf32>
    %10 = tpu.matmul %7, %9, %cst_5 {dimension_numbers = #tpu.dot_dimension_numbers<[1], [0], [0], [1], [0, 0, 1, 1], [], []>} : vector<128x4xf32>, vector<4x128xf32>, vector<128x128xf32> -> vector<128x128xf32>
    %11 = arith.addf %5, %10 : vector<128x128xf32>
    %12 = vector.extract_strided_slice %4 {offsets = [0, 1, 0], sizes = [8, 16, 4], strides = [1, 1, 1]} : vector<10x18x4xf32> to vector<8x16x4xf32>
    %13 = vector.shape_cast %12 : vector<8x16x4xf32> to vector<128x4xf32>
    %c1 = arith.constant 1 : index
    %c0_6 = arith.constant 0 : index
    %c0_7 = arith.constant 0 : index
    %14 = vector.load %arg3[%c1, %c0_6, %c0_7] : memref<9x4x128xf32, #tpu.memory_space<vmem>>, vector<1x4x128xf32>
    %15 = vector.shape_cast %14 : vector<1x4x128xf32> to vector<4x128xf32>
    %cst_8 = arith.constant dense<0.000000e+00> : vector<128x128xf32>
    %16 = tpu.matmul %13, %15, %cst_8 {dimension_numbers = #tpu.dot_dimension_numbers<[1], [0], [0], [1], [0, 0, 1, 1], [], []>} : vector<128x4xf32>, vector<4x128xf32>, vector<128x128xf32> -> vector<128x128xf32>
    %17 = arith.addf %11, %16 : vector<128x128xf32>
    %18 = vector.extract_strided_slice %4 {offsets = [0, 2, 0], sizes = [8, 16, 4], strides = [1, 1, 1]} : vector<10x18x4xf32> to vector<8x16x4xf32>
    %19 = vector.shape_cast %18 : vector<8x16x4xf32> to vector<128x4xf32>
    %c2 = arith.constant 2 : index
    %c0_9 = arith.constant 0 : index
    %c0_10 = arith.constant 0 : index
    %20 = vector.load %arg3[%c2, %c0_9, %c0_10] : memref<9x4x128xf32, #tpu.memory_space<vmem>>, vector<1x4x128xf32>
    %21 = vector.shape_cast %20 : vector<1x4x128xf32> to vector<4x128xf32>
    %cst_11 = arith.constant dense<0.000000e+00> : vector<128x128xf32>
    %22 = tpu.matmul %19, %21, %cst_11 {dimension_numbers = #tpu.dot_dimension_numbers<[1], [0], [0], [1], [0, 0, 1, 1], [], []>} : vector<128x4xf32>, vector<4x128xf32>, vector<128x128xf32> -> vector<128x128xf32>
    %23 = arith.addf %17, %22 : vector<128x128xf32>
    %24 = vector.extract_strided_slice %4 {offsets = [1, 0, 0], sizes = [8, 16, 4], strides = [1, 1, 1]} : vector<10x18x4xf32> to vector<8x16x4xf32>
    %25 = vector.shape_cast %24 : vector<8x16x4xf32> to vector<128x4xf32>
    %c3 = arith.constant 3 : index
    %c0_12 = arith.constant 0 : index
    %c0_13 = arith.constant 0 : index
    %26 = vector.load %arg3[%c3, %c0_12, %c0_13] : memref<9x4x128xf32, #tpu.memory_space<vmem>>, vector<1x4x128xf32>
    %27 = vector.shape_cast %26 : vector<1x4x128xf32> to vector<4x128xf32>
    %cst_14 = arith.constant dense<0.000000e+00> : vector<128x128xf32>
    %28 = tpu.matmul %25, %27, %cst_14 {dimension_numbers = #tpu.dot_dimension_numbers<[1], [0], [0], [1], [0, 0, 1, 1], [], []>} : vector<128x4xf32>, vector<4x128xf32>, vector<128x128xf32> -> vector<128x128xf32>
    %29 = arith.addf %23, %28 : vector<128x128xf32>
    %30 = vector.extract_strided_slice %4 {offsets = [1, 1, 0], sizes = [8, 16, 4], strides = [1, 1, 1]} : vector<10x18x4xf32> to vector<8x16x4xf32>
    %31 = vector.shape_cast %30 : vector<8x16x4xf32> to vector<128x4xf32>
    %c4 = arith.constant 4 : index
    %c0_15 = arith.constant 0 : index
    %c0_16 = arith.constant 0 : index
    %32 = vector.load %arg3[%c4, %c0_15, %c0_16] : memref<9x4x128xf32, #tpu.memory_space<vmem>>, vector<1x4x128xf32>
    %33 = vector.shape_cast %32 : vector<1x4x128xf32> to vector<4x128xf32>
    %cst_17 = arith.constant dense<0.000000e+00> : vector<128x128xf32>
    %34 = tpu.matmul %31, %33, %cst_17 {dimension_numbers = #tpu.dot_dimension_numbers<[1], [0], [0], [1], [0, 0, 1, 1], [], []>} : vector<128x4xf32>, vector<4x128xf32>, vector<128x128xf32> -> vector<128x128xf32>
    %35 = arith.addf %29, %34 : vector<128x128xf32>
    %36 = vector.extract_strided_slice %4 {offsets = [1, 2, 0], sizes = [8, 16, 4], strides = [1, 1, 1]} : vector<10x18x4xf32> to vector<8x16x4xf32>
    %37 = vector.shape_cast %36 : vector<8x16x4xf32> to vector<128x4xf32>
    %c5 = arith.constant 5 : index
    %c0_18 = arith.constant 0 : index
    %c0_19 = arith.constant 0 : index
    %38 = vector.load %arg3[%c5, %c0_18, %c0_19] : memref<9x4x128xf32, #tpu.memory_space<vmem>>, vector<1x4x128xf32>
    %39 = vector.shape_cast %38 : vector<1x4x128xf32> to vector<4x128xf32>
    %cst_20 = arith.constant dense<0.000000e+00> : vector<128x128xf32>
    %40 = tpu.matmul %37, %39, %cst_20 {dimension_numbers = #tpu.dot_dimension_numbers<[1], [0], [0], [1], [0, 0, 1, 1], [], []>} : vector<128x4xf32>, vector<4x128xf32>, vector<128x128xf32> -> vector<128x128xf32>
    %41 = arith.addf %35, %40 : vector<128x128xf32>
    %42 = vector.extract_strided_slice %4 {offsets = [2, 0, 0], sizes = [8, 16, 4], strides = [1, 1, 1]} : vector<10x18x4xf32> to vector<8x16x4xf32>
    %43 = vector.shape_cast %42 : vector<8x16x4xf32> to vector<128x4xf32>
    %c6 = arith.constant 6 : index
    %c0_21 = arith.constant 0 : index
    %c0_22 = arith.constant 0 : index
    %44 = vector.load %arg3[%c6, %c0_21, %c0_22] : memref<9x4x128xf32, #tpu.memory_space<vmem>>, vector<1x4x128xf32>
    %45 = vector.shape_cast %44 : vector<1x4x128xf32> to vector<4x128xf32>
    %cst_23 = arith.constant dense<0.000000e+00> : vector<128x128xf32>
    %46 = tpu.matmul %43, %45, %cst_23 {dimension_numbers = #tpu.dot_dimension_numbers<[1], [0], [0], [1], [0, 0, 1, 1], [], []>} : vector<128x4xf32>, vector<4x128xf32>, vector<128x128xf32> -> vector<128x128xf32>
    %47 = arith.addf %41, %46 : vector<128x128xf32>
    %48 = vector.extract_strided_slice %4 {offsets = [2, 1, 0], sizes = [8, 16, 4], strides = [1, 1, 1]} : vector<10x18x4xf32> to vector<8x16x4xf32>
    %49 = vector.shape_cast %48 : vector<8x16x4xf32> to vector<128x4xf32>
    %c7 = arith.constant 7 : index
    %c0_24 = arith.constant 0 : index
    %c0_25 = arith.constant 0 : index
    %50 = vector.load %arg3[%c7, %c0_24, %c0_25] : memref<9x4x128xf32, #tpu.memory_space<vmem>>, vector<1x4x128xf32>
    %51 = vector.shape_cast %50 : vector<1x4x128xf32> to vector<4x128xf32>
    %cst_26 = arith.constant dense<0.000000e+00> : vector<128x128xf32>
    %52 = tpu.matmul %49, %51, %cst_26 {dimension_numbers = #tpu.dot_dimension_numbers<[1], [0], [0], [1], [0, 0, 1, 1], [], []>} : vector<128x4xf32>, vector<4x128xf32>, vector<128x128xf32> -> vector<128x128xf32>
    %53 = arith.addf %47, %52 : vector<128x128xf32>
    %54 = vector.extract_strided_slice %4 {offsets = [2, 2, 0], sizes = [8, 16, 4], strides = [1, 1, 1]} : vector<10x18x4xf32> to vector<8x16x4xf32>
    %55 = vector.shape_cast %54 : vector<8x16x4xf32> to vector<128x4xf32>
    %c8 = arith.constant 8 : index
    %c0_27 = arith.constant 0 : index
    %c0_28 = arith.constant 0 : index
    %56 = vector.load %arg3[%c8, %c0_27, %c0_28] : memref<9x4x128xf32, #tpu.memory_space<vmem>>, vector<1x4x128xf32>
    %57 = vector.shape_cast %56 : vector<1x4x128xf32> to vector<4x128xf32>
    %cst_29 = arith.constant dense<0.000000e+00> : vector<128x128xf32>
    %58 = tpu.matmul %55, %57, %cst_29 {dimension_numbers = #tpu.dot_dimension_numbers<[1], [0], [0], [1], [0, 0, 1, 1], [], []>} : vector<128x4xf32>, vector<4x128xf32>, vector<128x128xf32> -> vector<128x128xf32>
    %59 = arith.addf %53, %58 : vector<128x128xf32>
    %cst_30 = arith.constant 0.000000e+00 : f32
    %60 = vector.broadcast %cst_30 : f32 to vector<128x128xf32>
    %61 = arith.cmpf oge, %59, %60 : vector<128x128xf32>
    %cst_31 = arith.constant 0.00999999977 : f32
    %62 = vector.broadcast %cst_31 : f32 to vector<128x128xf32>
    %63 = arith.mulf %62, %59 : vector<128x128xf32>
    %64 = arith.select %61, %59, %63 : vector<128x128xi1>, vector<128x128xf32>
    %65 = vector.shape_cast %64 : vector<128x128xf32> to vector<1x8x16x128xf32>
    %c0_32 = arith.constant 0 : index
    %c0_33 = arith.constant 0 : index
    %c0_34 = arith.constant 0 : index
    %c0_35 = arith.constant 0 : index
    %66 = vector.load %arg4[%c0_32, %c0_33, %c0_34, %c0_35] : memref<1x8x16x128xf32, #tpu.memory_space<vmem>>, vector<1x8x16x128xf32>
    tpu.vector_store %arg4[%c0_32, %c0_33, %c0_34, %c0_35], %65 {strides = array<i32>} : memref<1x8x16x128xf32, #tpu.memory_space<vmem>>, vector<1x8x16x128xf32>,
    %cst_36 = arith.constant dense<0.000000e+00> : vector<128xf32>
    %67 = vector.multi_reduction <add>, %64, %cst_36 [0] : vector<128x128xf32> to vector<128xf32>
    %68 = vector.shape_cast %67 : vector<128xf32> to vector<1x1x1x128xf32>
    %c0_37 = arith.constant 0 : index
    %c0_38 = arith.constant 0 : index
    %c0_39 = arith.constant 0 : index
    %c0_40 = arith.constant 0 : index
    %69 = vector.load %arg5[%c0_37, %c0_38, %c0_39, %c0_40] : memref<1x1x1x128xf32, #tpu.memory_space<vmem>>, vector<1x1x1x128xf32>
    tpu.vector_store %arg5[%c0_37, %c0_38, %c0_39, %c0_40], %68 {strides = array<i32>} : memref<1x1x1x128xf32, #tpu.memory_space<vmem>>, vector<1x1x1x128xf32>,
    %70 = arith.mulf %64, %64 : vector<128x128xf32>
    %cst_41 = arith.constant dense<0.000000e+00> : vector<128xf32>
    %71 = vector.multi_reduction <add>, %70, %cst_41 [0] : vector<128x128xf32> to vector<128xf32>
    %72 = vector.shape_cast %71 : vector<128xf32> to vector<1x1x1x128xf32>
    %c0_42 = arith.constant 0 : index
    %c0_43 = arith.constant 0 : index
    %c0_44 = arith.constant 0 : index
    %c0_45 = arith.constant 0 : index
    %73 = vector.load %arg6[%c0_42, %c0_43, %c0_44, %c0_45] : memref<1x1x1x128xf32, #tpu.memory_space<vmem>>, vector<1x1x1x128xf32>
    tpu.vector_store %arg6[%c0_42, %c0_43, %c0_44, %c0_45], %72 {strides = array<i32>} : memref<1x1x1x128xf32, #tpu.memory_space<vmem>>, vector<1x1x1x128xf32>,
    return
  }
  func.func @transform_0(%arg0: i32, %arg1: i32) -> (i32, i32, i32, i32) {
    %c0_i32 = arith.constant 0 : i32
    %c0_i32_0 = arith.constant 0 : i32
    %c0_i32_1 = arith.constant 0 : i32
    %c0_i32_2 = arith.constant 0 : i32
    return %arg0, %c0_i32, %c0_i32_0, %c0_i32_1 : i32, i32, i32, i32
  }
  func.func @transform_1(%arg0: i32, %arg1: i32) -> (i32, i32, i32) {
    %c0_i32 = arith.constant 0 : i32
    %c0_i32_0 = arith.constant 0 : i32
    %c0_i32_1 = arith.constant 0 : i32
    %c0_i32_2 = arith.constant 0 : i32
    return %c0_i32, %c0_i32_0, %c0_i32_1 : i32, i32, i32
  }
  func.func @transform_2(%arg0: i32, %arg1: i32) -> (i32, i32, i32, i32) {
    %c0_i32 = arith.constant 0 : i32
    %c0_i32_0 = arith.constant 0 : i32
    %c0_i32_1 = arith.constant 0 : i32
    return %arg0, %arg1, %c0_i32, %c0_i32_0 : i32, i32, i32, i32
  }
  func.func @transform_3(%arg0: i32, %arg1: i32) -> (i32, i32, i32, i32) {
    %c0_i32 = arith.constant 0 : i32
    %c0_i32_0 = arith.constant 0 : i32
    %c0_i32_1 = arith.constant 0 : i32
    return %arg0, %arg1, %c0_i32, %c0_i32_0 : i32, i32, i32, i32
  }
  func.func @transform_4(%arg0: i32, %arg1: i32) -> (i32, i32, i32, i32) {
    %c0_i32 = arith.constant 0 : i32
    %c0_i32_0 = arith.constant 0 : i32
    %c0_i32_1 = arith.constant 0 : i32
    return %arg0, %arg1, %c0_i32, %c0_i32_0 : i32, i32, i32, i32
  }
}

module attributes {stable_mosaic.version = 11 : i64} {
  func.func @bn_scale_shift_kernel(%arg0: i32, %arg1: i32, %arg2: memref<1x8x16x128xf32, #tpu.memory_space<vmem>>, %arg3: memref<1x128xf32, #tpu.memory_space<vmem>>, %arg4: memref<1x128xf32, #tpu.memory_space<vmem>>, %arg5: memref<1x8x16x128xf32, #tpu.memory_space<vmem>>) attributes {dimension_semantics = [#tpu.dimension_semantics<parallel>, #tpu.dimension_semantics<parallel>], iteration_bounds = array<i64: 2, 2>, scalar_prefetch = 0 : i64, scratch_operands = 0 : i64, tpu.core_type = #tpu.core_type<tc>, window_params = [{transform_indices = @transform_0, window_bounds = array<i64: 1, 8, 16, 128>}, {pipeline_mode = #tpu.pipeline_mode<synchronous>, transform_indices = @transform_1, window_bounds = array<i64: 1, 128>}, {pipeline_mode = #tpu.pipeline_mode<synchronous>, transform_indices = @transform_2, window_bounds = array<i64: 1, 128>}, {transform_indices = @transform_3, window_bounds = array<i64: 1, 8, 16, 128>}]} {
    %c0 = arith.constant 0 : index
    %c0_0 = arith.constant 0 : index
    %c0_1 = arith.constant 0 : index
    %c0_2 = arith.constant 0 : index
    %0 = vector.load %arg2[%c0, %c0_0, %c0_1, %c0_2] : memref<1x8x16x128xf32, #tpu.memory_space<vmem>>, vector<1x8x16x128xf32>
    %c0_3 = arith.constant 0 : index
    %c0_4 = arith.constant 0 : index
    %1 = vector.load %arg3[%c0_3, %c0_4] : memref<1x128xf32, #tpu.memory_space<vmem>>, vector<1x128xf32>
    %2 = vector.shape_cast %1 : vector<1x128xf32> to vector<1x1x1x128xf32>
    %3 = vector.broadcast %2 : vector<1x1x1x128xf32> to vector<1x8x16x128xf32>
    %4 = arith.mulf %0, %3 : vector<1x8x16x128xf32>
    %c0_5 = arith.constant 0 : index
    %c0_6 = arith.constant 0 : index
    %5 = vector.load %arg4[%c0_5, %c0_6] : memref<1x128xf32, #tpu.memory_space<vmem>>, vector<1x128xf32>
    %6 = vector.shape_cast %5 : vector<1x128xf32> to vector<1x1x1x128xf32>
    %7 = vector.broadcast %6 : vector<1x1x1x128xf32> to vector<1x8x16x128xf32>
    %8 = arith.addf %4, %7 : vector<1x8x16x128xf32>
    %c0_7 = arith.constant 0 : index
    %c0_8 = arith.constant 0 : index
    %c0_9 = arith.constant 0 : index
    %c0_10 = arith.constant 0 : index
    %9 = vector.load %arg5[%c0_7, %c0_8, %c0_9, %c0_10] : memref<1x8x16x128xf32, #tpu.memory_space<vmem>>, vector<1x8x16x128xf32>
    tpu.vector_store %arg5[%c0_7, %c0_8, %c0_9, %c0_10], %8 {strides = array<i32>} : memref<1x8x16x128xf32, #tpu.memory_space<vmem>>, vector<1x8x16x128xf32>,
    return
  }
  func.func @transform_0(%arg0: i32, %arg1: i32) -> (i32, i32, i32, i32) {
    %c0_i32 = arith.constant 0 : i32
    %c0_i32_0 = arith.constant 0 : i32
    %c0_i32_1 = arith.constant 0 : i32
    return %arg0, %arg1, %c0_i32, %c0_i32_0 : i32, i32, i32, i32
  }
  func.func @transform_1(%arg0: i32, %arg1: i32) -> (i32, i32) {
    %c0_i32 = arith.constant 0 : i32
    %c0_i32_0 = arith.constant 0 : i32
    %c0_i32_1 = arith.constant 0 : i32
    return %c0_i32, %c0_i32_0 : i32, i32
  }
  func.func @transform_2(%arg0: i32, %arg1: i32) -> (i32, i32) {
    %c0_i32 = arith.constant 0 : i32
    %c0_i32_0 = arith.constant 0 : i32
    %c0_i32_1 = arith.constant 0 : i32
    return %c0_i32, %c0_i32_0 : i32, i32
  }
  func.func @transform_3(%arg0: i32, %arg1: i32) -> (i32, i32, i32, i32) {
    %c0_i32 = arith.constant 0 : i32
    %c0_i32_0 = arith.constant 0 : i32
    %c0_i32_1 = arith.constant 0 : i32
    return %arg0, %arg1, %c0_i32, %c0_i32_0 : i32, i32, i32, i32
  }
}

module attributes {stable_mosaic.version = 11 : i64} {
  func.func @conv_lrelu_stats_kernel(%arg0: i32, %arg1: i32, %arg2: memref<1x18x18x128xf32, #tpu.memory_space<vmem>>, %arg3: memref<9x8x128xf32, #tpu.memory_space<vmem>>, %arg4: memref<1x8x16x128xf32, #tpu.memory_space<vmem>>, %arg5: memref<1x1x1x128xf32, #tpu.memory_space<vmem>>, %arg6: memref<1x1x1x128xf32, #tpu.memory_space<vmem>>) attributes {dimension_semantics = [#tpu.dimension_semantics<parallel>, #tpu.dimension_semantics<parallel>], iteration_bounds = array<i64: 2, 2>, scalar_prefetch = 0 : i64, scratch_operands = 0 : i64, tpu.core_type = #tpu.core_type<tc>, window_params = [{transform_indices = @transform_0, window_bounds = array<i64: 1, 18, 18, 128>}, {pipeline_mode = #tpu.pipeline_mode<synchronous>, transform_indices = @transform_1, window_bounds = array<i64: 9, 8, 128>}, {transform_indices = @transform_2, window_bounds = array<i64: 1, 8, 16, 128>}, {transform_indices = @transform_3, window_bounds = array<i64: 1, 1, 1, 128>}, {transform_indices = @transform_4, window_bounds = array<i64: 1, 1, 1, 128>}]} {
    %c8_i32 = arith.constant 8 : i32
    %0 = arith.muli %arg1, %c8_i32 : i32
    %1 = tpu.assume_multiple %0, 8 : i32
    %c0 = arith.constant 0 : index
    %2 = arith.index_cast %1 : i32 to index
    %c0_0 = arith.constant 0 : index
    %c0_1 = arith.constant 0 : index
    %3 = vector.load %arg2[%c0, %2, %c0_0, %c0_1] : memref<1x18x18x128xf32, #tpu.memory_space<vmem>>, vector<1x10x18x128xf32>
    %4 = vector.shape_cast %3 : vector<1x10x18x128xf32> to vector<10x18x128xf32>
    %cst = arith.constant 0.000000e+00 : f32
    %5 = vector.broadcast %cst : f32 to vector<128x128xf32>
    %6 = vector.extract_strided_slice %4 {offsets = [0, 0, 0], sizes = [8, 16, 8], strides = [1, 1, 1]} : vector<10x18x128xf32> to vector<8x16x8xf32>
    %7 = vector.shape_cast %6 : vector<8x16x8xf32> to vector<128x8xf32>
    %c0_2 = arith.constant 0 : index
    %c0_3 = arith.constant 0 : index
    %c0_4 = arith.constant 0 : index
    %8 = vector.load %arg3[%c0_2, %c0_3, %c0_4] : memref<9x8x128xf32, #tpu.memory_space<vmem>>, vector<1x8x128xf32>
    %9 = vector.shape_cast %8 : vector<1x8x128xf32> to vector<8x128xf32>
    %cst_5 = arith.constant dense<0.000000e+00> : vector<128x128xf32>
    %10 = tpu.matmul %7, %9, %cst_5 {dimension_numbers = #tpu.dot_dimension_numbers<[1], [0], [0], [1], [0, 0, 1, 1], [], []>} : vector<128x8xf32>, vector<8x128xf32>, vector<128x128xf32> -> vector<128x128xf32>
    %11 = arith.addf %5, %10 : vector<128x128xf32>
    %12 = vector.extract_strided_slice %4 {offsets = [0, 1, 0], sizes = [8, 16, 8], strides = [1, 1, 1]} : vector<10x18x128xf32> to vector<8x16x8xf32>
    %13 = vector.shape_cast %12 : vector<8x16x8xf32> to vector<128x8xf32>
    %c1 = arith.constant 1 : index
    %c0_6 = arith.constant 0 : index
    %c0_7 = arith.constant 0 : index
    %14 = vector.load %arg3[%c1, %c0_6, %c0_7] : memref<9x8x128xf32, #tpu.memory_space<vmem>>, vector<1x8x128xf32>
    %15 = vector.shape_cast %14 : vector<1x8x128xf32> to vector<8x128xf32>
    %cst_8 = arith.constant dense<0.000000e+00> : vector<128x128xf32>
    %16 = tpu.matmul %13, %15, %cst_8 {dimension_numbers = #tpu.dot_dimension_numbers<[1], [0], [0], [1], [0, 0, 1, 1], [], []>} : vector<128x8xf32>, vector<8x128xf32>, vector<128x128xf32> -> vector<128x128xf32>
    %17 = arith.addf %11, %16 : vector<128x128xf32>
    %18 = vector.extract_strided_slice %4 {offsets = [0, 2, 0], sizes = [8, 16, 8], strides = [1, 1, 1]} : vector<10x18x128xf32> to vector<8x16x8xf32>
    %19 = vector.shape_cast %18 : vector<8x16x8xf32> to vector<128x8xf32>
    %c2 = arith.constant 2 : index
    %c0_9 = arith.constant 0 : index
    %c0_10 = arith.constant 0 : index
    %20 = vector.load %arg3[%c2, %c0_9, %c0_10] : memref<9x8x128xf32, #tpu.memory_space<vmem>>, vector<1x8x128xf32>
    %21 = vector.shape_cast %20 : vector<1x8x128xf32> to vector<8x128xf32>
    %cst_11 = arith.constant dense<0.000000e+00> : vector<128x128xf32>
    %22 = tpu.matmul %19, %21, %cst_11 {dimension_numbers = #tpu.dot_dimension_numbers<[1], [0], [0], [1], [0, 0, 1, 1], [], []>} : vector<128x8xf32>, vector<8x128xf32>, vector<128x128xf32> -> vector<128x128xf32>
    %23 = arith.addf %17, %22 : vector<128x128xf32>
    %24 = vector.extract_strided_slice %4 {offsets = [1, 0, 0], sizes = [8, 16, 8], strides = [1, 1, 1]} : vector<10x18x128xf32> to vector<8x16x8xf32>
    %25 = vector.shape_cast %24 : vector<8x16x8xf32> to vector<128x8xf32>
    %c3 = arith.constant 3 : index
    %c0_12 = arith.constant 0 : index
    %c0_13 = arith.constant 0 : index
    %26 = vector.load %arg3[%c3, %c0_12, %c0_13] : memref<9x8x128xf32, #tpu.memory_space<vmem>>, vector<1x8x128xf32>
    %27 = vector.shape_cast %26 : vector<1x8x128xf32> to vector<8x128xf32>
    %cst_14 = arith.constant dense<0.000000e+00> : vector<128x128xf32>
    %28 = tpu.matmul %25, %27, %cst_14 {dimension_numbers = #tpu.dot_dimension_numbers<[1], [0], [0], [1], [0, 0, 1, 1], [], []>} : vector<128x8xf32>, vector<8x128xf32>, vector<128x128xf32> -> vector<128x128xf32>
    %29 = arith.addf %23, %28 : vector<128x128xf32>
    %30 = vector.extract_strided_slice %4 {offsets = [1, 1, 0], sizes = [8, 16, 8], strides = [1, 1, 1]} : vector<10x18x128xf32> to vector<8x16x8xf32>
    %31 = vector.shape_cast %30 : vector<8x16x8xf32> to vector<128x8xf32>
    %c4 = arith.constant 4 : index
    %c0_15 = arith.constant 0 : index
    %c0_16 = arith.constant 0 : index
    %32 = vector.load %arg3[%c4, %c0_15, %c0_16] : memref<9x8x128xf32, #tpu.memory_space<vmem>>, vector<1x8x128xf32>
    %33 = vector.shape_cast %32 : vector<1x8x128xf32> to vector<8x128xf32>
    %cst_17 = arith.constant dense<0.000000e+00> : vector<128x128xf32>
    %34 = tpu.matmul %31, %33, %cst_17 {dimension_numbers = #tpu.dot_dimension_numbers<[1], [0], [0], [1], [0, 0, 1, 1], [], []>} : vector<128x8xf32>, vector<8x128xf32>, vector<128x128xf32> -> vector<128x128xf32>
    %35 = arith.addf %29, %34 : vector<128x128xf32>
    %36 = vector.extract_strided_slice %4 {offsets = [1, 2, 0], sizes = [8, 16, 8], strides = [1, 1, 1]} : vector<10x18x128xf32> to vector<8x16x8xf32>
    %37 = vector.shape_cast %36 : vector<8x16x8xf32> to vector<128x8xf32>
    %c5 = arith.constant 5 : index
    %c0_18 = arith.constant 0 : index
    %c0_19 = arith.constant 0 : index
    %38 = vector.load %arg3[%c5, %c0_18, %c0_19] : memref<9x8x128xf32, #tpu.memory_space<vmem>>, vector<1x8x128xf32>
    %39 = vector.shape_cast %38 : vector<1x8x128xf32> to vector<8x128xf32>
    %cst_20 = arith.constant dense<0.000000e+00> : vector<128x128xf32>
    %40 = tpu.matmul %37, %39, %cst_20 {dimension_numbers = #tpu.dot_dimension_numbers<[1], [0], [0], [1], [0, 0, 1, 1], [], []>} : vector<128x8xf32>, vector<8x128xf32>, vector<128x128xf32> -> vector<128x128xf32>
    %41 = arith.addf %35, %40 : vector<128x128xf32>
    %42 = vector.extract_strided_slice %4 {offsets = [2, 0, 0], sizes = [8, 16, 8], strides = [1, 1, 1]} : vector<10x18x128xf32> to vector<8x16x8xf32>
    %43 = vector.shape_cast %42 : vector<8x16x8xf32> to vector<128x8xf32>
    %c6 = arith.constant 6 : index
    %c0_21 = arith.constant 0 : index
    %c0_22 = arith.constant 0 : index
    %44 = vector.load %arg3[%c6, %c0_21, %c0_22] : memref<9x8x128xf32, #tpu.memory_space<vmem>>, vector<1x8x128xf32>
    %45 = vector.shape_cast %44 : vector<1x8x128xf32> to vector<8x128xf32>
    %cst_23 = arith.constant dense<0.000000e+00> : vector<128x128xf32>
    %46 = tpu.matmul %43, %45, %cst_23 {dimension_numbers = #tpu.dot_dimension_numbers<[1], [0], [0], [1], [0, 0, 1, 1], [], []>} : vector<128x8xf32>, vector<8x128xf32>, vector<128x128xf32> -> vector<128x128xf32>
    %47 = arith.addf %41, %46 : vector<128x128xf32>
    %48 = vector.extract_strided_slice %4 {offsets = [2, 1, 0], sizes = [8, 16, 8], strides = [1, 1, 1]} : vector<10x18x128xf32> to vector<8x16x8xf32>
    %49 = vector.shape_cast %48 : vector<8x16x8xf32> to vector<128x8xf32>
    %c7 = arith.constant 7 : index
    %c0_24 = arith.constant 0 : index
    %c0_25 = arith.constant 0 : index
    %50 = vector.load %arg3[%c7, %c0_24, %c0_25] : memref<9x8x128xf32, #tpu.memory_space<vmem>>, vector<1x8x128xf32>
    %51 = vector.shape_cast %50 : vector<1x8x128xf32> to vector<8x128xf32>
    %cst_26 = arith.constant dense<0.000000e+00> : vector<128x128xf32>
    %52 = tpu.matmul %49, %51, %cst_26 {dimension_numbers = #tpu.dot_dimension_numbers<[1], [0], [0], [1], [0, 0, 1, 1], [], []>} : vector<128x8xf32>, vector<8x128xf32>, vector<128x128xf32> -> vector<128x128xf32>
    %53 = arith.addf %47, %52 : vector<128x128xf32>
    %54 = vector.extract_strided_slice %4 {offsets = [2, 2, 0], sizes = [8, 16, 8], strides = [1, 1, 1]} : vector<10x18x128xf32> to vector<8x16x8xf32>
    %55 = vector.shape_cast %54 : vector<8x16x8xf32> to vector<128x8xf32>
    %c8 = arith.constant 8 : index
    %c0_27 = arith.constant 0 : index
    %c0_28 = arith.constant 0 : index
    %56 = vector.load %arg3[%c8, %c0_27, %c0_28] : memref<9x8x128xf32, #tpu.memory_space<vmem>>, vector<1x8x128xf32>
    %57 = vector.shape_cast %56 : vector<1x8x128xf32> to vector<8x128xf32>
    %cst_29 = arith.constant dense<0.000000e+00> : vector<128x128xf32>
    %58 = tpu.matmul %55, %57, %cst_29 {dimension_numbers = #tpu.dot_dimension_numbers<[1], [0], [0], [1], [0, 0, 1, 1], [], []>} : vector<128x8xf32>, vector<8x128xf32>, vector<128x128xf32> -> vector<128x128xf32>
    %59 = arith.addf %53, %58 : vector<128x128xf32>
    %cst_30 = arith.constant 0.000000e+00 : f32
    %60 = vector.broadcast %cst_30 : f32 to vector<128x128xf32>
    %61 = arith.cmpf oge, %59, %60 : vector<128x128xf32>
    %cst_31 = arith.constant 0.00999999977 : f32
    %62 = vector.broadcast %cst_31 : f32 to vector<128x128xf32>
    %63 = arith.mulf %62, %59 : vector<128x128xf32>
    %64 = arith.select %61, %59, %63 : vector<128x128xi1>, vector<128x128xf32>
    %65 = vector.shape_cast %64 : vector<128x128xf32> to vector<1x8x16x128xf32>
    %c0_32 = arith.constant 0 : index
    %c0_33 = arith.constant 0 : index
    %c0_34 = arith.constant 0 : index
    %c0_35 = arith.constant 0 : index
    %66 = vector.load %arg4[%c0_32, %c0_33, %c0_34, %c0_35] : memref<1x8x16x128xf32, #tpu.memory_space<vmem>>, vector<1x8x16x128xf32>
    tpu.vector_store %arg4[%c0_32, %c0_33, %c0_34, %c0_35], %65 {strides = array<i32>} : memref<1x8x16x128xf32, #tpu.memory_space<vmem>>, vector<1x8x16x128xf32>,
    %cst_36 = arith.constant dense<0.000000e+00> : vector<128xf32>
    %67 = vector.multi_reduction <add>, %64, %cst_36 [0] : vector<128x128xf32> to vector<128xf32>
    %68 = vector.shape_cast %67 : vector<128xf32> to vector<1x1x1x128xf32>
    %c0_37 = arith.constant 0 : index
    %c0_38 = arith.constant 0 : index
    %c0_39 = arith.constant 0 : index
    %c0_40 = arith.constant 0 : index
    %69 = vector.load %arg5[%c0_37, %c0_38, %c0_39, %c0_40] : memref<1x1x1x128xf32, #tpu.memory_space<vmem>>, vector<1x1x1x128xf32>
    tpu.vector_store %arg5[%c0_37, %c0_38, %c0_39, %c0_40], %68 {strides = array<i32>} : memref<1x1x1x128xf32, #tpu.memory_space<vmem>>, vector<1x1x1x128xf32>,
    %70 = arith.mulf %64, %64 : vector<128x128xf32>
    %cst_41 = arith.constant dense<0.000000e+00> : vector<128xf32>
    %71 = vector.multi_reduction <add>, %70, %cst_41 [0] : vector<128x128xf32> to vector<128xf32>
    %72 = vector.shape_cast %71 : vector<128xf32> to vector<1x1x1x128xf32>
    %c0_42 = arith.constant 0 : index
    %c0_43 = arith.constant 0 : index
    %c0_44 = arith.constant 0 : index
    %c0_45 = arith.constant 0 : index
    %73 = vector.load %arg6[%c0_42, %c0_43, %c0_44, %c0_45] : memref<1x1x1x128xf32, #tpu.memory_space<vmem>>, vector<1x1x1x128xf32>
    tpu.vector_store %arg6[%c0_42, %c0_43, %c0_44, %c0_45], %72 {strides = array<i32>} : memref<1x1x1x128xf32, #tpu.memory_space<vmem>>, vector<1x1x1x128xf32>,
    return
  }
  func.func @transform_0(%arg0: i32, %arg1: i32) -> (i32, i32, i32, i32) {
    %c0_i32 = arith.constant 0 : i32
    %c0_i32_0 = arith.constant 0 : i32
    %c0_i32_1 = arith.constant 0 : i32
    %c0_i32_2 = arith.constant 0 : i32
    return %arg0, %c0_i32, %c0_i32_0, %c0_i32_1 : i32, i32, i32, i32
  }
  func.func @transform_1(%arg0: i32, %arg1: i32) -> (i32, i32, i32) {
    %c0_i32 = arith.constant 0 : i32
    %c0_i32_0 = arith.constant 0 : i32
    %c0_i32_1 = arith.constant 0 : i32
    %c0_i32_2 = arith.constant 0 : i32
    return %c0_i32, %c0_i32_0, %c0_i32_1 : i32, i32, i32
  }
  func.func @transform_2(%arg0: i32, %arg1: i32) -> (i32, i32, i32, i32) {
    %c0_i32 = arith.constant 0 : i32
    %c0_i32_0 = arith.constant 0 : i32
    %c0_i32_1 = arith.constant 0 : i32
    return %arg0, %arg1, %c0_i32, %c0_i32_0 : i32, i32, i32, i32
  }
  func.func @transform_3(%arg0: i32, %arg1: i32) -> (i32, i32, i32, i32) {
    %c0_i32 = arith.constant 0 : i32
    %c0_i32_0 = arith.constant 0 : i32
    %c0_i32_1 = arith.constant 0 : i32
    return %arg0, %arg1, %c0_i32, %c0_i32_0 : i32, i32, i32, i32
  }
  func.func @transform_4(%arg0: i32, %arg1: i32) -> (i32, i32, i32, i32) {
    %c0_i32 = arith.constant 0 : i32
    %c0_i32_0 = arith.constant 0 : i32
    %c0_i32_1 = arith.constant 0 : i32
    return %arg0, %arg1, %c0_i32, %c0_i32_0 : i32, i32, i32, i32
  }
}

</mosaic_0001>

<llo_original>
// kernel: double_conv.5
$region0: #{double_conv.5}
  #allocation0 [shape = 'u32[]', space=smem, size = 0x4, offset = 0x4, fixed_abs, tag = 'smem constant byte address 0x4 - core index']
  #allocation1 [shape = 'u32[144,128]{1,0:T(1,128)}', space=vmem, size = 0x12000, scoped, tag = 'internal scratch']
  %s0 = inlined_call_operand.vmem [shape: f32[2,16,16,128], index: 0, kind: input, shape index: {}]
  %s1 = inlined_call_operand.vmem [shape: f32[1,128], index: 1, kind: input, shape index: {}]
  %s2 = inlined_call_operand.vmem [shape: f32[1,128], index: 2, kind: input, shape index: {}]
  %s3 = inlined_call_operand.vmem [shape: f32[2,16,16,128], index: 3, kind: output, shape index: {}]
  %s4 = sld [smem:[#allocation0]]
  $region45: #{double_conv.5} parent=0
    _
  %s6 = ssub.s32 1, %s4
  %s7 = scalar_select 0, %s6, %s4
  loop: start=0, step=1, limit=6
  $region2: #{double_conv.5} parent=0 // loop_pre_header
    _
  $region3: #{double_conv.5} parent=0 // loop_header
    %s9 = sphi 0, %s13
    %p10 = scmp.ge.s32.totalorder %s9, 6
    %s16 = sphi 0, %s28
    %s17 = sphi 0, %s24
    %s18 = sphi 0, %s16
    %s19 = sphi 0, %s17
    %s20 = sphi 0, %s18
    %s21 = sphi 0, %s19
    %s33 = sphi 0, %s35
    %s36 = sphi 0, %s33
    %s37 = sphi 0, %s36
    %s53 = sphi 0, %s37
    %s57 = sphi 0, %s57
    %s59 = sphi 0, %s57
    %s60 = sphi 0, %s59
    %s74 = sphi 0, %s60
    %s78 = sphi 0, %s78
    %s80 = sphi 0, %s78
    %s81 = sphi 0, %s80
    %s95 = sphi 0, %s81
    %s103 = sphi 0, %s105
    %s106 = sphi 0, %s103
    %s107 = sphi 0, %s106
    %s123 = sphi 0, %s107
  $region4: #{double_conv.5} parent=0 // loop_header_branch
    %12 = sbr.rel (%p10) target = $region8
  $region5: #{double_conv.5} parent=0 // loop_body
    %s14 = ssub.s32 %s9, 1
    %s15 = ssub.s32 %s9, 2
    %s22 = sadd.s32 1, %s17
    %p23 = scmp.ge.s32.totalorder %s22, 2
    %s24 = scalar_select %p23, 0, %s22
    %s25 = sadd.s32 1, %s16
    %s26 = scalar_select %p23, %s25, %s16
    %p27 = scmp.ge.s32.totalorder %s26, 2
    %s28 = scalar_select %p27, 0, %s26
    %s29 = ssub.s32 %s16, %s28
    %s30 = ssub.s32 %s17, %s24
    %s31 = sor.u32 %s29, %s30
    %p32 = scmp.eq.s32.totalorder %s31, 0
    %s34 = sadd.s32 %s33, 1
    %s35 = scalar_select %p32, %s33, %s34
    %p38 = pneg %p32
    %p39 = scmp.eq.s32.totalorder %s9, 3
    %p40 = por %p38, %p39
    %p41 = scmp.ne.s32.totalorder %s33, %s36
    %p42 = scmp.eq.s32.totalorder %s9, 0
    %p43 = por %p41, %p42
    %p44 = scmp.ne.s32.totalorder %s33, %s36
    %p45 = scmp.eq.s32.totalorder %s14, 3
    %p46 = por %p44, %p45
    %p47 = scmp.ne.s32.totalorder %s36, %s37
    %p48 = scmp.eq.s32.totalorder %s14, 0
    %p49 = por %p47, %p48
    %p50 = scmp.ne.s32.totalorder %s36, %s37
    %p51 = scmp.eq.s32.totalorder %s15, 3
    %p52 = por %p50, %p51
    %p54 = scmp.ne.s32.totalorder %s37, %s53
    %p55 = scmp.eq.s32.totalorder %s15, 0
    %p56 = por %p54, %p55
    %s58 = sadd.s32 %s57, 1
    %p61 = scmp.eq.s32.totalorder %s9, 3
    %p62 = scmp.ne.s32.totalorder %s57, %s59
    %p63 = scmp.eq.s32.totalorder %s9, 0
    %p64 = por %p62, %p63
    %p65 = scmp.ne.s32.totalorder %s57, %s59
    %p66 = scmp.eq.s32.totalorder %s14, 3
    %p67 = por %p65, %p66
    %p68 = scmp.ne.s32.totalorder %s59, %s60
    %p69 = scmp.eq.s32.totalorder %s14, 0
    %p70 = por %p68, %p69
    %p71 = scmp.ne.s32.totalorder %s59, %s60
    %p72 = scmp.eq.s32.totalorder %s15, 3
    %p73 = por %p71, %p72
    %p75 = scmp.ne.s32.totalorder %s60, %s74
    %p76 = scmp.eq.s32.totalorder %s15, 0
    %p77 = por %p75, %p76
    %s79 = sadd.s32 %s78, 1
    %p82 = scmp.eq.s32.totalorder %s9, 3
    %p83 = scmp.ne.s32.totalorder %s78, %s80
    %p84 = scmp.eq.s32.totalorder %s9, 0
    %p85 = por %p83, %p84
    %p86 = scmp.ne.s32.totalorder %s78, %s80
    %p87 = scmp.eq.s32.totalorder %s14, 3
    %p88 = por %p86, %p87
    %p89 = scmp.ne.s32.totalorder %s80, %s81
    %p90 = scmp.eq.s32.totalorder %s14, 0
    %p91 = por %p89, %p90
    %p92 = scmp.ne.s32.totalorder %s80, %s81
    %p93 = scmp.eq.s32.totalorder %s15, 3
    %p94 = por %p92, %p93
    %p96 = scmp.ne.s32.totalorder %s81, %s95
    %p97 = scmp.eq.s32.totalorder %s15, 0
    %p98 = por %p96, %p97
    %s99 = ssub.s32 %s16, %s28
    %s100 = ssub.s32 %s17, %s24
    %s101 = sor.u32 %s99, %s100
    %p102 = scmp.eq.s32.totalorder %s101, 0
    %s104 = sadd.s32 %s103, 1
    %s105 = scalar_select %p102, %s103, %s104
    %p108 = pneg %p102
    %p109 = scmp.eq.s32.totalorder %s9, 3
    %p110 = por %p108, %p109
    %p111 = scmp.ne.s32.totalorder %s103, %s106
    %p112 = scmp.eq.s32.totalorder %s9, 0
    %p113 = por %p111, %p112
    %p114 = scmp.ne.s32.totalorder %s103, %s106
    %p115 = scmp.eq.s32.totalorder %s14, 3
    %p116 = por %p114, %p115
    %p117 = scmp.ne.s32.totalorder %s106, %s107
    %p118 = scmp.eq.s32.totalorder %s14, 0
    %p119 = por %p117, %p118
    %p120 = scmp.ne.s32.totalorder %s106, %s107
    %p121 = scmp.eq.s32.totalorder %s15, 3
    %p122 = por %p120, %p121
    %p124 = scmp.ne.s32.totalorder %s107, %s123
    %p125 = scmp.eq.s32.totalorder %s15, 0
    %p126 = por %p124, %p125
    %p127 = scmp.le.s32.totalorder 1, %s9
    %p128 = scmp.lt.s32.totalorder %s9, 5
    %p129 = pnand %p127, %p128
    %p130 = pneg %p129
    // Predicated region
    $region9: #{double_conv.5} parent=5 // pred_check
      _
    $region10: #{double_conv.5} parent=5 // pred_check_branch
      %132 = sbr.rel (%p129) target = $region12
    $region11: #{double_conv.5} parent=5 // pred_region
      %s133 = ssub.s32 %s9, 1
      // Predicated region
      $region13: #{double_conv.5} parent=11 // pred_check
        %p134 = pneg %p70
      $region14: #{double_conv.5} parent=11 // pred_check_branch
        %136 = sbr.rel (%p134) target = $region16
      $region15: #{double_conv.5} parent=11 // pred_region
        _
      $region16: #{double_conv.5} parent=11 // pred_fallthru
        _
      // Predicated region
      $region17: #{double_conv.5} parent=11 // pred_check
        %p137 = pneg %p91
      $region18: #{double_conv.5} parent=11 // pred_check_branch
        %139 = sbr.rel (%p137) target = $region20
      $region19: #{double_conv.5} parent=11 // pred_region
        _
      $region20: #{double_conv.5} parent=11 // pred_fallthru
        _
    $region12: #{double_conv.5} parent=5 // pred_fallthru
      _
    %p140 = scmp.lt.s32.totalorder %s9, 4
    // Predicated region
    $region21: #{double_conv.5} parent=5 // pred_check
      %p141 = pneg %p140
    $region22: #{double_conv.5} parent=5 // pred_check_branch
      %143 = sbr.rel (%p141) target = $region24
    $region23: #{double_conv.5} parent=5 // pred_region
      // Predicated region
      $region25: #{double_conv.5} parent=23 // pred_check
        %p144 = pneg %p43
      $region26: #{double_conv.5} parent=23 // pred_check_branch
        %146 = sbr.rel (%p144) target = $region28
      $region27: #{double_conv.5} parent=23 // pred_region
        %s147 = smul.u32 8, %s17
        %p148 = scmp.lt.s32.totalorder %s16, 1
        %s149 = scalar_select %p148, %s16, 1
        %p150 = scmp.lt.s32.totalorder %s147, 15
        %s151 = scalar_select %p150, %s147, 15
        %s152 = smul.addr %s151, 2
        %s153 = smul.addr %s149, 32
        %s154 = sadd.s32 %s152, %s153
        %s155 = smul.addr %s154, 8
        %s156 = scalar_lea.vmem %s0, %s155
        %s157 = smul.u32 8, %s17
      $region28: #{double_conv.5} parent=23 // pred_fallthru
        _
    $region24: #{double_conv.5} parent=5 // pred_fallthru
      _
    %p158 = scmp.le.s32.totalorder 1, %s9
    %p159 = scmp.lt.s32.totalorder %s9, 5
    %p160 = pnand %p158, %p159
    %p161 = pneg %p160
    // Predicated region
    $region29: #{double_conv.5} parent=5 // pred_check
      _
    $region30: #{double_conv.5} parent=5 // pred_check_branch
      %163 = sbr.rel (%p160) target = $region32
    $region31: #{double_conv.5} parent=5 // pred_region
      %s164 = ssub.s32 %s9, 1
      %s165 = smul.u32 8, %s19
      %p166 = scmp.lt.s32.totalorder %s18, 1
      %s167 = scalar_select %p166, %s18, 1
      %p168 = scmp.lt.s32.totalorder %s165, 15
      %s169 = scalar_select %p168, %s165, 15
      %s170 = smul.addr %s169, 2
      %s171 = smul.addr %s167, 32
      %s172 = sadd.s32 %s170, %s171
      %s173 = smul.addr %s172, 8
      %s174 = scalar_lea.vmem %s0, %s173
      %p175 = pneg %p49
      %p176 = pneg %p46
      %p177 = pneg %p70
      %p178 = pneg %p67
      %p179 = pneg %p91
      %p180 = pneg %p88
      %p181 = pneg %p119
      %p182 = pneg %p116
      %s183 = smul.u32 8, %s19
      %p184 = scmp.lt.s32.totalorder %s18, 1
      %s185 = scalar_select %p184, %s18, 1
      %p186 = scmp.lt.s32.totalorder %s183, 15
      %s187 = scalar_select %p186, %s183, 15
      %s188 = smul.addr %s187, 2
      %s189 = smul.addr %s185, 32
      %s190 = sadd.s32 %s188, %s189
      %s191 = smul.addr %s190, 8
      %s192 = scalar_lea.vmem %s3, %s191
      %s193 = smul.u32 8, %s19
      %p194 = scmp.lt.s32.totalorder %s18, 1
      %s195 = scalar_select %p194, %s18, 1
      %p196 = scmp.lt.s32.totalorder %s193, 15
      %s197 = scalar_select %p196, %s193, 15
      %s198 = smul.addr %s197, 2
      %s199 = smul.addr %s195, 32
      %s200 = sadd.s32 %s198, %s199
      %s201 = smul.addr %s200, 8
      %s202 = scalar_lea.vmem %s0, %s201
      %s203 = smul.u32 8, %s19
      %s204 = smul.u32 8, %s19
      %p205 = scmp.lt.s32.totalorder %s18, 1
      %s206 = scalar_select %p205, %s18, 1
      %p207 = scmp.lt.s32.totalorder %s204, 15
      %s208 = scalar_select %p207, %s204, 15
      %s209 = smul.addr %s208, 2
      %s210 = smul.addr %s206, 32
      %s211 = sadd.s32 %s209, %s210
      %s212 = smul.addr %s211, 8
      %s213 = scalar_lea.vmem %s3, %s212
      %s214 = smul.u32 8, %s19
      %v215 = vld [vmem:[%s202] sm:$0xff]
      %v216 = vld [vmem:[%s202 + $0x8] sm:$0xff]
      %v217 = vld [vmem:[%s202 + $0x10] sm:$0xff]
      %v218 = vld [vmem:[%s202 + $0x18] sm:$0xff]
      %v219 = vld [vmem:[%s202 + $0x20] sm:$0xff]
      %v220 = vld [vmem:[%s202 + $0x28] sm:$0xff]
      %v221 = vld [vmem:[%s202 + $0x30] sm:$0xff]
      %v222 = vld [vmem:[%s202 + $0x38] sm:$0xff]
      %v223 = vld [vmem:[%s202 + $0x40] sm:$0xff]
      %v224 = vld [vmem:[%s202 + $0x48] sm:$0xff]
      %v225 = vld [vmem:[%s202 + $0x50] sm:$0xff]
      %v226 = vld [vmem:[%s202 + $0x58] sm:$0xff]
      %v227 = vld [vmem:[%s202 + $0x60] sm:$0xff]
      %v228 = vld [vmem:[%s202 + $0x68] sm:$0xff]
      %v229 = vld [vmem:[%s202 + $0x70] sm:$0xff]
      %v230 = vld [vmem:[%s202 + $0x78] sm:$0xff]
      %v231 = vld [vmem:[%s1] sm:$0x1]
      %v233 = vlaneseq
      %v234 = vshrl.u32 %v233, 7
      %v235 = vsub.s32 0, %v234
      %v236 = vrot.slane %v231, %v235
      %v238 = vmul.f32 %v215, %v236
      %v239 = vmul.f32 %v216, %v236
      %v240 = vmul.f32 %v217, %v236
      %v241 = vmul.f32 %v218, %v236
      %v242 = vmul.f32 %v219, %v236
      %v243 = vmul.f32 %v220, %v236
      %v244 = vmul.f32 %v221, %v236
      %v245 = vmul.f32 %v222, %v236
      %v246 = vmul.f32 %v223, %v236
      %v247 = vmul.f32 %v224, %v236
      %v248 = vmul.f32 %v225, %v236
      %v249 = vmul.f32 %v226, %v236
      %v250 = vmul.f32 %v227, %v236
      %v251 = vmul.f32 %v228, %v236
      %v252 = vmul.f32 %v229, %v236
      %v253 = vmul.f32 %v230, %v236
      %v254 = vld [vmem:[%s2] sm:$0x1]
      %v256 = vlaneseq
      %v257 = vshrl.u32 %v256, 7
      %v258 = vsub.s32 0, %v257
      %v259 = vrot.slane %v254, %v258
      %v261 = vadd.f32 %v238, %v259
      %v262 = vadd.f32 %v239, %v259
      %v263 = vadd.f32 %v240, %v259
      %v264 = vadd.f32 %v241, %v259
      %v265 = vadd.f32 %v242, %v259
      %v266 = vadd.f32 %v243, %v259
      %v267 = vadd.f32 %v244, %v259
      %v268 = vadd.f32 %v245, %v259
      %v269 = vadd.f32 %v246, %v259
      %v270 = vadd.f32 %v247, %v259
      %v271 = vadd.f32 %v248, %v259
      %v272 = vadd.f32 %v249, %v259
      %v273 = vadd.f32 %v250, %v259
      %v274 = vadd.f32 %v251, %v259
      %v275 = vadd.f32 %v252, %v259
      %v276 = vadd.f32 %v253, %v259
      %277 = vst [vmem:[%s213] sm:$0xff] %v261
      %278 = vst [vmem:[%s213 + $0x8] sm:$0xff] %v262
      %279 = vst [vmem:[%s213 + $0x10] sm:$0xff] %v263
      %280 = vst [vmem:[%s213 + $0x18] sm:$0xff] %v264
      %281 = vst [vmem:[%s213 + $0x20] sm:$0xff] %v265
      %282 = vst [vmem:[%s213 + $0x28] sm:$0xff] %v266
      %283 = vst [vmem:[%s213 + $0x30] sm:$0xff] %v267
      %284 = vst [vmem:[%s213 + $0x38] sm:$0xff] %v268
      %285 = vst [vmem:[%s213 + $0x40] sm:$0xff] %v269
      %286 = vst [vmem:[%s213 + $0x48] sm:$0xff] %v270
      %287 = vst [vmem:[%s213 + $0x50] sm:$0xff] %v271
      %288 = vst [vmem:[%s213 + $0x58] sm:$0xff] %v272
      %289 = vst [vmem:[%s213 + $0x60] sm:$0xff] %v273
      %290 = vst [vmem:[%s213 + $0x68] sm:$0xff] %v274
      %291 = vst [vmem:[%s213 + $0x70] sm:$0xff] %v275
      %292 = vst [vmem:[%s213 + $0x78] sm:$0xff] %v276
      %s293 = smul.u32 8, %s19
      %p294 = scmp.lt.s32.totalorder %s18, 1
      %s295 = scalar_select %p294, %s18, 1
      %p296 = scmp.lt.s32.totalorder %s293, 15
      %s297 = scalar_select %p296, %s293, 15
      %s298 = smul.addr %s297, 2
      %s299 = smul.addr %s295, 32
      %s300 = sadd.s32 %s298, %s299
      %s301 = smul.addr %s300, 8
      %s302 = scalar_lea.vmem %s3, %s301
      // Predicated region
      $region33: #{double_conv.5} parent=31 // pred_check
        %p303 = pneg %p116
      $region34: #{double_conv.5} parent=31 // pred_check_branch
        %305 = sbr.rel (%p303) target = $region36
      $region35: #{double_conv.5} parent=31 // pred_region
        %s306 = smul.u32 8, %s19
      $region36: #{double_conv.5} parent=31 // pred_fallthru
        _
    $region32: #{double_conv.5} parent=5 // pred_fallthru
      _
    %p307 = scmp.le.s32.totalorder 2, %s9
    // Predicated region
    $region37: #{double_conv.5} parent=5 // pred_check
      %p308 = pneg %p307
    $region38: #{double_conv.5} parent=5 // pred_check_branch
      %310 = sbr.rel (%p308) target = $region40
    $region39: #{double_conv.5} parent=5 // pred_region
      %s311 = ssub.s32 %s9, 2
      // Predicated region
      $region41: #{double_conv.5} parent=39 // pred_check
        %p312 = pneg %p122
      $region42: #{double_conv.5} parent=39 // pred_check_branch
        %314 = sbr.rel (%p312) target = $region44
      $region43: #{double_conv.5} parent=39 // pred_region
        %s315 = smul.u32 8, %s21
        %p316 = scmp.lt.s32.totalorder %s20, 1
        %s317 = scalar_select %p316, %s20, 1
        %p318 = scmp.lt.s32.totalorder %s315, 15
        %s319 = scalar_select %p318, %s315, 15
        %s320 = smul.addr %s319, 2
        %s321 = smul.addr %s317, 32
        %s322 = sadd.s32 %s320, %s321
        %s323 = smul.addr %s322, 8
        %s324 = scalar_lea.vmem %s3, %s323
      $region44: #{double_conv.5} parent=39 // pred_fallthru
        _
    $region40: #{double_conv.5} parent=5 // pred_fallthru
      _
  $region6: #{double_conv.5} parent=0 // loop_footer
    %s13 = sadd.s32 1, %s9
  $region7: #{double_conv.5} parent=0 // loop_footer_branch
    %8 = sbr.rel target = $region3
  $region8: #{double_conv.5} parent=0 // loop_exit
    _

// kernel: double_conv.4
$region0: #{double_conv.4}
  #allocation0 [shape = 'u32[]', space=smem, size = 0x4, offset = 0x4, fixed_abs, tag = 'smem constant byte address 0x4 - core index']
  #allocation1 [shape = 'u32[144,128]{1,0:T(1,128)}', space=vmem, size = 0x12000, scoped, tag = 'internal scratch']
  %s0 = inlined_call_operand.vmem [shape: f32[2,18,18,4], index: 0, kind: input, shape index: {}]
  %s1 = inlined_call_operand.vmem [shape: f32[9,4,128], index: 1, kind: input, shape index: {}]
  %s2 = inlined_call_operand.vmem [shape: f32[2,16,16,128], index: 2, kind: output, shape index: {0}]
  %s3 = inlined_call_operand.vmem [shape: f32[2,2,1,128], index: 3, kind: output, shape index: {1}]
  %s4 = inlined_call_operand.vmem [shape: f32[2,2,1,128], index: 4, kind: output, shape index: {2}]
  %5 = xla_tuple %s2, %s3, %s4
  %s6 = sld [smem:[#allocation0]]
  $region57: #{double_conv.4} parent=0
    _
  %s8 = ssub.s32 1, %s6
  %s9 = scalar_select 0, %s8, %s6
  loop: start=0, step=1, limit=6
  $region2: #{double_conv.4} parent=0 // loop_pre_header
    _
  $region3: #{double_conv.4} parent=0 // loop_header
    %s11 = sphi 0, %s15
    %p12 = scmp.ge.s32.totalorder %s11, 6
    %s18 = sphi 0, %s30
    %s19 = sphi 0, %s26
    %s20 = sphi 0, %s18
    %s21 = sphi 0, %s19
    %s22 = sphi 0, %s20
    %s23 = sphi 0, %s21
    %s33 = sphi 0, %s35
    %s36 = sphi 0, %s33
    %s37 = sphi 0, %s36
    %s53 = sphi 0, %s37
    %s57 = sphi 0, %s57
    %s59 = sphi 0, %s57
    %s60 = sphi 0, %s59
    %s74 = sphi 0, %s60
    %s82 = sphi 0, %s84
    %s85 = sphi 0, %s82
    %s86 = sphi 0, %s85
    %s102 = sphi 0, %s86
    %s110 = sphi 0, %s112
    %s113 = sphi 0, %s110
    %s114 = sphi 0, %s113
    %s130 = sphi 0, %s114
    %s138 = sphi 0, %s140
    %s141 = sphi 0, %s138
    %s142 = sphi 0, %s141
    %s158 = sphi 0, %s142
  $region4: #{double_conv.4} parent=0 // loop_header_branch
    %14 = sbr.rel (%p12) target = $region8
  $region5: #{double_conv.4} parent=0 // loop_body
    %s16 = ssub.s32 %s11, 1
    %s17 = ssub.s32 %s11, 2
    %s24 = sadd.s32 1, %s19
    %p25 = scmp.ge.s32.totalorder %s24, 2
    %s26 = scalar_select %p25, 0, %s24
    %s27 = sadd.s32 1, %s18
    %s28 = scalar_select %p25, %s27, %s18
    %p29 = scmp.ge.s32.totalorder %s28, 2
    %s30 = scalar_select %p29, 0, %s28
    %s31 = ssub.s32 %s18, %s30
    %p32 = scmp.eq.s32.totalorder %s31, 0
    %s34 = sadd.s32 %s33, 1
    %s35 = scalar_select %p32, %s33, %s34
    %p38 = pneg %p32
    %p39 = scmp.eq.s32.totalorder %s11, 3
    %p40 = por %p38, %p39
    %p41 = scmp.ne.s32.totalorder %s33, %s36
    %p42 = scmp.eq.s32.totalorder %s11, 0
    %p43 = por %p41, %p42
    %p44 = scmp.ne.s32.totalorder %s33, %s36
    %p45 = scmp.eq.s32.totalorder %s16, 3
    %p46 = por %p44, %p45
    %p47 = scmp.ne.s32.totalorder %s36, %s37
    %p48 = scmp.eq.s32.totalorder %s16, 0
    %p49 = por %p47, %p48
    %p50 = scmp.ne.s32.totalorder %s36, %s37
    %p51 = scmp.eq.s32.totalorder %s17, 3
    %p52 = por %p50, %p51
    %p54 = scmp.ne.s32.totalorder %s37, %s53
    %p55 = scmp.eq.s32.totalorder %s17, 0
    %p56 = por %p54, %p55
    %s58 = sadd.s32 %s57, 1
    %p61 = scmp.eq.s32.totalorder %s11, 3
    %p62 = scmp.ne.s32.totalorder %s57, %s59
    %p63 = scmp.eq.s32.totalorder %s11, 0
    %p64 = por %p62, %p63
    %p65 = scmp.ne.s32.totalorder %s57, %s59
    %p66 = scmp.eq.s32.totalorder %s16, 3
    %p67 = por %p65, %p66
    %p68 = scmp.ne.s32.totalorder %s59, %s60
    %p69 = scmp.eq.s32.totalorder %s16, 0
    %p70 = por %p68, %p69
    %p71 = scmp.ne.s32.totalorder %s59, %s60
    %p72 = scmp.eq.s32.totalorder %s17, 3
    %p73 = por %p71, %p72
    %p75 = scmp.ne.s32.totalorder %s60, %s74
    %p76 = scmp.eq.s32.totalorder %s17, 0
    %p77 = por %p75, %p76
    %s78 = ssub.s32 %s18, %s30
    %s79 = ssub.s32 %s19, %s26
    %s80 = sor.u32 %s78, %s79
    %p81 = scmp.eq.s32.totalorder %s80, 0
    %s83 = sadd.s32 %s82, 1
    %s84 = scalar_select %p81, %s82, %s83
    %p87 = pneg %p81
    %p88 = scmp.eq.s32.totalorder %s11, 3
    %p89 = por %p87, %p88
    %p90 = scmp.ne.s32.totalorder %s82, %s85
    %p91 = scmp.eq.s32.totalorder %s11, 0
    %p92 = por %p90, %p91
    %p93 = scmp.ne.s32.totalorder %s82, %s85
    %p94 = scmp.eq.s32.totalorder %s16, 3
    %p95 = por %p93, %p94
    %p96 = scmp.ne.s32.totalorder %s85, %s86
    %p97 = scmp.eq.s32.totalorder %s16, 0
    %p98 = por %p96, %p97
    %p99 = scmp.ne.s32.totalorder %s85, %s86
    %p100 = scmp.eq.s32.totalorder %s17, 3
    %p101 = por %p99, %p100
    %p103 = scmp.ne.s32.totalorder %s86, %s102
    %p104 = scmp.eq.s32.totalorder %s17, 0
    %p105 = por %p103, %p104
    %s106 = ssub.s32 %s18, %s30
    %s107 = ssub.s32 %s19, %s26
    %s108 = sor.u32 %s106, %s107
    %p109 = scmp.eq.s32.totalorder %s108, 0
    %s111 = sadd.s32 %s110, 1
    %s112 = scalar_select %p109, %s110, %s111
    %p115 = pneg %p109
    %p116 = scmp.eq.s32.totalorder %s11, 3
    %p117 = por %p115, %p116
    %p118 = scmp.ne.s32.totalorder %s110, %s113
    %p119 = scmp.eq.s32.totalorder %s11, 0
    %p120 = por %p118, %p119
    %p121 = scmp.ne.s32.totalorder %s110, %s113
    %p122 = scmp.eq.s32.totalorder %s16, 3
    %p123 = por %p121, %p122
    %p124 = scmp.ne.s32.totalorder %s113, %s114
    %p125 = scmp.eq.s32.totalorder %s16, 0
    %p126 = por %p124, %p125
    %p127 = scmp.ne.s32.totalorder %s113, %s114
    %p128 = scmp.eq.s32.totalorder %s17, 3
    %p129 = por %p127, %p128
    %p131 = scmp.ne.s32.totalorder %s114, %s130
    %p132 = scmp.eq.s32.totalorder %s17, 0
    %p133 = por %p131, %p132
    %s134 = ssub.s32 %s18, %s30
    %s135 = ssub.s32 %s19, %s26
    %s136 = sor.u32 %s134, %s135
    %p137 = scmp.eq.s32.totalorder %s136, 0
    %s139 = sadd.s32 %s138, 1
    %s140 = scalar_select %p137, %s138, %s139
    %p143 = pneg %p137
    %p144 = scmp.eq.s32.totalorder %s11, 3
    %p145 = por %p143, %p144
    %p146 = scmp.ne.s32.totalorder %s138, %s141
    %p147 = scmp.eq.s32.totalorder %s11, 0
    %p148 = por %p146, %p147
    %p149 = scmp.ne.s32.totalorder %s138, %s141
    %p150 = scmp.eq.s32.totalorder %s16, 3
    %p151 = por %p149, %p150
    %p152 = scmp.ne.s32.totalorder %s141, %s142
    %p153 = scmp.eq.s32.totalorder %s16, 0
    %p154 = por %p152, %p153
    %p155 = scmp.ne.s32.totalorder %s141, %s142
    %p156 = scmp.eq.s32.totalorder %s17, 3
    %p157 = por %p155, %p156
    %p159 = scmp.ne.s32.totalorder %s142, %s158
    %p160 = scmp.eq.s32.totalorder %s17, 0
    %p161 = por %p159, %p160
    %p162 = scmp.le.s32.totalorder 1, %s11
    %p163 = scmp.lt.s32.totalorder %s11, 5
    %p164 = pnand %p162, %p163
    %p165 = pneg %p164
    // Predicated region
    $region9: #{double_conv.4} parent=5 // pred_check
      _
    $region10: #{double_conv.4} parent=5 // pred_check_branch
      %167 = sbr.rel (%p164) target = $region12
    $region11: #{double_conv.4} parent=5 // pred_region
      %s168 = ssub.s32 %s11, 1
      // Predicated region
      $region13: #{double_conv.4} parent=11 // pred_check
        %p169 = pneg %p70
      $region14: #{double_conv.4} parent=11 // pred_check_branch
        %171 = sbr.rel (%p169) target = $region16
      $region15: #{double_conv.4} parent=11 // pred_region
        _
      $region16: #{double_conv.4} parent=11 // pred_fallthru
        _
    $region12: #{double_conv.4} parent=5 // pred_fallthru
      _
    %p172 = scmp.lt.s32.totalorder %s11, 4
    // Predicated region
    $region17: #{double_conv.4} parent=5 // pred_check
      %p173 = pneg %p172
    $region18: #{double_conv.4} parent=5 // pred_check_branch
      %175 = sbr.rel (%p173) target = $region20
    $region19: #{double_conv.4} parent=5 // pred_region
      // Predicated region
      $region21: #{double_conv.4} parent=19 // pred_check
        %p176 = pneg %p43
      $region22: #{double_conv.4} parent=19 // pred_check_branch
        %178 = sbr.rel (%p176) target = $region24
      $region23: #{double_conv.4} parent=19 // pred_region
        %p179 = scmp.lt.s32.totalorder %s18, 1
        %s180 = scalar_select %p179, %s18, 1
        %s181 = smul.addr %s180, 54
        %s182 = smul.addr %s181, 8
        %s183 = scalar_lea.vmem %s0, %s182
      $region24: #{double_conv.4} parent=19 // pred_fallthru
        _
    $region20: #{double_conv.4} parent=5 // pred_fallthru
      _
    %p184 = scmp.le.s32.totalorder 1, %s11
    %p185 = scmp.lt.s32.totalorder %s11, 5
    %p186 = pnand %p184, %p185
    %p187 = pneg %p186
    // Predicated region
    $region25: #{double_conv.4} parent=5 // pred_check
      _
    $region26: #{double_conv.4} parent=5 // pred_check_branch
      %189 = sbr.rel (%p186) target = $region28
    $region27: #{double_conv.4} parent=5 // pred_region
      %s190 = ssub.s32 %s11, 1
      %p191 = scmp.lt.s32.totalorder %s20, 1
      %s192 = scalar_select %p191, %s20, 1
      %s193 = smul.addr %s192, 54
      %s194 = smul.addr %s193, 8
      %s195 = scalar_lea.vmem %s0, %s194
      %p196 = pneg %p49
      %p197 = pneg %p46
      %p198 = pneg %p70
      %p199 = pneg %p67
      %p200 = pneg %p98
      %p201 = pneg %p95
      %s202 = smul.u32 8, %s21
      %p203 = scmp.lt.s32.totalorder %s20, 1
      %s204 = scalar_select %p203, %s20, 1
      %p205 = scmp.lt.s32.totalorder %s202, 15
      %s206 = scalar_select %p205, %s202, 15
      %s207 = smul.addr %s206, 2
      %s208 = smul.addr %s204, 32
      %s209 = sadd.s32 %s207, %s208
      %s210 = smul.addr %s209, 8
      %s211 = scalar_lea.vmem %s2, %s210
      %p212 = pneg %p126
      %p213 = pneg %p123
      %p214 = scmp.lt.s32.totalorder %s20, 1
      %s215 = scalar_select %p214, %s20, 1
      %p216 = scmp.lt.s32.totalorder %s21, 1
      %s217 = scalar_select %p216, %s21, 1
      %s218 = smul.addr %s215, 2
      %s219 = sadd.s32 %s217, %s218
      %s220 = scalar_lea.vmem %s3, %s219
      %p221 = pneg %p154
      %p222 = pneg %p151
      %p223 = scmp.lt.s32.totalorder %s20, 1
      %s224 = scalar_select %p223, %s20, 1
      %p225 = scmp.lt.s32.totalorder %s21, 1
      %s226 = scalar_select %p225, %s21, 1
      %s227 = smul.addr %s224, 2
      %s228 = sadd.s32 %s226, %s227
      %s229 = scalar_lea.vmem %s4, %s228
      %p230 = scmp.lt.s32.totalorder %s20, 1
      %s231 = scalar_select %p230, %s20, 1
      %s232 = smul.addr %s231, 54
      %s233 = smul.addr %s232, 8
      %s234 = scalar_lea.vmem %s0, %s233
      %s235 = smul.u32 8, %s21
      %p236 = scmp.lt.s32.totalorder %s20, 1
      %s237 = scalar_select %p236, %s20, 1
      %p238 = scmp.lt.s32.totalorder %s235, 15
      %s239 = scalar_select %p238, %s235, 15
      %s240 = smul.addr %s239, 2
      %s241 = smul.addr %s237, 32
      %s242 = sadd.s32 %s240, %s241
      %s243 = smul.addr %s242, 8
      %s244 = scalar_lea.vmem %s2, %s243
      %s245 = smul.u32 8, %s21
      %p246 = scmp.lt.s32.totalorder %s20, 1
      %s247 = scalar_select %p246, %s20, 1
      %p248 = scmp.lt.s32.totalorder %s21, 1
      %s249 = scalar_select %p248, %s21, 1
      %s250 = smul.addr %s247, 2
      %s251 = sadd.s32 %s249, %s250
      %s252 = scalar_lea.vmem %s3, %s251
      %p253 = scmp.lt.s32.totalorder %s20, 1
      %s254 = scalar_select %p253, %s20, 1
      %p255 = scmp.lt.s32.totalorder %s21, 1
      %s256 = scalar_select %p255, %s21, 1
      %s257 = smul.addr %s254, 2
      %s258 = sadd.s32 %s256, %s257
      %s259 = scalar_lea.vmem %s4, %s258
      %s260 = smul.u32 %s21, 8
      %s261 = smul.u32 %s260, 24
      %s262 = scalar_lea.vmem %s234, %s261
      %v263 = vld [vmem:[%s262] sm:$0xff]
      %v264 = vld [vmem:[%s262 + $0x8] sm:$0xff]
      %v265 = vld [vmem:[%s262 + $0x10] sm:$0x3]
      %v266 = vld [vmem:[%s262 + $0x18] sm:$0xff]
      %v267 = vld [vmem:[%s262 + $0x20] sm:$0xff]
      %v268 = vld [vmem:[%s262 + $0x28] sm:$0x3]
      %v269 = vld [vmem:[%s262 + $0x30] sm:$0xff]
      %v270 = vld [vmem:[%s262 + $0x38] sm:$0xff]
      %v271 = vld [vmem:[%s262 + $0x40] sm:$0x3]
      %v272 = vld [vmem:[%s262 + $0x48] sm:$0xff]
      %v273 = vld [vmem:[%s262 + $0x50] sm:$0xff]
      %v274 = vld [vmem:[%s262 + $0x58] sm:$0x3]
      %v275 = vld [vmem:[%s262 + $0x60] sm:$0xff]
      %v276 = vld [vmem:[%s262 + $0x68] sm:$0xff]
      %v277 = vld [vmem:[%s262 + $0x70] sm:$0x3]
      %v278 = vld [vmem:[%s262 + $0x78] sm:$0xff]
      %v279 = vld [vmem:[%s262 + $0x80] sm:$0xff]
      %v280 = vld [vmem:[%s262 + $0x88] sm:$0x3]
      %v281 = vld [vmem:[%s262 + $0x90] sm:$0xff]
      %v282 = vld [vmem:[%s262 + $0x98] sm:$0xff]
      %v283 = vld [vmem:[%s262 + $0xa0] sm:$0x3]
      %v284 = vld [vmem:[%s262 + $0xa8] sm:$0xff]
      %v285 = vld [vmem:[%s262 + $0xb0] sm:$0xff]
      %v286 = vld [vmem:[%s262 + $0xb8] sm:$0x3]
      %v287 = vld [vmem:[%s262 + $0xc0] sm:$0xff]
      %v288 = vld [vmem:[%s262 + $0xc8] sm:$0xff]
      %v289 = vld [vmem:[%s262 + $0xd0] sm:$0x3]
      %v290 = vld [vmem:[%s262 + $0xd8] sm:$0xff]
      %v291 = vld [vmem:[%s262 + $0xe0] sm:$0xff]
      %v292 = vld [vmem:[%s262 + $0xe8] sm:$0x3]
      %v293 = vld [vmem:[%s1] sm:$0xf]
      %vm318 = vcmask 1046528
      %v319 = vrot.slane %v263, 1
      %v320 = vrot.slane %v264, 1
      %v321 = vsel %vm318, %v319, %v320
      %v322 = vrot.slane %v265, 1
      %v323 = vsel %vm318, %v320, %v322
      %v324 = vrot.slane %v266, 1
      %v325 = vrot.slane %v267, 1
      %v326 = vsel %vm318, %v324, %v325
      %v327 = vrot.slane %v268, 1
      %v328 = vsel %vm318, %v325, %v327
      %v329 = vrot.slane %v269, 1
      %v330 = vrot.slane %v270, 1
      %v331 = vsel %vm318, %v329, %v330
      %v332 = vrot.slane %v271, 1
      %v333 = vsel %vm318, %v330, %v332
      %v334 = vrot.slane %v272, 1
      %v335 = vrot.slane %v273, 1
      %v336 = vsel %vm318, %v334, %v335
      %v337 = vrot.slane %v274, 1
      %v338 = vsel %vm318, %v335, %v337
      %v339 = vrot.slane %v275, 1
      %v340 = vrot.slane %v276, 1
      %v341 = vsel %vm318, %v339, %v340
      %v342 = vrot.slane %v277, 1
      %v343 = vsel %vm318, %v340, %v342
      %v344 = vrot.slane %v278, 1
      %v345 = vrot.slane %v279, 1
      %v346 = vsel %vm318, %v344, %v345
      %v347 = vrot.slane %v280, 1
      %v348 = vsel %vm318, %v345, %v347
      %v349 = vrot.slane %v281, 1
      %v350 = vrot.slane %v282, 1
      %v351 = vsel %vm318, %v349, %v350
      %v352 = vrot.slane %v283, 1
      %v353 = vsel %vm318, %v350, %v352
      %v354 = vrot.slane %v284, 1
      %v355 = vrot.slane %v285, 1
      %v356 = vsel %vm318, %v354, %v355
      %v357 = vrot.slane %v286, 1
      %v358 = vsel %vm318, %v355, %v357
      %s359 = scalar_lea.vmem %s1, 4
      %v360 = vld [vmem:[%s359] sm:$0xf]
      %vm361 = vcmask 31744
      %v362 = vsel %vm361, %v321, 0
      %v364 = vsel %vm361, %v323, 0
      %v366 = vsel %vm361, %v326, 0
      %v368 = vsel %vm361, %v328, 0
      %v370 = vsel %vm361, %v331, 0
      %v372 = vsel %vm361, %v333, 0
      %v374 = vsel %vm361, %v336, 0
      %v376 = vsel %vm361, %v338, 0
      %v378 = vsel %vm361, %v341, 0
      %v380 = vsel %vm361, %v343, 0
      %v382 = vsel %vm361, %v346, 0
      %v384 = vsel %vm361, %v348, 0
      %v386 = vsel %vm361, %v351, 0
      %v388 = vsel %vm361, %v353, 0
      %v390 = vsel %vm361, %v356, 0
      %v392 = vsel %vm361, %v358, 0
      %vm394 = vcmask 1043456
      %v396 = vsel %vm394, %v360, 0
      %398 = vmatprep.subr.mxu0 0.0
      %399 = vmatpush1.msra.mxu0 %v396
      %400 = vmatprep.subr.mxu0 0.0
      %401 = vmatpush1.msra.mxu0 0.0
      %402 = vmatprep.subr.mxu0 0.0
      %403 = vmatpush1.msra.mxu0 0.0
      %404 = vmatprep.subr.mxu0 0.0
      %405 = vmatpush1.msra.mxu0 0.0
      %406 = vmatprep.subr.mxu0 0.0
      %407 = vmatpush1.msra.mxu0 0.0
      %408 = vmatprep.subr.mxu0 0.0
      %409 = vmatpush1.msra.mxu0 0.0
      %410 = vmatprep.subr.mxu0 0.0
      %411 = vmatpush1.msra.mxu0 0.0
      %412 = vmatprep.subr.mxu0 0.0
      %413 = vmatpush1.msra.mxu0 0.0
      %414 = vmatprep.subr.mxu0 0.0
      %415 = vmatpush1.msra.mxu0 0.0
      %416 = vmatprep.subr.mxu0 0.0
      %417 = vmatpush1.msra.mxu0 0.0
      %418 = vmatprep.subr.mxu0 0.0
      %419 = vmatpush1.msra.mxu0 0.0
      %420 = vmatprep.subr.mxu0 0.0
      %421 = vmatpush1.msra.mxu0 0.0
      %422 = vmatprep.subr.mxu0 0.0
      %423 = vmatpush1.msra.mxu0 0.0
      %424 = vmatprep.subr.mxu0 0.0
      %425 = vmatpush1.msra.mxu0 0.0
      %426 = vmatprep.subr.mxu0 0.0
      %427 = vmatpush1.msra.mxu0 0.0
      %428 = vmatprep.subr.mxu0 0.0
      %429 = vmatpush1.msra.mxu0 0.0
      %430 = vmatprep.subr.mxu0 0.0
      %431 = vmatpush1.msra.mxu0 0.0
      %432 = vmatprep.subr.mxu0 0.0
      %433 = vmatpush1.msra.mxu0 0.0
      %434 = vmatprep.subr.mxu0 0.0
      %435 = vmatpush1.msra.mxu0 0.0
      %436 = vmatprep.subr.mxu0 0.0
      %437 = vmatpush1.msra.mxu0 0.0
      %438 = vmatprep.subr.mxu0 0.0
      %439 = vmatpush1.msra.mxu0 0.0
      %440 = vmatprep.subr.mxu0 0.0
      %441 = vmatpush1.msra.mxu0 0.0
      %442 = vmatprep.subr.mxu0 0.0
      %443 = vmatpush1.msra.mxu0 0.0
      %444 = vmatprep.subr.mxu0 0.0
      %445 = vmatpush1.msra.mxu0 0.0
      %446 = vmatprep.subr.mxu0 0.0
      %447 = vmatpush1.msra.mxu0 0.0
      %448 = vmatprep.subr.mxu0 0.0
      %449 = vmatpush1.msra.mxu0 0.0
      %450 = vmatprep.subr.mxu0 0.0
      %451 = vmatpush1.msra.mxu0 0.0
      %452 = vmatprep.subr.mxu0 0.0
      %453 = vmatpush1.msra.mxu0 0.0
      %454 = vmatprep.subr.mxu0 0.0
      %455 = vmatpush1.msra.mxu0 0.0
      %456 = vmatprep.subr.mxu0 0.0
      %457 = vmatpush1.msra.mxu0 0.0
      %458 = vmatprep.subr.mxu0 0.0
      %459 = vmatpush1.msra.mxu0 0.0
      %460 = vmatprep.subr.mxu0 0.0
      %461 = vmatpush1.msra.mxu0 0.0
      %462 = vmatprep.mubr.f32.mxu0 0.0
      %463 = vmatmul.mubr.f32.gmra.mrb[0].mxu0 %v362
      %v464 = vpop.f32.mrb[0].mxu0
      %v465 = vadd.f32 0.0, %v464
      %v466 = vpop.f32.mrb[0].mxu0
      %467 = vmatprep.mubr.f32.mxu0 0.0
      %468 = vmatmul.mubr.f32.gmra.mrb[0].mxu0 %v364
      %v469 = vpop.f32.mrb[0].mxu0
      %v470 = vadd.f32 0.0, %v469
      %v471 = vpop.f32.mrb[0].mxu0
      %472 = vmatprep.mubr.f32.mxu0 0.0
      %473 = vmatmul.mubr.f32.gmra.mrb[0].mxu0 %v366
      %v474 = vpop.f32.mrb[0].mxu0
      %v475 = vadd.f32 0.0, %v474
      %v476 = vpop.f32.mrb[0].mxu0
      %477 = vmatprep.mubr.f32.mxu0 0.0
      %478 = vmatmul.mubr.f32.gmra.mrb[0].mxu0 %v368
      %v479 = vpop.f32.mrb[0].mxu0
      %v480 = vadd.f32 0.0, %v479
      %v481 = vpop.f32.mrb[0].mxu0
      %482 = vmatprep.mubr.f32.mxu0 0.0
      %483 = vmatmul.mubr.f32.gmra.mrb[0].mxu0 %v370
      %v484 = vpop.f32.mrb[0].mxu0
      %v485 = vadd.f32 0.0, %v484
      %v486 = vpop.f32.mrb[0].mxu0
      %487 = vmatprep.mubr.f32.mxu0 0.0
      %488 = vmatmul.mubr.f32.gmra.mrb[0].mxu0 %v372
      %v489 = vpop.f32.mrb[0].mxu0
      %v490 = vadd.f32 0.0, %v489
      %v491 = vpop.f32.mrb[0].mxu0
      %492 = vmatprep.mubr.f32.mxu0 0.0
      %493 = vmatmul.mubr.f32.gmra.mrb[0].mxu0 %v374
      %v494 = vpop.f32.mrb[0].mxu0
      %v495 = vadd.f32 0.0, %v494
      %v496 = vpop.f32.mrb[0].mxu0
      %497 = vmatprep.mubr.f32.mxu0 0.0
      %498 = vmatmul.mubr.f32.gmra.mrb[0].mxu0 %v376
      %v499 = vpop.f32.mrb[0].mxu0
      %v500 = vadd.f32 0.0, %v499
      %v501 = vpop.f32.mrb[0].mxu0
      %502 = vmatprep.mubr.f32.mxu0 0.0
      %503 = vmatmul.mubr.f32.gmra.mrb[0].mxu0 %v378
      %v504 = vpop.f32.mrb[0].mxu0
      %v505 = vadd.f32 0.0, %v504
      %v506 = vpop.f32.mrb[0].mxu0
      %507 = vmatprep.mubr.f32.mxu0 0.0
      %508 = vmatmul.mubr.f32.gmra.mrb[0].mxu0 %v380
      %v509 = vpop.f32.mrb[0].mxu0
      %v510 = vadd.f32 0.0, %v509
      %v511 = vpop.f32.mrb[0].mxu0
      %512 = vmatprep.mubr.f32.mxu0 0.0
      %513 = vmatmul.mubr.f32.gmra.mrb[0].mxu0 %v382
      %v514 = vpop.f32.mrb[0].mxu0
      %v515 = vadd.f32 0.0, %v514
      %v516 = vpop.f32.mrb[0].mxu0
      %517 = vmatprep.mubr.f32.mxu0 0.0
      %518 = vmatmul.mubr.f32.gmra.mrb[0].mxu0 %v384
      %v519 = vpop.f32.mrb[0].mxu0
      %v520 = vadd.f32 0.0, %v519
      %v521 = vpop.f32.mrb[0].mxu0
      %522 = vmatprep.mubr.f32.mxu0 0.0
      %523 = vmatmul.mubr.f32.gmra.mrb[0].mxu0 %v386
      %v524 = vpop.f32.mrb[0].mxu0
      %v525 = vadd.f32 0.0, %v524
      %v526 = vpop.f32.mrb[0].mxu0
      %527 = vmatprep.mubr.f32.mxu0 0.0
      %528 = vmatmul.mubr.f32.gmra.mrb[0].mxu0 %v388
      %v529 = vpop.f32.mrb[0].mxu0
      %v530 = vadd.f32 0.0, %v529
      %v531 = vpop.f32.mrb[0].mxu0
      %532 = vmatprep.mubr.f32.mxu0 0.0
      %533 = vmatmul.mubr.f32.gmra.mrb[0].mxu0 %v390
      %v534 = vpop.f32.mrb[0].mxu0
      %v535 = vadd.f32 0.0, %v534
      %v536 = vpop.f32.mrb[0].mxu0
      %537 = vmatprep.mubr.f32.mxu0 0.0
      %538 = vmatmul.mubr.f32.gmra.mrb[0].mxu0 %v392
      %v539 = vpop.f32.mrb[0].mxu0
      %v540 = vadd.f32 0.0, %v539
      %v541 = vpop.f32.mrb[0].mxu0
      %542 = vdwg.mxu0
      %v543 = vsel %vm361, %v263, 0
      %v545 = vsel %vm361, %v264, 0
      %v547 = vsel %vm361, %v266, 0
      %v549 = vsel %vm361, %v267, 0
      %v551 = vsel %vm361, %v269, 0
      %v553 = vsel %vm361, %v270, 0
      %v555 = vsel %vm361, %v272, 0
      %v557 = vsel %vm361, %v273, 0
      %v559 = vsel %vm361, %v275, 0
      %v561 = vsel %vm361, %v276, 0
      %v563 = vsel %vm361, %v278, 0
      %v565 = vsel %vm361, %v279, 0
      %v567 = vsel %vm361, %v281, 0
      %v569 = vsel %vm361, %v282, 0
      %v571 = vsel %vm361, %v284, 0
      %v573 = vsel %vm361, %v285, 0
      %v576 = vsel %vm394, %v293, 0
      %578 = vmatprep.subr.mxu0 0.0
      %579 = vmatpush1.msra.mxu0 %v576
      %580 = vmatprep.subr.mxu0 0.0
      %581 = vmatpush1.msra.mxu0 0.0
      %582 = vmatprep.subr.mxu0 0.0
      %583 = vmatpush1.msra.mxu0 0.0
      %584 = vmatprep.subr.mxu0 0.0
      %585 = vmatpush1.msra.mxu0 0.0
      %586 = vmatprep.subr.mxu0 0.0
      %587 = vmatpush1.msra.mxu0 0.0
      %588 = vmatprep.subr.mxu0 0.0
      %589 = vmatpush1.msra.mxu0 0.0
      %590 = vmatprep.subr.mxu0 0.0
      %591 = vmatpush1.msra.mxu0 0.0
      %592 = vmatprep.subr.mxu0 0.0
      %593 = vmatpush1.msra.mxu0 0.0
      %594 = vmatprep.subr.mxu0 0.0
      %595 = vmatpush1.msra.mxu0 0.0
      %596 = vmatprep.subr.mxu0 0.0
      %597 = vmatpush1.msra.mxu0 0.0
      %598 = vmatprep.subr.mxu0 0.0
      %599 = vmatpush1.msra.mxu0 0.0
      %600 = vmatprep.subr.mxu0 0.0
      %601 = vmatpush1.msra.mxu0 0.0
      %602 = vmatprep.subr.mxu0 0.0
      %603 = vmatpush1.msra.mxu0 0.0
      %604 = vmatprep.subr.mxu0 0.0
      %605 = vmatpush1.msra.mxu0 0.0
      %606 = vmatprep.subr.mxu0 0.0
      %607 = vmatpush1.msra.mxu0 0.0
      %608 = vmatprep.subr.mxu0 0.0
      %609 = vmatpush1.msra.mxu0 0.0
      %610 = vmatprep.subr.mxu0 0.0
      %611 = vmatpush1.msra.mxu0 0.0
      %612 = vmatprep.subr.mxu0 0.0
      %613 = vmatpush1.msra.mxu0 0.0
      %614 = vmatprep.subr.mxu0 0.0
      %615 = vmatpush1.msra.mxu0 0.0
      %616 = vmatprep.subr.mxu0 0.0
      %617 = vmatpush1.msra.mxu0 0.0
      %618 = vmatprep.subr.mxu0 0.0
      %619 = vmatpush1.msra.mxu0 0.0
      %620 = vmatprep.subr.mxu0 0.0
      %621 = vmatpush1.msra.mxu0 0.0
      %622 = vmatprep.subr.mxu0 0.0
      %623 = vmatpush1.msra.mxu0 0.0
      %624 = vmatprep.subr.mxu0 0.0
      %625 = vmatpush1.msra.mxu0 0.0
      %626 = vmatprep.subr.mxu0 0.0
      %627 = vmatpush1.msra.mxu0 0.0
      %628 = vmatprep.subr.mxu0 0.0
      %629 = vmatpush1.msra.mxu0 0.0
      %630 = vmatprep.subr.mxu0 0.0
      %631 = vmatpush1.msra.mxu0 0.0
      %632 = vmatprep.subr.mxu0 0.0
      %633 = vmatpush1.msra.mxu0 0.0
      %634 = vmatprep.subr.mxu0 0.0
      %635 = vmatpush1.msra.mxu0 0.0
      %636 = vmatprep.subr.mxu0 0.0
      %637 = vmatpush1.msra.mxu0 0.0
      %638 = vmatprep.subr.mxu0 0.0
      %639 = vmatpush1.msra.mxu0 0.0
      %640 = vmatprep.subr.mxu0 0.0
      %641 = vmatpush1.msra.mxu0 0.0
      %642 = vmatprep.mubr.f32.mxu0 0.0
      %643 = vmatmul.mubr.f32.gmra.mrb[0].mxu0 %v543
      %v644 = vpop.f32.mrb[0].mxu0
      %v645 = vadd.f32 %v465, %v644
      %v646 = vpop.f32.mrb[0].mxu0
      %647 = vmatprep.mubr.f32.mxu0 0.0
      %648 = vmatmul.mubr.f32.gmra.mrb[0].mxu0 %v545
      %v649 = vpop.f32.mrb[0].mxu0
      %v650 = vadd.f32 %v470, %v649
      %v651 = vpop.f32.mrb[0].mxu0
      %652 = vmatprep.mubr.f32.mxu0 0.0
      %653 = vmatmul.mubr.f32.gmra.mrb[0].mxu0 %v547
      %v654 = vpop.f32.mrb[0].mxu0
      %v655 = vadd.f32 %v475, %v654
      %v656 = vpop.f32.mrb[0].mxu0
      %657 = vmatprep.mubr.f32.mxu0 0.0
      %658 = vmatmul.mubr.f32.gmra.mrb[0].mxu0 %v549
      %v659 = vpop.f32.mrb[0].mxu0
      %v660 = vadd.f32 %v480, %v659
      %v661 = vpop.f32.mrb[0].mxu0
      %662 = vmatprep.mubr.f32.mxu0 0.0
      %663 = vmatmul.mubr.f32.gmra.mrb[0].mxu0 %v551
      %v664 = vpop.f32.mrb[0].mxu0
      %v665 = vadd.f32 %v485, %v664
      %v666 = vpop.f32.mrb[0].mxu0
      %667 = vmatprep.mubr.f32.mxu0 0.0
      %668 = vmatmul.mubr.f32.gmra.mrb[0].mxu0 %v553
      %v669 = vpop.f32.mrb[0].mxu0
      %v670 = vadd.f32 %v490, %v669
      %v671 = vpop.f32.mrb[0].mxu0
      %672 = vmatprep.mubr.f32.mxu0 0.0
      %673 = vmatmul.mubr.f32.gmra.mrb[0].mxu0 %v555
      %v674 = vpop.f32.mrb[0].mxu0
      %v675 = vadd.f32 %v495, %v674
      %v676 = vpop.f32.mrb[0].mxu0
      %677 = vmatprep.mubr.f32.mxu0 0.0
      %678 = vmatmul.mubr.f32.gmra.mrb[0].mxu0 %v557
      %v679 = vpop.f32.mrb[0].mxu0
      %v680 = vadd.f32 %v500, %v679
      %v681 = vpop.f32.mrb[0].mxu0
      %682 = vmatprep.mubr.f32.mxu0 0.0
      %683 = vmatmul.mubr.f32.gmra.mrb[0].mxu0 %v559
      %v684 = vpop.f32.mrb[0].mxu0
      %v685 = vadd.f32 %v505, %v684
      %v686 = vpop.f32.mrb[0].mxu0
      %687 = vmatprep.mubr.f32.mxu0 0.0
      %688 = vmatmul.mubr.f32.gmra.mrb[0].mxu0 %v561
      %v689 = vpop.f32.mrb[0].mxu0
      %v690 = vadd.f32 %v510, %v689
      %v691 = vpop.f32.mrb[0].mxu0
      %692 = vmatprep.mubr.f32.mxu0 0.0
      %693 = vmatmul.mubr.f32.gmra.mrb[0].mxu0 %v563
      %v694 = vpop.f32.mrb[0].mxu0
      %v695 = vadd.f32 %v515, %v694
      %v696 = vpop.f32.mrb[0].mxu0
      %697 = vmatprep.mubr.f32.mxu0 0.0
      %698 = vmatmul.mubr.f32.gmra.mrb[0].mxu0 %v565
      %v699 = vpop.f32.mrb[0].mxu0
      %v700 = vadd.f32 %v520, %v699
      %v701 = vpop.f32.mrb[0].mxu0
      %702 = vmatprep.mubr.f32.mxu0 0.0
      %703 = vmatmul.mubr.f32.gmra.mrb[0].mxu0 %v567
      %v704 = vpop.f32.mrb[0].mxu0
      %v705 = vadd.f32 %v525, %v704
      %v706 = vpop.f32.mrb[0].mxu0
      %707 = vmatprep.mubr.f32.mxu0 0.0
      %708 = vmatmul.mubr.f32.gmra.mrb[0].mxu0 %v569
      %v709 = vpop.f32.mrb[0].mxu0
      %v710 = vadd.f32 %v530, %v709
      %v711 = vpop.f32.mrb[0].mxu0
      %712 = vmatprep.mubr.f32.mxu0 0.0
      %713 = vmatmul.mubr.f32.gmra.mrb[0].mxu0 %v571
      %v714 = vpop.f32.mrb[0].mxu0
      %v715 = vadd.f32 %v535, %v714
      %v716 = vpop.f32.mrb[0].mxu0
      %717 = vmatprep.mubr.f32.mxu0 0.0
      %718 = vmatmul.mubr.f32.gmra.mrb[0].mxu0 %v573
      %v719 = vpop.f32.mrb[0].mxu0
      %v720 = vadd.f32 %v540, %v719
      %v721 = vpop.f32.mrb[0].mxu0
      %722 = vdwg.mxu0
      %vm723 = vcmask 1045504
      %v724 = vrot.slane %v263, 2
      %v725 = vrot.slane %v264, 2
      %v726 = vsel %vm723, %v724, %v725
      %v727 = vrot.slane %v265, 2
      %v728 = vsel %vm723, %v725, %v727
      %v729 = vrot.slane %v266, 2
      %v730 = vrot.slane %v267, 2
      %v731 = vsel %vm723, %v729, %v730
      %v732 = vrot.slane %v268, 2
      %v733 = vsel %vm723, %v730, %v732
      %v734 = vrot.slane %v269, 2
      %v735 = vrot.slane %v270, 2
      %v736 = vsel %vm723, %v734, %v735
      %v737 = vrot.slane %v271, 2
      %v738 = vsel %vm723, %v735, %v737
      %v739 = vrot.slane %v272, 2
      %v740 = vrot.slane %v273, 2
      %v741 = vsel %vm723, %v739, %v740
      %v742 = vrot.slane %v274, 2
      %v743 = vsel %vm723, %v740, %v742
      %v744 = vrot.slane %v275, 2
      %v745 = vrot.slane %v276, 2
      %v746 = vsel %vm723, %v744, %v745
      %v747 = vrot.slane %v277, 2
      %v748 = vsel %vm723, %v745, %v747
      %v749 = vrot.slane %v278, 2
      %v750 = vrot.slane %v279, 2
      %v751 = vsel %vm723, %v749, %v750
      %v752 = vrot.slane %v280, 2
      %v753 = vsel %vm723, %v750, %v752
      %v754 = vrot.slane %v281, 2
      %v755 = vrot.slane %v282, 2
      %v756 = vsel %vm723, %v754, %v755
      %v757 = vrot.slane %v283, 2
      %v758 = vsel %vm723, %v755, %v757
      %v759 = vrot.slane %v284, 2
      %v760 = vrot.slane %v285, 2
      %v761 = vsel %vm723, %v759, %v760
      %v762 = vrot.slane %v286, 2
      %v763 = vsel %vm723, %v760, %v762
      %s764 = scalar_lea.vmem %s1, 8
      %v765 = vld [vmem:[%s764] sm:$0xf]
      %v766 = vsel %vm361, %v726, 0
      %v768 = vsel %vm361, %v728, 0
      %v770 = vsel %vm361, %v731, 0
      %v772 = vsel %vm361, %v733, 0
      %v774 = vsel %vm361, %v736, 0
      %v776 = vsel %vm361, %v738, 0
      %v778 = vsel %vm361, %v741, 0
      %v780 = vsel %vm361, %v743, 0
      %v782 = vsel %vm361, %v746, 0
      %v784 = vsel %vm361, %v748, 0
      %v786 = vsel %vm361, %v751, 0
      %v788 = vsel %vm361, %v753, 0
      %v790 = vsel %vm361, %v756, 0
      %v792 = vsel %vm361, %v758, 0
      %v794 = vsel %vm361, %v761, 0
      %v796 = vsel %vm361, %v763, 0
      %v799 = vsel %vm394, %v765, 0
      %801 = vmatprep.subr.mxu0 0.0
      %802 = vmatpush1.msra.mxu0 %v799
      %803 = vmatprep.subr.mxu0 0.0
      %804 = vmatpush1.msra.mxu0 0.0
      %805 = vmatprep.subr.mxu0 0.0
      %806 = vmatpush1.msra.mxu0 0.0
      %807 = vmatprep.subr.mxu0 0.0
      %808 = vmatpush1.msra.mxu0 0.0
      %809 = vmatprep.subr.mxu0 0.0
      %810 = vmatpush1.msra.mxu0 0.0
      %811 = vmatprep.subr.mxu0 0.0
      %812 = vmatpush1.msra.mxu0 0.0
      %813 = vmatprep.subr.mxu0 0.0
      %814 = vmatpush1.msra.mxu0 0.0
      %815 = vmatprep.subr.mxu0 0.0
      %816 = vmatpush1.msra.mxu0 0.0
      %817 = vmatprep.subr.mxu0 0.0
      %818 = vmatpush1.msra.mxu0 0.0
      %819 = vmatprep.subr.mxu0 0.0
      %820 = vmatpush1.msra.mxu0 0.0
      %821 = vmatprep.subr.mxu0 0.0
      %822 = vmatpush1.msra.mxu0 0.0
      %823 = vmatprep.subr.mxu0 0.0
      %824 = vmatpush1.msra.mxu0 0.0
      %825 = vmatprep.subr.mxu0 0.0
      %826 = vmatpush1.msra.mxu0 0.0
      %827 = vmatprep.subr.mxu0 0.0
      %828 = vmatpush1.msra.mxu0 0.0
      %829 = vmatprep.subr.mxu0 0.0
      %830 = vmatpush1.msra.mxu0 0.0
      %831 = vmatprep.subr.mxu0 0.0
      %832 = vmatpush1.msra.mxu0 0.0
      %833 = vmatprep.subr.mxu0 0.0
      %834 = vmatpush1.msra.mxu0 0.0
      %835 = vmatprep.subr.mxu0 0.0
      %836 = vmatpush1.msra.mxu0 0.0
      %837 = vmatprep.subr.mxu0 0.0
      %838 = vmatpush1.msra.mxu0 0.0
      %839 = vmatprep.subr.mxu0 0.0
      %840 = vmatpush1.msra.mxu0 0.0
      %841 = vmatprep.subr.mxu0 0.0
      %842 = vmatpush1.msra.mxu0 0.0
      %843 = vmatprep.subr.mxu0 0.0
      %844 = vmatpush1.msra.mxu0 0.0
      %845 = vmatprep.subr.mxu0 0.0
      %846 = vmatpush1.msra.mxu0 0.0
      %847 = vmatprep.subr.mxu0 0.0
      %848 = vmatpush1.msra.mxu0 0.0
      %849 = vmatprep.subr.mxu0 0.0
      %850 = vmatpush1.msra.mxu0 0.0
      %851 = vmatprep.subr.mxu0 0.0
      %852 = vmatpush1.msra.mxu0 0.0
      %853 = vmatprep.subr.mxu0 0.0
      %854 = vmatpush1.msra.mxu0 0.0
      %855 = vmatprep.subr.mxu0 0.0
      %856 = vmatpush1.msra.mxu0 0.0
      %857 = vmatprep.subr.mxu0 0.0
      %858 = vmatpush1.msra.mxu0 0.0
      %859 = vmatprep.subr.mxu0 0.0
      %860 = vmatpush1.msra.mxu0 0.0
      %861 = vmatprep.subr.mxu0 0.0
      %862 = vmatpush1.msra.mxu0 0.0
      %863 = vmatprep.subr.mxu0 0.0
      %864 = vmatpush1.msra.mxu0 0.0
      %865 = vmatprep.mubr.f32.mxu0 0.0
      %866 = vmatmul.mubr.f32.gmra.mrb[0].mxu0 %v766
      %v867 = vpop.f32.mrb[0].mxu0
      %v868 = vadd.f32 0.0, %v867
      %v869 = vpop.f32.mrb[0].mxu0
      %870 = vmatprep.mubr.f32.mxu0 0.0
      %871 = vmatmul.mubr.f32.gmra.mrb[0].mxu0 %v768
      %v872 = vpop.f32.mrb[0].mxu0
      %v873 = vadd.f32 0.0, %v872
      %v874 = vpop.f32.mrb[0].mxu0
      %875 = vmatprep.mubr.f32.mxu0 0.0
      %876 = vmatmul.mubr.f32.gmra.mrb[0].mxu0 %v770
      %v877 = vpop.f32.mrb[0].mxu0
      %v878 = vadd.f32 0.0, %v877
      %v879 = vpop.f32.mrb[0].mxu0
      %880 = vmatprep.mubr.f32.mxu0 0.0
      %881 = vmatmul.mubr.f32.gmra.mrb[0].mxu0 %v772
      %v882 = vpop.f32.mrb[0].mxu0
      %v883 = vadd.f32 0.0, %v882
      %v884 = vpop.f32.mrb[0].mxu0
      %885 = vmatprep.mubr.f32.mxu0 0.0
      %886 = vmatmul.mubr.f32.gmra.mrb[0].mxu0 %v774
      %v887 = vpop.f32.mrb[0].mxu0
      %v888 = vadd.f32 0.0, %v887
      %v889 = vpop.f32.mrb[0].mxu0
      %890 = vmatprep.mubr.f32.mxu0 0.0
      %891 = vmatmul.mubr.f32.gmra.mrb[0].mxu0 %v776
      %v892 = vpop.f32.mrb[0].mxu0
      %v893 = vadd.f32 0.0, %v892
      %v894 = vpop.f32.mrb[0].mxu0
      %895 = vmatprep.mubr.f32.mxu0 0.0
      %896 = vmatmul.mubr.f32.gmra.mrb[0].mxu0 %v778
      %v897 = vpop.f32.mrb[0].mxu0
      %v898 = vadd.f32 0.0, %v897
      %v899 = vpop.f32.mrb[0].mxu0
      %900 = vmatprep.mubr.f32.mxu0 0.0
      %901 = vmatmul.mubr.f32.gmra.mrb[0].mxu0 %v780
      %v902 = vpop.f32.mrb[0].mxu0
      %v903 = vadd.f32 0.0, %v902
      %v904 = vpop.f32.mrb[0].mxu0
      %905 = vmatprep.mubr.f32.mxu0 0.0
      %906 = vmatmul.mubr.f32.gmra.mrb[0].mxu0 %v782
      %v907 = vpop.f32.mrb[0].mxu0
      %v908 = vadd.f32 0.0, %v907
      %v909 = vpop.f32.mrb[0].mxu0
      %910 = vmatprep.mubr.f32.mxu0 0.0
      %911 = vmatmul.mubr.f32.gmra.mrb[0].mxu0 %v784
      %v912 = vpop.f32.mrb[0].mxu0
      %v913 = vadd.f32 0.0, %v912
      %v914 = vpop.f32.mrb[0].mxu0
      %915 = vmatprep.mubr.f32.mxu0 0.0
      %916 = vmatmul.mubr.f32.gmra.mrb[0].mxu0 %v786
      %v917 = vpop.f32.mrb[0].mxu0
      %v918 = vadd.f32 0.0, %v917
      %v919 = vpop.f32.mrb[0].mxu0
      %920 = vmatprep.mubr.f32.mxu0 0.0
      %921 = vmatmul.mubr.f32.gmra.mrb[0].mxu0 %v788
      %v922 = vpop.f32.mrb[0].mxu0
      %v923 = vadd.f32 0.0, %v922
      %v924 = vpop.f32.mrb[0].mxu0
      %925 = vmatprep.mubr.f32.mxu0 0.0
      %926 = vmatmul.mubr.f32.gmra.mrb[0].mxu0 %v790
      %v927 = vpop.f32.mrb[0].mxu0
      %v928 = vadd.f32 0.0, %v927
      %v929 = vpop.f32.mrb[0].mxu0
      %930 = vmatprep.mubr.f32.mxu0 0.0
      %931 = vmatmul.mubr.f32.gmra.mrb[0].mxu0 %v792
      %v932 = vpop.f32.mrb[0].mxu0
      %v933 = vadd.f32 0.0, %v932
      %v934 = vpop.f32.mrb[0].mxu0
      %935 = vmatprep.mubr.f32.mxu0 0.0
      %936 = vmatmul.mubr.f32.gmra.mrb[0].mxu0 %v794
      %v937 = vpop.f32.mrb[0].mxu0
      %v938 = vadd.f32 0.0, %v937
      %v939 = vpop.f32.mrb[0].mxu0
      %940 = vmatprep.mubr.f32.mxu0 0.0
      %941 = vmatmul.mubr.f32.gmra.mrb[0].mxu0 %v796
      %v942 = vpop.f32.mrb[0].mxu0
      %v943 = vadd.f32 0.0, %v942
      %v944 = vpop.f32.mrb[0].mxu0
      %945 = vdwg.mxu0
      %v946 = vadd.f32 %v645, %v868
      %v947 = vadd.f32 %v650, %v873
      %v948 = vadd.f32 %v655, %v878
      %v949 = vadd.f32 %v660, %v883
      %v950 = vadd.f32 %v665, %v888
      %v951 = vadd.f32 %v670, %v893
      %v952 = vadd.f32 %v675, %v898
      %v953 = vadd.f32 %v680, %v903
      %v954 = vadd.f32 %v685, %v908
      %v955 = vadd.f32 %v690, %v913
      %v956 = vadd.f32 %v695, %v918
      %v957 = vadd.f32 %v700, %v923
      %v958 = vadd.f32 %v705, %v928
      %v959 = vadd.f32 %v710, %v933
      %v960 = vadd.f32 %v715, %v938
      %v961 = vadd.f32 %v720, %v943
      %s962 = scalar_lea.vmem %s1, 12
      %v963 = vld [vmem:[%s962] sm:$0xf]
      %v965 = vsel %vm361, %v287, 0
      %v968 = vsel %vm361, %v288, 0
      %v971 = vsel %vm394, %v963, 0
      %973 = vmatprep.subr.mxu0 0.0
      %974 = vmatpush1.msra.mxu0 %v971
      %975 = vmatprep.subr.mxu0 0.0
      %976 = vmatpush1.msra.mxu0 0.0
      %977 = vmatprep.subr.mxu0 0.0
      %978 = vmatpush1.msra.mxu0 0.0
      %979 = vmatprep.subr.mxu0 0.0
      %980 = vmatpush1.msra.mxu0 0.0
      %981 = vmatprep.subr.mxu0 0.0
      %982 = vmatpush1.msra.mxu0 0.0
      %983 = vmatprep.subr.mxu0 0.0
      %984 = vmatpush1.msra.mxu0 0.0
      %985 = vmatprep.subr.mxu0 0.0
      %986 = vmatpush1.msra.mxu0 0.0
      %987 = vmatprep.subr.mxu0 0.0
      %988 = vmatpush1.msra.mxu0 0.0
      %989 = vmatprep.subr.mxu0 0.0
      %990 = vmatpush1.msra.mxu0 0.0
      %991 = vmatprep.subr.mxu0 0.0
      %992 = vmatpush1.msra.mxu0 0.0
      %993 = vmatprep.subr.mxu0 0.0
      %994 = vmatpush1.msra.mxu0 0.0
      %995 = vmatprep.subr.mxu0 0.0
      %996 = vmatpush1.msra.mxu0 0.0
      %997 = vmatprep.subr.mxu0 0.0
      %998 = vmatpush1.msra.mxu0 0.0
      %999 = vmatprep.subr.mxu0 0.0
      %1000 = vmatpush1.msra.mxu0 0.0
      %1001 = vmatprep.subr.mxu0 0.0
      %1002 = vmatpush1.msra.mxu0 0.0
      %1003 = vmatprep.subr.mxu0 0.0
      %1004 = vmatpush1.msra.mxu0 0.0
      %1005 = vmatprep.subr.mxu0 0.0
      %1006 = vmatpush1.msra.mxu0 0.0
      %1007 = vmatprep.subr.mxu0 0.0
      %1008 = vmatpush1.msra.mxu0 0.0
      %1009 = vmatprep.subr.mxu0 0.0
      %1010 = vmatpush1.msra.mxu0 0.0
      %1011 = vmatprep.subr.mxu0 0.0
      %1012 = vmatpush1.msra.mxu0 0.0
      %1013 = vmatprep.subr.mxu0 0.0
      %1014 = vmatpush1.msra.mxu0 0.0
      %1015 = vmatprep.subr.mxu0 0.0
      %1016 = vmatpush1.msra.mxu0 0.0
      %1017 = vmatprep.subr.mxu0 0.0
      %1018 = vmatpush1.msra.mxu0 0.0
      %1019 = vmatprep.subr.mxu0 0.0
      %1020 = vmatpush1.msra.mxu0 0.0
      %1021 = vmatprep.subr.mxu0 0.0
      %1022 = vmatpush1.msra.mxu0 0.0
      %1023 = vmatprep.subr.mxu0 0.0
      %1024 = vmatpush1.msra.mxu0 0.0
      %1025 = vmatprep.subr.mxu0 0.0
      %1026 = vmatpush1.msra.mxu0 0.0
      %1027 = vmatprep.subr.mxu0 0.0
      %1028 = vmatpush1.msra.mxu0 0.0
      %1029 = vmatprep.subr.mxu0 0.0
      %1030 = vmatpush1.msra.mxu0 0.0
      %1031 = vmatprep.subr.mxu0 0.0
      %1032 = vmatpush1.msra.mxu0 0.0
      %1033 = vmatprep.subr.mxu0 0.0
      %1034 = vmatpush1.msra.mxu0 0.0
      %1035 = vmatprep.subr.mxu0 0.0
      %1036 = vmatpush1.msra.mxu0 0.0
      %1037 = vmatprep.mubr.f32.mxu0 0.0
      %1038 = vmatmul.mubr.f32.gmra.mrb[0].mxu0 %v547
      %v1039 = vpop.f32.mrb[0].mxu0
      %v1040 = vadd.f32 0.0, %v1039
      %v1041 = vpop.f32.mrb[0].mxu0
      %1042 = vmatprep.mubr.f32.mxu0 0.0
      %1043 = vmatmul.mubr.f32.gmra.mrb[0].mxu0 %v549
      %v1044 = vpop.f32.mrb[0].mxu0
      %v1045 = vadd.f32 0.0, %v1044
      %v1046 = vpop.f32.mrb[0].mxu0
      %1047 = vmatprep.mubr.f32.mxu0 0.0
      %1048 = vmatmul.mubr.f32.gmra.mrb[0].mxu0 %v551
      %v1049 = vpop.f32.mrb[0].mxu0
      %v1050 = vadd.f32 0.0, %v1049
      %v1051 = vpop.f32.mrb[0].mxu0
      %1052 = vmatprep.mubr.f32.mxu0 0.0
      %1053 = vmatmul.mubr.f32.gmra.mrb[0].mxu0 %v553
      %v1054 = vpop.f32.mrb[0].mxu0
      %v1055 = vadd.f32 0.0, %v1054
      %v1056 = vpop.f32.mrb[0].mxu0
      %1057 = vmatprep.mubr.f32.mxu0 0.0
      %1058 = vmatmul.mubr.f32.gmra.mrb[0].mxu0 %v555
      %v1059 = vpop.f32.mrb[0].mxu0
      %v1060 = vadd.f32 0.0, %v1059
      %v1061 = vpop.f32.mrb[0].mxu0
      %1062 = vmatprep.mubr.f32.mxu0 0.0
      %1063 = vmatmul.mubr.f32.gmra.mrb[0].mxu0 %v557
      %v1064 = vpop.f32.mrb[0].mxu0
      %v1065 = vadd.f32 0.0, %v1064
      %v1066 = vpop.f32.mrb[0].mxu0
      %1067 = vmatprep.mubr.f32.mxu0 0.0
      %1068 = vmatmul.mubr.f32.gmra.mrb[0].mxu0 %v559
      %v1069 = vpop.f32.mrb[0].mxu0
      %v1070 = vadd.f32 0.0, %v1069
      %v1071 = vpop.f32.mrb[0].mxu0
      %1072 = vmatprep.mubr.f32.mxu0 0.0
      %1073 = vmatmul.mubr.f32.gmra.mrb[0].mxu0 %v561
      %v1074 = vpop.f32.mrb[0].mxu0
      %v1075 = vadd.f32 0.0, %v1074
      %v1076 = vpop.f32.mrb[0].mxu0
      %1077 = vmatprep.mubr.f32.mxu0 0.0
      %1078 = vmatmul.mubr.f32.gmra.mrb[0].mxu0 %v563
      %v1079 = vpop.f32.mrb[0].mxu0
      %v1080 = vadd.f32 0.0, %v1079
      %v1081 = vpop.f32.mrb[0].mxu0
      %1082 = vmatprep.mubr.f32.mxu0 0.0
      %1083 = vmatmul.mubr.f32.gmra.mrb[0].mxu0 %v565
      %v1084 = vpop.f32.mrb[0].mxu0
      %v1085 = vadd.f32 0.0, %v1084
      %v1086 = vpop.f32.mrb[0].mxu0
      %1087 = vmatprep.mubr.f32.mxu0 0.0
      %1088 = vmatmul.mubr.f32.gmra.mrb[0].mxu0 %v567
      %v1089 = vpop.f32.mrb[0].mxu0
      %v1090 = vadd.f32 0.0, %v1089
      %v1091 = vpop.f32.mrb[0].mxu0
      %1092 = vmatprep.mubr.f32.mxu0 0.0
      %1093 = vmatmul.mubr.f32.gmra.mrb[0].mxu0 %v569
      %v1094 = vpop.f32.mrb[0].mxu0
      %v1095 = vadd.f32 0.0, %v1094
      %v1096 = vpop.f32.mrb[0].mxu0
      %1097 = vmatprep.mubr.f32.mxu0 0.0
      %1098 = vmatmul.mubr.f32.gmra.mrb[0].mxu0 %v571
      %v1099 = vpop.f32.mrb[0].mxu0
      %v1100 = vadd.f32 0.0, %v1099
      %v1101 = vpop.f32.mrb[0].mxu0
      %1102 = vmatprep.mubr.f32.mxu0 0.0
      %1103 = vmatmul.mubr.f32.gmra.mrb[0].mxu0 %v573
      %v1104 = vpop.f32.mrb[0].mxu0
      %v1105 = vadd.f32 0.0, %v1104
      %v1106 = vpop.f32.mrb[0].mxu0
      %1107 = vmatprep.mubr.f32.mxu0 0.0
      %1108 = vmatmul.mubr.f32.gmra.mrb[0].mxu0 %v965
      %v1109 = vpop.f32.mrb[0].mxu0
      %v1110 = vadd.f32 0.0, %v1109
      %v1111 = vpop.f32.mrb[0].mxu0
      %1112 = vmatprep.mubr.f32.mxu0 0.0
      %1113 = vmatmul.mubr.f32.gmra.mrb[0].mxu0 %v968
      %v1114 = vpop.f32.mrb[0].mxu0
      %v1115 = vadd.f32 0.0, %v1114
      %v1116 = vpop.f32.mrb[0].mxu0
      %1117 = vdwg.mxu0
      %v1118 = vadd.f32 %v946, %v1040
      %v1119 = vadd.f32 %v947, %v1045
      %v1120 = vadd.f32 %v948, %v1050
      %v1121 = vadd.f32 %v949, %v1055
      %v1122 = vadd.f32 %v950, %v1060
      %v1123 = vadd.f32 %v951, %v1065
      %v1124 = vadd.f32 %v952, %v1070
      %v1125 = vadd.f32 %v953, %v1075
      %v1126 = vadd.f32 %v954, %v1080
      %v1127 = vadd.f32 %v955, %v1085
      %v1128 = vadd.f32 %v956, %v1090
      %v1129 = vadd.f32 %v957, %v1095
      %v1130 = vadd.f32 %v958, %v1100
      %v1131 = vadd.f32 %v959, %v1105
      %v1132 = vadd.f32 %v960, %v1110
      %v1133 = vadd.f32 %v961, %v1115
      %v1135 = vrot.slane %v287, 1
      %v1136 = vrot.slane %v288, 1
      %v1137 = vsel %vm318, %v1135, %v1136
      %v1138 = vrot.slane %v289, 1
      %v1139 = vsel %vm318, %v1136, %v1138
      %s1140 = scalar_lea.vmem %s1, 16
      %v1141 = vld [vmem:[%s1140] sm:$0xf]
      %v1142 = vsel %vm361, %v1137, 0
      %v1144 = vsel %vm361, %v1139, 0
      %v1147 = vsel %vm394, %v1141, 0
      %1149 = vmatprep.subr.mxu0 0.0
      %1150 = vmatpush1.msra.mxu0 %v1147
      %1151 = vmatprep.subr.mxu0 0.0
      %1152 = vmatpush1.msra.mxu0 0.0
      %1153 = vmatprep.subr.mxu0 0.0
      %1154 = vmatpush1.msra.mxu0 0.0
      %1155 = vmatprep.subr.mxu0 0.0
      %1156 = vmatpush1.msra.mxu0 0.0
      %1157 = vmatprep.subr.mxu0 0.0
      %1158 = vmatpush1.msra.mxu0 0.0
      %1159 = vmatprep.subr.mxu0 0.0
      %1160 = vmatpush1.msra.mxu0 0.0
      %1161 = vmatprep.subr.mxu0 0.0
      %1162 = vmatpush1.msra.mxu0 0.0
      %1163 = vmatprep.subr.mxu0 0.0
      %1164 = vmatpush1.msra.mxu0 0.0
      %1165 = vmatprep.subr.mxu0 0.0
      %1166 = vmatpush1.msra.mxu0 0.0
      %1167 = vmatprep.subr.mxu0 0.0
      %1168 = vmatpush1.msra.mxu0 0.0
      %1169 = vmatprep.subr.mxu0 0.0
      %1170 = vmatpush1.msra.mxu0 0.0
      %1171 = vmatprep.subr.mxu0 0.0
      %1172 = vmatpush1.msra.mxu0 0.0
      %1173 = vmatprep.subr.mxu0 0.0
      %1174 = vmatpush1.msra.mxu0 0.0
      %1175 = vmatprep.subr.mxu0 0.0
      %1176 = vmatpush1.msra.mxu0 0.0
      %1177 = vmatprep.subr.mxu0 0.0
      %1178 = vmatpush1.msra.mxu0 0.0
      %1179 = vmatprep.subr.mxu0 0.0
      %1180 = vmatpush1.msra.mxu0 0.0
      %1181 = vmatprep.subr.mxu0 0.0
      %1182 = vmatpush1.msra.mxu0 0.0
      %1183 = vmatprep.subr.mxu0 0.0
      %1184 = vmatpush1.msra.mxu0 0.0
      %1185 = vmatprep.subr.mxu0 0.0
      %1186 = vmatpush1.msra.mxu0 0.0
      %1187 = vmatprep.subr.mxu0 0.0
      %1188 = vmatpush1.msra.mxu0 0.0
      %1189 = vmatprep.subr.mxu0 0.0
      %1190 = vmatpush1.msra.mxu0 0.0
      %1191 = vmatprep.subr.mxu0 0.0
      %1192 = vmatpush1.msra.mxu0 0.0
      %1193 = vmatprep.subr.mxu0 0.0
      %1194 = vmatpush1.msra.mxu0 0.0
      %1195 = vmatprep.subr.mxu0 0.0
      %1196 = vmatpush1.msra.mxu0 0.0
      %1197 = vmatprep.subr.mxu0 0.0
      %1198 = vmatpush1.msra.mxu0 0.0
      %1199 = vmatprep.subr.mxu0 0.0
      %1200 = vmatpush1.msra.mxu0 0.0
      %1201 = vmatprep.subr.mxu0 0.0
      %1202 = vmatpush1.msra.mxu0 0.0
      %1203 = vmatprep.subr.mxu0 0.0
      %1204 = vmatpush1.msra.mxu0 0.0
      %1205 = vmatprep.subr.mxu0 0.0
      %1206 = vmatpush1.msra.mxu0 0.0
      %1207 = vmatprep.subr.mxu0 0.0
      %1208 = vmatpush1.msra.mxu0 0.0
      %1209 = vmatprep.subr.mxu0 0.0
      %1210 = vmatpush1.msra.mxu0 0.0
      %1211 = vmatprep.subr.mxu0 0.0
      %1212 = vmatpush1.msra.mxu0 0.0
      %1213 = vmatprep.mubr.f32.mxu0 0.0
      %1214 = vmatmul.mubr.f32.gmra.mrb[0].mxu0 %v366
      %v1215 = vpop.f32.mrb[0].mxu0
      %v1216 = vadd.f32 0.0, %v1215
      %v1217 = vpop.f32.mrb[0].mxu0
      %1218 = vmatprep.mubr.f32.mxu0 0.0
      %1219 = vmatmul.mubr.f32.gmra.mrb[0].mxu0 %v368
      %v1220 = vpop.f32.mrb[0].mxu0
      %v1221 = vadd.f32 0.0, %v1220
      %v1222 = vpop.f32.mrb[0].mxu0
      %1223 = vmatprep.mubr.f32.mxu0 0.0
      %1224 = vmatmul.mubr.f32.gmra.mrb[0].mxu0 %v370
      %v1225 = vpop.f32.mrb[0].mxu0
      %v1226 = vadd.f32 0.0, %v1225
      %v1227 = vpop.f32.mrb[0].mxu0
      %1228 = vmatprep.mubr.f32.mxu0 0.0
      %1229 = vmatmul.mubr.f32.gmra.mrb[0].mxu0 %v372
      %v1230 = vpop.f32.mrb[0].mxu0
      %v1231 = vadd.f32 0.0, %v1230
      %v1232 = vpop.f32.mrb[0].mxu0
      %1233 = vmatprep.mubr.f32.mxu0 0.0
      %1234 = vmatmul.mubr.f32.gmra.mrb[0].mxu0 %v374
      %v1235 = vpop.f32.mrb[0].mxu0
      %v1236 = vadd.f32 0.0, %v1235
      %v1237 = vpop.f32.mrb[0].mxu0
      %1238 = vmatprep.mubr.f32.mxu0 0.0
      %1239 = vmatmul.mubr.f32.gmra.mrb[0].mxu0 %v376
      %v1240 = vpop.f32.mrb[0].mxu0
      %v1241 = vadd.f32 0.0, %v1240
      %v1242 = vpop.f32.mrb[0].mxu0
      %1243 = vmatprep.mubr.f32.mxu0 0.0
      %1244 = vmatmul.mubr.f32.gmra.mrb[0].mxu0 %v378
      %v1245 = vpop.f32.mrb[0].mxu0
      %v1246 = vadd.f32 0.0, %v1245
      %v1247 = vpop.f32.mrb[0].mxu0
      %1248 = vmatprep.mubr.f32.mxu0 0.0
      %1249 = vmatmul.mubr.f32.gmra.mrb[0].mxu0 %v380
      %v1250 = vpop.f32.mrb[0].mxu0
      %v1251 = vadd.f32 0.0, %v1250
      %v1252 = vpop.f32.mrb[0].mxu0
      %1253 = vmatprep.mubr.f32.mxu0 0.0
      %1254 = vmatmul.mubr.f32.gmra.mrb[0].mxu0 %v382
      %v1255 = vpop.f32.mrb[0].mxu0
      %v1256 = vadd.f32 0.0, %v1255
      %v1257 = vpop.f32.mrb[0].mxu0
      %1258 = vmatprep.mubr.f32.mxu0 0.0
      %1259 = vmatmul.mubr.f32.gmra.mrb[0].mxu0 %v384
      %v1260 = vpop.f32.mrb[0].mxu0
      %v1261 = vadd.f32 0.0, %v1260
      %v1262 = vpop.f32.mrb[0].mxu0
      %1263 = vmatprep.mubr.f32.mxu0 0.0
      %1264 = vmatmul.mubr.f32.gmra.mrb[0].mxu0 %v386
      %v1265 = vpop.f32.mrb[0].mxu0
      %v1266 = vadd.f32 0.0, %v1265
      %v1267 = vpop.f32.mrb[0].mxu0
      %1268 = vmatprep.mubr.f32.mxu0 0.0
      %1269 = vmatmul.mubr.f32.gmra.mrb[0].mxu0 %v388
      %v1270 = vpop.f32.mrb[0].mxu0
      %v1271 = vadd.f32 0.0, %v1270
      %v1272 = vpop.f32.mrb[0].mxu0
      %1273 = vmatprep.mubr.f32.mxu0 0.0
      %1274 = vmatmul.mubr.f32.gmra.mrb[0].mxu0 %v390
      %v1275 = vpop.f32.mrb[0].mxu0
      %v1276 = vadd.f32 0.0, %v1275
      %v1277 = vpop.f32.mrb[0].mxu0
      %1278 = vmatprep.mubr.f32.mxu0 0.0
      %1279 = vmatmul.mubr.f32.gmra.mrb[0].mxu0 %v392
      %v1280 = vpop.f32.mrb[0].mxu0
      %v1281 = vadd.f32 0.0, %v1280
      %v1282 = vpop.f32.mrb[0].mxu0
      %1283 = vmatprep.mubr.f32.mxu0 0.0
      %1284 = vmatmul.mubr.f32.gmra.mrb[0].mxu0 %v1142
      %v1285 = vpop.f32.mrb[0].mxu0
      %v1286 = vadd.f32 0.0, %v1285
      %v1287 = vpop.f32.mrb[0].mxu0
      %1288 = vmatprep.mubr.f32.mxu0 0.0
      %1289 = vmatmul.mubr.f32.gmra.mrb[0].mxu0 %v1144
      %v1290 = vpop.f32.mrb[0].mxu0
      %v1291 = vadd.f32 0.0, %v1290
      %v1292 = vpop.f32.mrb[0].mxu0
      %1293 = vdwg.mxu0
      %v1294 = vadd.f32 %v1118, %v1216
      %v1295 = vadd.f32 %v1119, %v1221
      %v1296 = vadd.f32 %v1120, %v1226
      %v1297 = vadd.f32 %v1121, %v1231
      %v1298 = vadd.f32 %v1122, %v1236
      %v1299 = vadd.f32 %v1123, %v1241
      %v1300 = vadd.f32 %v1124, %v1246
      %v1301 = vadd.f32 %v1125, %v1251
      %v1302 = vadd.f32 %v1126, %v1256
      %v1303 = vadd.f32 %v1127, %v1261
      %v1304 = vadd.f32 %v1128, %v1266
      %v1305 = vadd.f32 %v1129, %v1271
      %v1306 = vadd.f32 %v1130, %v1276
      %v1307 = vadd.f32 %v1131, %v1281
      %v1308 = vadd.f32 %v1132, %v1286
      %v1309 = vadd.f32 %v1133, %v1291
      %v1310 = vrot.slane %v287, 2
      %v1311 = vrot.slane %v288, 2
      %v1312 = vsel %vm723, %v1310, %v1311
      %v1313 = vrot.slane %v289, 2
      %v1314 = vsel %vm723, %v1311, %v1313
      %s1315 = scalar_lea.vmem %s1, 20
      %v1316 = vld [vmem:[%s1315] sm:$0xf]
      %v1317 = vsel %vm361, %v1312, 0
      %v1319 = vsel %vm361, %v1314, 0
      %v1322 = vsel %vm394, %v1316, 0
      %1324 = vmatprep.subr.mxu0 0.0
      %1325 = vmatpush1.msra.mxu0 %v1322
      %1326 = vmatprep.subr.mxu0 0.0
      %1327 = vmatpush1.msra.mxu0 0.0
      %1328 = vmatprep.subr.mxu0 0.0
      %1329 = vmatpush1.msra.mxu0 0.0
      %1330 = vmatprep.subr.mxu0 0.0
      %1331 = vmatpush1.msra.mxu0 0.0
      %1332 = vmatprep.subr.mxu0 0.0
      %1333 = vmatpush1.msra.mxu0 0.0
      %1334 = vmatprep.subr.mxu0 0.0
      %1335 = vmatpush1.msra.mxu0 0.0
      %1336 = vmatprep.subr.mxu0 0.0
      %1337 = vmatpush1.msra.mxu0 0.0
      %1338 = vmatprep.subr.mxu0 0.0
      %1339 = vmatpush1.msra.mxu0 0.0
      %1340 = vmatprep.subr.mxu0 0.0
      %1341 = vmatpush1.msra.mxu0 0.0
      %1342 = vmatprep.subr.mxu0 0.0
      %1343 = vmatpush1.msra.mxu0 0.0
      %1344 = vmatprep.subr.mxu0 0.0
      %1345 = vmatpush1.msra.mxu0 0.0
      %1346 = vmatprep.subr.mxu0 0.0
      %1347 = vmatpush1.msra.mxu0 0.0
      %1348 = vmatprep.subr.mxu0 0.0
      %1349 = vmatpush1.msra.mxu0 0.0
      %1350 = vmatprep.subr.mxu0 0.0
      %1351 = vmatpush1.msra.mxu0 0.0
      %1352 = vmatprep.subr.mxu0 0.0
      %1353 = vmatpush1.msra.mxu0 0.0
      %1354 = vmatprep.subr.mxu0 0.0
      %1355 = vmatpush1.msra.mxu0 0.0
      %1356 = vmatprep.subr.mxu0 0.0
      %1357 = vmatpush1.msra.mxu0 0.0
      %1358 = vmatprep.subr.mxu0 0.0
      %1359 = vmatpush1.msra.mxu0 0.0
      %1360 = vmatprep.subr.mxu0 0.0
      %1361 = vmatpush1.msra.mxu0 0.0
      %1362 = vmatprep.subr.mxu0 0.0
      %1363 = vmatpush1.msra.mxu0 0.0
      %1364 = vmatprep.subr.mxu0 0.0
      %1365 = vmatpush1.msra.mxu0 0.0
      %1366 = vmatprep.subr.mxu0 0.0
      %1367 = vmatpush1.msra.mxu0 0.0
      %1368 = vmatprep.subr.mxu0 0.0
      %1369 = vmatpush1.msra.mxu0 0.0
      %1370 = vmatprep.subr.mxu0 0.0
      %1371 = vmatpush1.msra.mxu0 0.0
      %1372 = vmatprep.subr.mxu0 0.0
      %1373 = vmatpush1.msra.mxu0 0.0
      %1374 = vmatprep.subr.mxu0 0.0
      %1375 = vmatpush1.msra.mxu0 0.0
      %1376 = vmatprep.subr.mxu0 0.0
      %1377 = vmatpush1.msra.mxu0 0.0
      %1378 = vmatprep.subr.mxu0 0.0
      %1379 = vmatpush1.msra.mxu0 0.0
      %1380 = vmatprep.subr.mxu0 0.0
      %1381 = vmatpush1.msra.mxu0 0.0
      %1382 = vmatprep.subr.mxu0 0.0
      %1383 = vmatpush1.msra.mxu0 0.0
      %1384 = vmatprep.subr.mxu0 0.0
      %1385 = vmatpush1.msra.mxu0 0.0
      %1386 = vmatprep.subr.mxu0 0.0
      %1387 = vmatpush1.msra.mxu0 0.0
      %1388 = vmatprep.mubr.f32.mxu0 0.0
      %1389 = vmatmul.mubr.f32.gmra.mrb[0].mxu0 %v770
      %v1390 = vpop.f32.mrb[0].mxu0
      %v1391 = vadd.f32 0.0, %v1390
      %v1392 = vpop.f32.mrb[0].mxu0
      %1393 = vmatprep.mubr.f32.mxu0 0.0
      %1394 = vmatmul.mubr.f32.gmra.mrb[0].mxu0 %v772
      %v1395 = vpop.f32.mrb[0].mxu0
      %v1396 = vadd.f32 0.0, %v1395
      %v1397 = vpop.f32.mrb[0].mxu0
      %1398 = vmatprep.mubr.f32.mxu0 0.0
      %1399 = vmatmul.mubr.f32.gmra.mrb[0].mxu0 %v774
      %v1400 = vpop.f32.mrb[0].mxu0
      %v1401 = vadd.f32 0.0, %v1400
      %v1402 = vpop.f32.mrb[0].mxu0
      %1403 = vmatprep.mubr.f32.mxu0 0.0
      %1404 = vmatmul.mubr.f32.gmra.mrb[0].mxu0 %v776
      %v1405 = vpop.f32.mrb[0].mxu0
      %v1406 = vadd.f32 0.0, %v1405
      %v1407 = vpop.f32.mrb[0].mxu0
      %1408 = vmatprep.mubr.f32.mxu0 0.0
      %1409 = vmatmul.mubr.f32.gmra.mrb[0].mxu0 %v778
      %v1410 = vpop.f32.mrb[0].mxu0
      %v1411 = vadd.f32 0.0, %v1410
      %v1412 = vpop.f32.mrb[0].mxu0
      %1413 = vmatprep.mubr.f32.mxu0 0.0
      %1414 = vmatmul.mubr.f32.gmra.mrb[0].mxu0 %v780
      %v1415 = vpop.f32.mrb[0].mxu0
      %v1416 = vadd.f32 0.0, %v1415
      %v1417 = vpop.f32.mrb[0].mxu0
      %1418 = vmatprep.mubr.f32.mxu0 0.0
      %1419 = vmatmul.mubr.f32.gmra.mrb[0].mxu0 %v782
      %v1420 = vpop.f32.mrb[0].mxu0
      %v1421 = vadd.f32 0.0, %v1420
      %v1422 = vpop.f32.mrb[0].mxu0
      %1423 = vmatprep.mubr.f32.mxu0 0.0
      %1424 = vmatmul.mubr.f32.gmra.mrb[0].mxu0 %v784
      %v1425 = vpop.f32.mrb[0].mxu0
      %v1426 = vadd.f32 0.0, %v1425
      %v1427 = vpop.f32.mrb[0].mxu0
      %1428 = vmatprep.mubr.f32.mxu0 0.0
      %1429 = vmatmul.mubr.f32.gmra.mrb[0].mxu0 %v786
      %v1430 = vpop.f32.mrb[0].mxu0
      %v1431 = vadd.f32 0.0, %v1430
      %v1432 = vpop.f32.mrb[0].mxu0
      %1433 = vmatprep.mubr.f32.mxu0 0.0
      %1434 = vmatmul.mubr.f32.gmra.mrb[0].mxu0 %v788
      %v1435 = vpop.f32.mrb[0].mxu0
      %v1436 = vadd.f32 0.0, %v1435
      %v1437 = vpop.f32.mrb[0].mxu0
      %1438 = vmatprep.mubr.f32.mxu0 0.0
      %1439 = vmatmul.mubr.f32.gmra.mrb[0].mxu0 %v790
      %v1440 = vpop.f32.mrb[0].mxu0
      %v1441 = vadd.f32 0.0, %v1440
      %v1442 = vpop.f32.mrb[0].mxu0
      %1443 = vmatprep.mubr.f32.mxu0 0.0
      %1444 = vmatmul.mubr.f32.gmra.mrb[0].mxu0 %v792
      %v1445 = vpop.f32.mrb[0].mxu0
      %v1446 = vadd.f32 0.0, %v1445
      %v1447 = vpop.f32.mrb[0].mxu0
      %1448 = vmatprep.mubr.f32.mxu0 0.0
      %1449 = vmatmul.mubr.f32.gmra.mrb[0].mxu0 %v794
      %v1450 = vpop.f32.mrb[0].mxu0
      %v1451 = vadd.f32 0.0, %v1450
      %v1452 = vpop.f32.mrb[0].mxu0
      %1453 = vmatprep.mubr.f32.mxu0 0.0
      %1454 = vmatmul.mubr.f32.gmra.mrb[0].mxu0 %v796
      %v1455 = vpop.f32.mrb[0].mxu0
      %v1456 = vadd.f32 0.0, %v1455
      %v1457 = vpop.f32.mrb[0].mxu0
      %1458 = vmatprep.mubr.f32.mxu0 0.0
      %1459 = vmatmul.mubr.f32.gmra.mrb[0].mxu0 %v1317
      %v1460 = vpop.f32.mrb[0].mxu0
      %v1461 = vadd.f32 0.0, %v1460
      %v1462 = vpop.f32.mrb[0].mxu0
      %1463 = vmatprep.mubr.f32.mxu0 0.0
      %1464 = vmatmul.mubr.f32.gmra.mrb[0].mxu0 %v1319
      %v1465 = vpop.f32.mrb[0].mxu0
      %v1466 = vadd.f32 0.0, %v1465
      %v1467 = vpop.f32.mrb[0].mxu0
      %1468 = vdwg.mxu0
      %v1469 = vadd.f32 %v1294, %v1391
      %v1470 = vadd.f32 %v1295, %v1396
      %v1471 = vadd.f32 %v1296, %v1401
      %v1472 = vadd.f32 %v1297, %v1406
      %v1473 = vadd.f32 %v1298, %v1411
      %v1474 = vadd.f32 %v1299, %v1416
      %v1475 = vadd.f32 %v1300, %v1421
      %v1476 = vadd.f32 %v1301, %v1426
      %v1477 = vadd.f32 %v1302, %v1431
      %v1478 = vadd.f32 %v1303, %v1436
      %v1479 = vadd.f32 %v1304, %v1441
      %v1480 = vadd.f32 %v1305, %v1446
      %v1481 = vadd.f32 %v1306, %v1451
      %v1482 = vadd.f32 %v1307, %v1456
      %v1483 = vadd.f32 %v1308, %v1461
      %v1484 = vadd.f32 %v1309, %v1466
      %s1485 = scalar_lea.vmem %s1, 24
      %v1486 = vld [vmem:[%s1485] sm:$0xf]
      %v1488 = vsel %vm361, %v290, 0
      %v1491 = vsel %vm361, %v291, 0
      %v1494 = vsel %vm394, %v1486, 0
      %1496 = vmatprep.subr.mxu0 0.0
      %1497 = vmatpush1.msra.mxu0 %v1494
      %1498 = vmatprep.subr.mxu0 0.0
      %1499 = vmatpush1.msra.mxu0 0.0
      %1500 = vmatprep.subr.mxu0 0.0
      %1501 = vmatpush1.msra.mxu0 0.0
      %1502 = vmatprep.subr.mxu0 0.0
      %1503 = vmatpush1.msra.mxu0 0.0
      %1504 = vmatprep.subr.mxu0 0.0
      %1505 = vmatpush1.msra.mxu0 0.0
      %1506 = vmatprep.subr.mxu0 0.0
      %1507 = vmatpush1.msra.mxu0 0.0
      %1508 = vmatprep.subr.mxu0 0.0
      %1509 = vmatpush1.msra.mxu0 0.0
      %1510 = vmatprep.subr.mxu0 0.0
      %1511 = vmatpush1.msra.mxu0 0.0
      %1512 = vmatprep.subr.mxu0 0.0
      %1513 = vmatpush1.msra.mxu0 0.0
      %1514 = vmatprep.subr.mxu0 0.0
      %1515 = vmatpush1.msra.mxu0 0.0
      %1516 = vmatprep.subr.mxu0 0.0
      %1517 = vmatpush1.msra.mxu0 0.0
      %1518 = vmatprep.subr.mxu0 0.0
      %1519 = vmatpush1.msra.mxu0 0.0
      %1520 = vmatprep.subr.mxu0 0.0
      %1521 = vmatpush1.msra.mxu0 0.0
      %1522 = vmatprep.subr.mxu0 0.0
      %1523 = vmatpush1.msra.mxu0 0.0
      %1524 = vmatprep.subr.mxu0 0.0
      %1525 = vmatpush1.msra.mxu0 0.0
      %1526 = vmatprep.subr.mxu0 0.0
      %1527 = vmatpush1.msra.mxu0 0.0
      %1528 = vmatprep.subr.mxu0 0.0
      %1529 = vmatpush1.msra.mxu0 0.0
      %1530 = vmatprep.subr.mxu0 0.0
      %1531 = vmatpush1.msra.mxu0 0.0
      %1532 = vmatprep.subr.mxu0 0.0
      %1533 = vmatpush1.msra.mxu0 0.0
      %1534 = vmatprep.subr.mxu0 0.0
      %1535 = vmatpush1.msra.mxu0 0.0
      %1536 = vmatprep.subr.mxu0 0.0
      %1537 = vmatpush1.msra.mxu0 0.0
      %1538 = vmatprep.subr.mxu0 0.0
      %1539 = vmatpush1.msra.mxu0 0.0
      %1540 = vmatprep.subr.mxu0 0.0
      %1541 = vmatpush1.msra.mxu0 0.0
      %1542 = vmatprep.subr.mxu0 0.0
      %1543 = vmatpush1.msra.mxu0 0.0
      %1544 = vmatprep.subr.mxu0 0.0
      %1545 = vmatpush1.msra.mxu0 0.0
      %1546 = vmatprep.subr.mxu0 0.0
      %1547 = vmatpush1.msra.mxu0 0.0
      %1548 = vmatprep.subr.mxu0 0.0
      %1549 = vmatpush1.msra.mxu0 0.0
      %1550 = vmatprep.subr.mxu0 0.0
      %1551 = vmatpush1.msra.mxu0 0.0
      %1552 = vmatprep.subr.mxu0 0.0
      %1553 = vmatpush1.msra.mxu0 0.0
      %1554 = vmatprep.subr.mxu0 0.0
      %1555 = vmatpush1.msra.mxu0 0.0
      %1556 = vmatprep.subr.mxu0 0.0
      %1557 = vmatpush1.msra.mxu0 0.0
      %1558 = vmatprep.subr.mxu0 0.0
      %1559 = vmatpush1.msra.mxu0 0.0
      %1560 = vmatprep.mubr.f32.mxu0 0.0
      %1561 = vmatmul.mubr.f32.gmra.mrb[0].mxu0 %v551
      %v1562 = vpop.f32.mrb[0].mxu0
      %v1563 = vadd.f32 0.0, %v1562
      %v1564 = vpop.f32.mrb[0].mxu0
      %1565 = vmatprep.mubr.f32.mxu0 0.0
      %1566 = vmatmul.mubr.f32.gmra.mrb[0].mxu0 %v553
      %v1567 = vpop.f32.mrb[0].mxu0
      %v1568 = vadd.f32 0.0, %v1567
      %v1569 = vpop.f32.mrb[0].mxu0
      %1570 = vmatprep.mubr.f32.mxu0 0.0
      %1571 = vmatmul.mubr.f32.gmra.mrb[0].mxu0 %v555
      %v1572 = vpop.f32.mrb[0].mxu0
      %v1573 = vadd.f32 0.0, %v1572
      %v1574 = vpop.f32.mrb[0].mxu0
      %1575 = vmatprep.mubr.f32.mxu0 0.0
      %1576 = vmatmul.mubr.f32.gmra.mrb[0].mxu0 %v557
      %v1577 = vpop.f32.mrb[0].mxu0
      %v1578 = vadd.f32 0.0, %v1577
      %v1579 = vpop.f32.mrb[0].mxu0
      %1580 = vmatprep.mubr.f32.mxu0 0.0
      %1581 = vmatmul.mubr.f32.gmra.mrb[0].mxu0 %v559
      %v1582 = vpop.f32.mrb[0].mxu0
      %v1583 = vadd.f32 0.0, %v1582
      %v1584 = vpop.f32.mrb[0].mxu0
      %1585 = vmatprep.mubr.f32.mxu0 0.0
      %1586 = vmatmul.mubr.f32.gmra.mrb[0].mxu0 %v561
      %v1587 = vpop.f32.mrb[0].mxu0
      %v1588 = vadd.f32 0.0, %v1587
      %v1589 = vpop.f32.mrb[0].mxu0
      %1590 = vmatprep.mubr.f32.mxu0 0.0
      %1591 = vmatmul.mubr.f32.gmra.mrb[0].mxu0 %v563
      %v1592 = vpop.f32.mrb[0].mxu0
      %v1593 = vadd.f32 0.0, %v1592
      %v1594 = vpop.f32.mrb[0].mxu0
      %1595 = vmatprep.mubr.f32.mxu0 0.0
      %1596 = vmatmul.mubr.f32.gmra.mrb[0].mxu0 %v565
      %v1597 = vpop.f32.mrb[0].mxu0
      %v1598 = vadd.f32 0.0, %v1597
      %v1599 = vpop.f32.mrb[0].mxu0
      %1600 = vmatprep.mubr.f32.mxu0 0.0
      %1601 = vmatmul.mubr.f32.gmra.mrb[0].mxu0 %v567
      %v1602 = vpop.f32.mrb[0].mxu0
      %v1603 = vadd.f32 0.0, %v1602
      %v1604 = vpop.f32.mrb[0].mxu0
      %1605 = vmatprep.mubr.f32.mxu0 0.0
      %1606 = vmatmul.mubr.f32.gmra.mrb[0].mxu0 %v569
      %v1607 = vpop.f32.mrb[0].mxu0
      %v1608 = vadd.f32 0.0, %v1607
      %v1609 = vpop.f32.mrb[0].mxu0
      %1610 = vmatprep.mubr.f32.mxu0 0.0
      %1611 = vmatmul.mubr.f32.gmra.mrb[0].mxu0 %v571
      %v1612 = vpop.f32.mrb[0].mxu0
      %v1613 = vadd.f32 0.0, %v1612
      %v1614 = vpop.f32.mrb[0].mxu0
      %1615 = vmatprep.mubr.f32.mxu0 0.0
      %1616 = vmatmul.mubr.f32.gmra.mrb[0].mxu0 %v573
      %v1617 = vpop.f32.mrb[0].mxu0
      %v1618 = vadd.f32 0.0, %v1617
      %v1619 = vpop.f32.mrb[0].mxu0
      %1620 = vmatprep.mubr.f32.mxu0 0.0
      %1621 = vmatmul.mubr.f32.gmra.mrb[0].mxu0 %v965
      %v1622 = vpop.f32.mrb[0].mxu0
      %v1623 = vadd.f32 0.0, %v1622
      %v1624 = vpop.f32.mrb[0].mxu0
      %1625 = vmatprep.mubr.f32.mxu0 0.0
      %1626 = vmatmul.mubr.f32.gmra.mrb[0].mxu0 %v968
      %v1627 = vpop.f32.mrb[0].mxu0
      %v1628 = vadd.f32 0.0, %v1627
      %v1629 = vpop.f32.mrb[0].mxu0
      %1630 = vmatprep.mubr.f32.mxu0 0.0
      %1631 = vmatmul.mubr.f32.gmra.mrb[0].mxu0 %v1488
      %v1632 = vpop.f32.mrb[0].mxu0
      %v1633 = vadd.f32 0.0, %v1632
      %v1634 = vpop.f32.mrb[0].mxu0
      %1635 = vmatprep.mubr.f32.mxu0 0.0
      %1636 = vmatmul.mubr.f32.gmra.mrb[0].mxu0 %v1491
      %v1637 = vpop.f32.mrb[0].mxu0
      %v1638 = vadd.f32 0.0, %v1637
      %v1639 = vpop.f32.mrb[0].mxu0
      %1640 = vdwg.mxu0
      %v1641 = vadd.f32 %v1469, %v1563
      %v1642 = vadd.f32 %v1470, %v1568
      %v1643 = vadd.f32 %v1471, %v1573
      %v1644 = vadd.f32 %v1472, %v1578
      %v1645 = vadd.f32 %v1473, %v1583
      %v1646 = vadd.f32 %v1474, %v1588
      %v1647 = vadd.f32 %v1475, %v1593
      %v1648 = vadd.f32 %v1476, %v1598
      %v1649 = vadd.f32 %v1477, %v1603
      %v1650 = vadd.f32 %v1478, %v1608
      %v1651 = vadd.f32 %v1479, %v1613
      %v1652 = vadd.f32 %v1480, %v1618
      %v1653 = vadd.f32 %v1481, %v1623
      %v1654 = vadd.f32 %v1482, %v1628
      %v1655 = vadd.f32 %v1483, %v1633
      %v1656 = vadd.f32 %v1484, %v1638
      %v1658 = vrot.slane %v290, 1
      %v1659 = vrot.slane %v291, 1
      %v1660 = vsel %vm318, %v1658, %v1659
      %v1661 = vrot.slane %v292, 1
      %v1662 = vsel %vm318, %v1659, %v1661
      %s1663 = scalar_lea.vmem %s1, 28
      %v1664 = vld [vmem:[%s1663] sm:$0xf]
      %v1665 = vsel %vm361, %v1660, 0
      %v1667 = vsel %vm361, %v1662, 0
      %v1670 = vsel %vm394, %v1664, 0
      %1672 = vmatprep.subr.mxu0 0.0
      %1673 = vmatpush1.msra.mxu0 %v1670
      %1674 = vmatprep.subr.mxu0 0.0
      %1675 = vmatpush1.msra.mxu0 0.0
      %1676 = vmatprep.subr.mxu0 0.0
      %1677 = vmatpush1.msra.mxu0 0.0
      %1678 = vmatprep.subr.mxu0 0.0
      %1679 = vmatpush1.msra.mxu0 0.0
      %1680 = vmatprep.subr.mxu0 0.0
      %1681 = vmatpush1.msra.mxu0 0.0
      %1682 = vmatprep.subr.mxu0 0.0
      %1683 = vmatpush1.msra.mxu0 0.0
      %1684 = vmatprep.subr.mxu0 0.0
      %1685 = vmatpush1.msra.mxu0 0.0
      %1686 = vmatprep.subr.mxu0 0.0
      %1687 = vmatpush1.msra.mxu0 0.0
      %1688 = vmatprep.subr.mxu0 0.0
      %1689 = vmatpush1.msra.mxu0 0.0
      %1690 = vmatprep.subr.mxu0 0.0
      %1691 = vmatpush1.msra.mxu0 0.0
      %1692 = vmatprep.subr.mxu0 0.0
      %1693 = vmatpush1.msra.mxu0 0.0
      %1694 = vmatprep.subr.mxu0 0.0
      %1695 = vmatpush1.msra.mxu0 0.0
      %1696 = vmatprep.subr.mxu0 0.0
      %1697 = vmatpush1.msra.mxu0 0.0
      %1698 = vmatprep.subr.mxu0 0.0
      %1699 = vmatpush1.msra.mxu0 0.0
      %1700 = vmatprep.subr.mxu0 0.0
      %1701 = vmatpush1.msra.mxu0 0.0
      %1702 = vmatprep.subr.mxu0 0.0
      %1703 = vmatpush1.msra.mxu0 0.0
      %1704 = vmatprep.subr.mxu0 0.0
      %1705 = vmatpush1.msra.mxu0 0.0
      %1706 = vmatprep.subr.mxu0 0.0
      %1707 = vmatpush1.msra.mxu0 0.0
      %1708 = vmatprep.subr.mxu0 0.0
      %1709 = vmatpush1.msra.mxu0 0.0
      %1710 = vmatprep.subr.mxu0 0.0
      %1711 = vmatpush1.msra.mxu0 0.0
      %1712 = vmatprep.subr.mxu0 0.0
      %1713 = vmatpush1.msra.mxu0 0.0
      %1714 = vmatprep.subr.mxu0 0.0
      %1715 = vmatpush1.msra.mxu0 0.0
      %1716 = vmatprep.subr.mxu0 0.0
      %1717 = vmatpush1.msra.mxu0 0.0
      %1718 = vmatprep.subr.mxu0 0.0
      %1719 = vmatpush1.msra.mxu0 0.0
      %1720 = vmatprep.subr.mxu0 0.0
      %1721 = vmatpush1.msra.mxu0 0.0
      %1722 = vmatprep.subr.mxu0 0.0
      %1723 = vmatpush1.msra.mxu0 0.0
      %1724 = vmatprep.subr.mxu0 0.0
      %1725 = vmatpush1.msra.mxu0 0.0
      %1726 = vmatprep.subr.mxu0 0.0
      %1727 = vmatpush1.msra.mxu0 0.0
      %1728 = vmatprep.subr.mxu0 0.0
      %1729 = vmatpush1.msra.mxu0 0.0
      %1730 = vmatprep.subr.mxu0 0.0
      %1731 = vmatpush1.msra.mxu0 0.0
      %1732 = vmatprep.subr.mxu0 0.0
      %1733 = vmatpush1.msra.mxu0 0.0
      %1734 = vmatprep.subr.mxu0 0.0
      %1735 = vmatpush1.msra.mxu0 0.0
      %1736 = vmatprep.mubr.f32.mxu0 0.0
      %1737 = vmatmul.mubr.f32.gmra.mrb[0].mxu0 %v370
      %v1738 = vpop.f32.mrb[0].mxu0
      %v1739 = vadd.f32 0.0, %v1738
      %v1740 = vpop.f32.mrb[0].mxu0
      %1741 = vmatprep.mubr.f32.mxu0 0.0
      %1742 = vmatmul.mubr.f32.gmra.mrb[0].mxu0 %v372
      %v1743 = vpop.f32.mrb[0].mxu0
      %v1744 = vadd.f32 0.0, %v1743
      %v1745 = vpop.f32.mrb[0].mxu0
      %1746 = vmatprep.mubr.f32.mxu0 0.0
      %1747 = vmatmul.mubr.f32.gmra.mrb[0].mxu0 %v374
      %v1748 = vpop.f32.mrb[0].mxu0
      %v1749 = vadd.f32 0.0, %v1748
      %v1750 = vpop.f32.mrb[0].mxu0
      %1751 = vmatprep.mubr.f32.mxu0 0.0
      %1752 = vmatmul.mubr.f32.gmra.mrb[0].mxu0 %v376
      %v1753 = vpop.f32.mrb[0].mxu0
      %v1754 = vadd.f32 0.0, %v1753
      %v1755 = vpop.f32.mrb[0].mxu0
      %1756 = vmatprep.mubr.f32.mxu0 0.0
      %1757 = vmatmul.mubr.f32.gmra.mrb[0].mxu0 %v378
      %v1758 = vpop.f32.mrb[0].mxu0
      %v1759 = vadd.f32 0.0, %v1758
      %v1760 = vpop.f32.mrb[0].mxu0
      %1761 = vmatprep.mubr.f32.mxu0 0.0
      %1762 = vmatmul.mubr.f32.gmra.mrb[0].mxu0 %v380
      %v1763 = vpop.f32.mrb[0].mxu0
      %v1764 = vadd.f32 0.0, %v1763
      %v1765 = vpop.f32.mrb[0].mxu0
      %1766 = vmatprep.mubr.f32.mxu0 0.0
      %1767 = vmatmul.mubr.f32.gmra.mrb[0].mxu0 %v382
      %v1768 = vpop.f32.mrb[0].mxu0
      %v1769 = vadd.f32 0.0, %v1768
      %v1770 = vpop.f32.mrb[0].mxu0
      %1771 = vmatprep.mubr.f32.mxu0 0.0
      %1772 = vmatmul.mubr.f32.gmra.mrb[0].mxu0 %v384
      %v1773 = vpop.f32.mrb[0].mxu0
      %v1774 = vadd.f32 0.0, %v1773
      %v1775 = vpop.f32.mrb[0].mxu0
      %1776 = vmatprep.mubr.f32.mxu0 0.0
      %1777 = vmatmul.mubr.f32.gmra.mrb[0].mxu0 %v386
      %v1778 = vpop.f32.mrb[0].mxu0
      %v1779 = vadd.f32 0.0, %v1778
      %v1780 = vpop.f32.mrb[0].mxu0
      %1781 = vmatprep.mubr.f32.mxu0 0.0
      %1782 = vmatmul.mubr.f32.gmra.mrb[0].mxu0 %v388
      %v1783 = vpop.f32.mrb[0].mxu0
      %v1784 = vadd.f32 0.0, %v1783
      %v1785 = vpop.f32.mrb[0].mxu0
      %1786 = vmatprep.mubr.f32.mxu0 0.0
      %1787 = vmatmul.mubr.f32.gmra.mrb[0].mxu0 %v390
      %v1788 = vpop.f32.mrb[0].mxu0
      %v1789 = vadd.f32 0.0, %v1788
      %v1790 = vpop.f32.mrb[0].mxu0
      %1791 = vmatprep.mubr.f32.mxu0 0.0
      %1792 = vmatmul.mubr.f32.gmra.mrb[0].mxu0 %v392
      %v1793 = vpop.f32.mrb[0].mxu0
      %v1794 = vadd.f32 0.0, %v1793
      %v1795 = vpop.f32.mrb[0].mxu0
      %1796 = vmatprep.mubr.f32.mxu0 0.0
      %1797 = vmatmul.mubr.f32.gmra.mrb[0].mxu0 %v1142
      %v1798 = vpop.f32.mrb[0].mxu0
      %v1799 = vadd.f32 0.0, %v1798
      %v1800 = vpop.f32.mrb[0].mxu0
      %1801 = vmatprep.mubr.f32.mxu0 0.0
      %1802 = vmatmul.mubr.f32.gmra.mrb[0].mxu0 %v1144
      %v1803 = vpop.f32.mrb[0].mxu0
      %v1804 = vadd.f32 0.0, %v1803
      %v1805 = vpop.f32.mrb[0].mxu0
      %1806 = vmatprep.mubr.f32.mxu0 0.0
      %1807 = vmatmul.mubr.f32.gmra.mrb[0].mxu0 %v1665
      %v1808 = vpop.f32.mrb[0].mxu0
      %v1809 = vadd.f32 0.0, %v1808
      %v1810 = vpop.f32.mrb[0].mxu0
      %1811 = vmatprep.mubr.f32.mxu0 0.0
      %1812 = vmatmul.mubr.f32.gmra.mrb[0].mxu0 %v1667
      %v1813 = vpop.f32.mrb[0].mxu0
      %v1814 = vadd.f32 0.0, %v1813
      %v1815 = vpop.f32.mrb[0].mxu0
      %1816 = vdwg.mxu0
      %v1817 = vadd.f32 %v1641, %v1739
      %v1818 = vadd.f32 %v1642, %v1744
      %v1819 = vadd.f32 %v1643, %v1749
      %v1820 = vadd.f32 %v1644, %v1754
      %v1821 = vadd.f32 %v1645, %v1759
      %v1822 = vadd.f32 %v1646, %v1764
      %v1823 = vadd.f32 %v1647, %v1769
      %v1824 = vadd.f32 %v1648, %v1774
      %v1825 = vadd.f32 %v1649, %v1779
      %v1826 = vadd.f32 %v1650, %v1784
      %v1827 = vadd.f32 %v1651, %v1789
      %v1828 = vadd.f32 %v1652, %v1794
      %v1829 = vadd.f32 %v1653, %v1799
      %v1830 = vadd.f32 %v1654, %v1804
      %v1831 = vadd.f32 %v1655, %v1809
      %v1832 = vadd.f32 %v1656, %v1814
      %v1833 = vrot.slane %v290, 2
      %v1834 = vrot.slane %v291, 2
      %v1835 = vsel %vm723, %v1833, %v1834
      %v1836 = vrot.slane %v292, 2
      %v1837 = vsel %vm723, %v1834, %v1836
      %s1838 = scalar_lea.vmem %s1, 32
      %v1839 = vld [vmem:[%s1838] sm:$0xf]
      %v1840 = vsel %vm361, %v1835, 0
      %v1842 = vsel %vm361, %v1837, 0
      %v1845 = vsel %vm394, %v1839, 0
      %1847 = vmatprep.subr.mxu0 0.0
      %1848 = vmatpush1.msra.mxu0 %v1845
      %1849 = vmatprep.subr.mxu0 0.0
      %1850 = vmatpush1.msra.mxu0 0.0
      %1851 = vmatprep.subr.mxu0 0.0
      %1852 = vmatpush1.msra.mxu0 0.0
      %1853 = vmatprep.subr.mxu0 0.0
      %1854 = vmatpush1.msra.mxu0 0.0
      %1855 = vmatprep.subr.mxu0 0.0
      %1856 = vmatpush1.msra.mxu0 0.0
      %1857 = vmatprep.subr.mxu0 0.0
      %1858 = vmatpush1.msra.mxu0 0.0
      %1859 = vmatprep.subr.mxu0 0.0
      %1860 = vmatpush1.msra.mxu0 0.0
      %1861 = vmatprep.subr.mxu0 0.0
      %1862 = vmatpush1.msra.mxu0 0.0
      %1863 = vmatprep.subr.mxu0 0.0
      %1864 = vmatpush1.msra.mxu0 0.0
      %1865 = vmatprep.subr.mxu0 0.0
      %1866 = vmatpush1.msra.mxu0 0.0
      %1867 = vmatprep.subr.mxu0 0.0
      %1868 = vmatpush1.msra.mxu0 0.0
      %1869 = vmatprep.subr.mxu0 0.0
      %1870 = vmatpush1.msra.mxu0 0.0
      %1871 = vmatprep.subr.mxu0 0.0
      %1872 = vmatpush1.msra.mxu0 0.0
      %1873 = vmatprep.subr.mxu0 0.0
      %1874 = vmatpush1.msra.mxu0 0.0
      %1875 = vmatprep.subr.mxu0 0.0
      %1876 = vmatpush1.msra.mxu0 0.0
      %1877 = vmatprep.subr.mxu0 0.0
      %1878 = vmatpush1.msra.mxu0 0.0
      %1879 = vmatprep.subr.mxu0 0.0
      %1880 = vmatpush1.msra.mxu0 0.0
      %1881 = vmatprep.subr.mxu0 0.0
      %1882 = vmatpush1.msra.mxu0 0.0
      %1883 = vmatprep.subr.mxu0 0.0
      %1884 = vmatpush1.msra.mxu0 0.0
      %1885 = vmatprep.subr.mxu0 0.0
      %1886 = vmatpush1.msra.mxu0 0.0
      %1887 = vmatprep.subr.mxu0 0.0
      %1888 = vmatpush1.msra.mxu0 0.0
      %1889 = vmatprep.subr.mxu0 0.0
      %1890 = vmatpush1.msra.mxu0 0.0
      %1891 = vmatprep.subr.mxu0 0.0
      %1892 = vmatpush1.msra.mxu0 0.0
      %1893 = vmatprep.subr.mxu0 0.0
      %1894 = vmatpush1.msra.mxu0 0.0
      %1895 = vmatprep.subr.mxu0 0.0
      %1896 = vmatpush1.msra.mxu0 0.0
      %1897 = vmatprep.subr.mxu0 0.0
      %1898 = vmatpush1.msra.mxu0 0.0
      %1899 = vmatprep.subr.mxu0 0.0
      %1900 = vmatpush1.msra.mxu0 0.0
      %1901 = vmatprep.subr.mxu0 0.0
      %1902 = vmatpush1.msra.mxu0 0.0
      %1903 = vmatprep.subr.mxu0 0.0
      %1904 = vmatpush1.msra.mxu0 0.0
      %1905 = vmatprep.subr.mxu0 0.0
      %1906 = vmatpush1.msra.mxu0 0.0
      %1907 = vmatprep.subr.mxu0 0.0
      %1908 = vmatpush1.msra.mxu0 0.0
      %1909 = vmatprep.subr.mxu0 0.0
      %1910 = vmatpush1.msra.mxu0 0.0
      %1911 = vmatprep.mubr.f32.mxu0 0.0
      %1912 = vmatmul.mubr.f32.gmra.mrb[0].mxu0 %v774
      %v1913 = vpop.f32.mrb[0].mxu0
      %v1914 = vadd.f32 0.0, %v1913
      %v1915 = vpop.f32.mrb[0].mxu0
      %1916 = vmatprep.mubr.f32.mxu0 0.0
      %1917 = vmatmul.mubr.f32.gmra.mrb[0].mxu0 %v776
      %v1918 = vpop.f32.mrb[0].mxu0
      %v1919 = vadd.f32 0.0, %v1918
      %v1920 = vpop.f32.mrb[0].mxu0
      %1921 = vmatprep.mubr.f32.mxu0 0.0
      %1922 = vmatmul.mubr.f32.gmra.mrb[0].mxu0 %v778
      %v1923 = vpop.f32.mrb[0].mxu0
      %v1924 = vadd.f32 0.0, %v1923
      %v1925 = vpop.f32.mrb[0].mxu0
      %1926 = vmatprep.mubr.f32.mxu0 0.0
      %1927 = vmatmul.mubr.f32.gmra.mrb[0].mxu0 %v780
      %v1928 = vpop.f32.mrb[0].mxu0
      %v1929 = vadd.f32 0.0, %v1928
      %v1930 = vpop.f32.mrb[0].mxu0
      %1931 = vmatprep.mubr.f32.mxu0 0.0
      %1932 = vmatmul.mubr.f32.gmra.mrb[0].mxu0 %v782
      %v1933 = vpop.f32.mrb[0].mxu0
      %v1934 = vadd.f32 0.0, %v1933
      %v1935 = vpop.f32.mrb[0].mxu0
      %1936 = vmatprep.mubr.f32.mxu0 0.0
      %1937 = vmatmul.mubr.f32.gmra.mrb[0].mxu0 %v784
      %v1938 = vpop.f32.mrb[0].mxu0
      %v1939 = vadd.f32 0.0, %v1938
      %v1940 = vpop.f32.mrb[0].mxu0
      %1941 = vmatprep.mubr.f32.mxu0 0.0
      %1942 = vmatmul.mubr.f32.gmra.mrb[0].mxu0 %v786
      %v1943 = vpop.f32.mrb[0].mxu0
      %v1944 = vadd.f32 0.0, %v1943
      %v1945 = vpop.f32.mrb[0].mxu0
      %1946 = vmatprep.mubr.f32.mxu0 0.0
      %1947 = vmatmul.mubr.f32.gmra.mrb[0].mxu0 %v788
      %v1948 = vpop.f32.mrb[0].mxu0
      %v1949 = vadd.f32 0.0, %v1948
      %v1950 = vpop.f32.mrb[0].mxu0
      %1951 = vmatprep.mubr.f32.mxu0 0.0
      %1952 = vmatmul.mubr.f32.gmra.mrb[0].mxu0 %v790
      %v1953 = vpop.f32.mrb[0].mxu0
      %v1954 = vadd.f32 0.0, %v1953
      %v1955 = vpop.f32.mrb[0].mxu0
      %1956 = vmatprep.mubr.f32.mxu0 0.0
      %1957 = vmatmul.mubr.f32.gmra.mrb[0].mxu0 %v792
      %v1958 = vpop.f32.mrb[0].mxu0
      %v1959 = vadd.f32 0.0, %v1958
      %v1960 = vpop.f32.mrb[0].mxu0
      %1961 = vmatprep.mubr.f32.mxu0 0.0
      %1962 = vmatmul.mubr.f32.gmra.mrb[0].mxu0 %v794
      %v1963 = vpop.f32.mrb[0].mxu0
      %v1964 = vadd.f32 0.0, %v1963
      %v1965 = vpop.f32.mrb[0].mxu0
      %1966 = vmatprep.mubr.f32.mxu0 0.0
      %1967 = vmatmul.mubr.f32.gmra.mrb[0].mxu0 %v796
      %v1968 = vpop.f32.mrb[0].mxu0
      %v1969 = vadd.f32 0.0, %v1968
      %v1970 = vpop.f32.mrb[0].mxu0
      %1971 = vmatprep.mubr.f32.mxu0 0.0
      %1972 = vmatmul.mubr.f32.gmra.mrb[0].mxu0 %v1317
      %v1973 = vpop.f32.mrb[0].mxu0
      %v1974 = vadd.f32 0.0, %v1973
      %v1975 = vpop.f32.mrb[0].mxu0
      %1976 = vmatprep.mubr.f32.mxu0 0.0
      %1977 = vmatmul.mubr.f32.gmra.mrb[0].mxu0 %v1319
      %v1978 = vpop.f32.mrb[0].mxu0
      %v1979 = vadd.f32 0.0, %v1978
      %v1980 = vpop.f32.mrb[0].mxu0
      %1981 = vmatprep.mubr.f32.mxu0 0.0
      %1982 = vmatmul.mubr.f32.gmra.mrb[0].mxu0 %v1840
      %v1983 = vpop.f32.mrb[0].mxu0
      %v1984 = vadd.f32 0.0, %v1983
      %v1985 = vpop.f32.mrb[0].mxu0
      %1986 = vmatprep.mubr.f32.mxu0 0.0
      %1987 = vmatmul.mubr.f32.gmra.mrb[0].mxu0 %v1842
      %v1988 = vpop.f32.mrb[0].mxu0
      %v1989 = vadd.f32 0.0, %v1988
      %v1990 = vpop.f32.mrb[0].mxu0
      %1991 = vdwg.mxu0
      %v1992 = vadd.f32 %v1817, %v1914
      %v1993 = vadd.f32 %v1818, %v1919
      %v1994 = vadd.f32 %v1819, %v1924
      %v1995 = vadd.f32 %v1820, %v1929
      %v1996 = vadd.f32 %v1821, %v1934
      %v1997 = vadd.f32 %v1822, %v1939
      %v1998 = vadd.f32 %v1823, %v1944
      %v1999 = vadd.f32 %v1824, %v1949
      %v2000 = vadd.f32 %v1825, %v1954
      %v2001 = vadd.f32 %v1826, %v1959
      %v2002 = vadd.f32 %v1827, %v1964
      %v2003 = vadd.f32 %v1828, %v1969
      %v2004 = vadd.f32 %v1829, %v1974
      %v2005 = vadd.f32 %v1830, %v1979
      %v2006 = vadd.f32 %v1831, %v1984
      %v2007 = vadd.f32 %v1832, %v1989
      %vm2008 = vcmp.ge.f32.partialorder %v1992, 0.0
      %vm2009 = vcmp.ge.f32.partialorder %v1993, 0.0
      %vm2010 = vcmp.ge.f32.partialorder %v1994, 0.0
      %vm2011 = vcmp.ge.f32.partialorder %v1995, 0.0
      %vm2012 = vcmp.ge.f32.partialorder %v1996, 0.0
      %vm2013 = vcmp.ge.f32.partialorder %v1997, 0.0
      %vm2014 = vcmp.ge.f32.partialorder %v1998, 0.0
      %vm2015 = vcmp.ge.f32.partialorder %v1999, 0.0
      %vm2016 = vcmp.ge.f32.partialorder %v2000, 0.0
      %vm2017 = vcmp.ge.f32.partialorder %v2001, 0.0
      %vm2018 = vcmp.ge.f32.partialorder %v2002, 0.0
      %vm2019 = vcmp.ge.f32.partialorder %v2003, 0.0
      %vm2020 = vcmp.ge.f32.partialorder %v2004, 0.0
      %vm2021 = vcmp.ge.f32.partialorder %v2005, 0.0
      %vm2022 = vcmp.ge.f32.partialorder %v2006, 0.0
      %vm2023 = vcmp.ge.f32.partialorder %v2007, 0.0
      %v2024 = vmul.f32 %v1992, 0.01
      %v2025 = vmul.f32 %v1993, 0.01
      %v2026 = vmul.f32 %v1994, 0.01
      %v2027 = vmul.f32 %v1995, 0.01
      %v2028 = vmul.f32 %v1996, 0.01
      %v2029 = vmul.f32 %v1997, 0.01
      %v2030 = vmul.f32 %v1998, 0.01
      %v2031 = vmul.f32 %v1999, 0.01
      %v2032 = vmul.f32 %v2000, 0.01
      %v2033 = vmul.f32 %v2001, 0.01
      %v2034 = vmul.f32 %v2002, 0.01
      %v2035 = vmul.f32 %v2003, 0.01
      %v2036 = vmul.f32 %v2004, 0.01
      %v2037 = vmul.f32 %v2005, 0.01
      %v2038 = vmul.f32 %v2006, 0.01
      %v2039 = vmul.f32 %v2007, 0.01
      %v2040 = vsel %vm2008, %v1992, %v2024
      %v2041 = vsel %vm2009, %v1993, %v2025
      %v2042 = vsel %vm2010, %v1994, %v2026
      %v2043 = vsel %vm2011, %v1995, %v2027
      %v2044 = vsel %vm2012, %v1996, %v2028
      %v2045 = vsel %vm2013, %v1997, %v2029
      %v2046 = vsel %vm2014, %v1998, %v2030
      %v2047 = vsel %vm2015, %v1999, %v2031
      %v2048 = vsel %vm2016, %v2000, %v2032
      %v2049 = vsel %vm2017, %v2001, %v2033
      %v2050 = vsel %vm2018, %v2002, %v2034
      %v2051 = vsel %vm2019, %v2003, %v2035
      %v2052 = vsel %vm2020, %v2004, %v2036
      %v2053 = vsel %vm2021, %v2005, %v2037
      %v2054 = vsel %vm2022, %v2006, %v2038
      %v2055 = vsel %vm2023, %v2007, %v2039
      %2056 = vst [vmem:[%s244] sm:$0xff] %v2040
      %2057 = vst [vmem:[%s244 + $0x8] sm:$0xff] %v2041
      %2058 = vst [vmem:[%s244 + $0x10] sm:$0xff] %v2042
      %2059 = vst [vmem:[%s244 + $0x18] sm:$0xff] %v2043
      %2060 = vst [vmem:[%s244 + $0x20] sm:$0xff] %v2044
      %2061 = vst [vmem:[%s244 + $0x28] sm:$0xff] %v2045
      %2062 = vst [vmem:[%s244 + $0x30] sm:$0xff] %v2046
      %2063 = vst [vmem:[%s244 + $0x38] sm:$0xff] %v2047
      %2064 = vst [vmem:[%s244 + $0x40] sm:$0xff] %v2048
      %2065 = vst [vmem:[%s244 + $0x48] sm:$0xff] %v2049
      %2066 = vst [vmem:[%s244 + $0x50] sm:$0xff] %v2050
      %2067 = vst [vmem:[%s244 + $0x58] sm:$0xff] %v2051
      %2068 = vst [vmem:[%s244 + $0x60] sm:$0xff] %v2052
      %2069 = vst [vmem:[%s244 + $0x68] sm:$0xff] %v2053
      %2070 = vst [vmem:[%s244 + $0x70] sm:$0xff] %v2054
      %2071 = vst [vmem:[%s244 + $0x78] sm:$0xff] %v2055
      %v2072 = vadd.f32 %v2040, %v2041
      %v2073 = vadd.f32 %v2072, %v2042
      %v2074 = vadd.f32 %v2073, %v2043
      %v2075 = vadd.f32 %v2074, %v2044
      %v2076 = vadd.f32 %v2075, %v2045
      %v2077 = vadd.f32 %v2076, %v2046
      %v2078 = vadd.f32 %v2077, %v2047
      %v2079 = vadd.f32 %v2078, %v2048
      %v2080 = vadd.f32 %v2079, %v2049
      %v2081 = vadd.f32 %v2080, %v2050
      %v2082 = vadd.f32 %v2081, %v2051
      %v2083 = vadd.f32 %v2082, %v2052
      %v2084 = vadd.f32 %v2083, %v2053
      %v2085 = vadd.f32 %v2084, %v2054
      %v2086 = vadd.f32 %v2085, %v2055
      %v2087 = vrot.slane %v2086, 4
      %v2088 = vadd.f32 %v2086, %v2087
      %v2089 = vrot.slane %v2088, 2
      %v2090 = vadd.f32 %v2088, %v2089
      %v2091 = vrot.slane %v2090, 1
      %v2092 = vadd.f32 %v2090, %v2091
      %2093 = vst [vmem:[%s252] sm:$0x1] %v2092
      %v2094 = vmul.f32 %v2040, %v2040
      %v2095 = vmul.f32 %v2041, %v2041
      %v2096 = vmul.f32 %v2042, %v2042
      %v2097 = vmul.f32 %v2043, %v2043
      %v2098 = vmul.f32 %v2044, %v2044
      %v2099 = vmul.f32 %v2045, %v2045
      %v2100 = vmul.f32 %v2046, %v2046
      %v2101 = vmul.f32 %v2047, %v2047
      %v2102 = vmul.f32 %v2048, %v2048
      %v2103 = vmul.f32 %v2049, %v2049
      %v2104 = vmul.f32 %v2050, %v2050
      %v2105 = vmul.f32 %v2051, %v2051
      %v2106 = vmul.f32 %v2052, %v2052
      %v2107 = vmul.f32 %v2053, %v2053
      %v2108 = vmul.f32 %v2054, %v2054
      %v2109 = vmul.f32 %v2055, %v2055
      %v2110 = vadd.f32 %v2094, %v2095
      %v2111 = vadd.f32 %v2110, %v2096
      %v2112 = vadd.f32 %v2111, %v2097
      %v2113 = vadd.f32 %v2112, %v2098
      %v2114 = vadd.f32 %v2113, %v2099
      %v2115 = vadd.f32 %v2114, %v2100
      %v2116 = vadd.f32 %v2115, %v2101
      %v2117 = vadd.f32 %v2116, %v2102
      %v2118 = vadd.f32 %v2117, %v2103
      %v2119 = vadd.f32 %v2118, %v2104
      %v2120 = vadd.f32 %v2119, %v2105
      %v2121 = vadd.f32 %v2120, %v2106
      %v2122 = vadd.f32 %v2121, %v2107
      %v2123 = vadd.f32 %v2122, %v2108
      %v2124 = vadd.f32 %v2123, %v2109
      %v2125 = vrot.slane %v2124, 4
      %v2126 = vadd.f32 %v2124, %v2125
      %v2127 = vrot.slane %v2126, 2
      %v2128 = vadd.f32 %v2126, %v2127
      %v2129 = vrot.slane %v2128, 1
      %v2130 = vadd.f32 %v2128, %v2129
      %2131 = vst [vmem:[%s259] sm:$0x1] %v2130
      %s2132 = smul.u32 8, %s21
      %p2133 = scmp.lt.s32.totalorder %s20, 1
      %s2134 = scalar_select %p2133, %s20, 1
      %p2135 = scmp.lt.s32.totalorder %s2132, 15
      %s2136 = scalar_select %p2135, %s2132, 15
      %s2137 = smul.addr %s2136, 2
      %s2138 = smul.addr %s2134, 32
      %s2139 = sadd.s32 %s2137, %s2138
      %s2140 = smul.addr %s2139, 8
      %s2141 = scalar_lea.vmem %s2, %s2140
      %p2142 = scmp.lt.s32.totalorder %s20, 1
      %s2143 = scalar_select %p2142, %s20, 1
      %p2144 = scmp.lt.s32.totalorder %s21, 1
      %s2145 = scalar_select %p2144, %s21, 1
      %s2146 = smul.addr %s2143, 2
      %s2147 = sadd.s32 %s2145, %s2146
      %s2148 = scalar_lea.vmem %s3, %s2147
      %p2149 = scmp.lt.s32.totalorder %s20, 1
      %s2150 = scalar_select %p2149, %s20, 1
      %p2151 = scmp.lt.s32.totalorder %s21, 1
      %s2152 = scalar_select %p2151, %s21, 1
      %s2153 = smul.addr %s2150, 2
      %s2154 = sadd.s32 %s2152, %s2153
      %s2155 = scalar_lea.vmem %s4, %s2154
      // Predicated region
      $region29: #{double_conv.4} parent=27 // pred_check
        %p2156 = pneg %p95
      $region30: #{double_conv.4} parent=27 // pred_check_branch
        %2158 = sbr.rel (%p2156) target = $region32
      $region31: #{double_conv.4} parent=27 // pred_region
        %s2159 = smul.u32 8, %s21
      $region32: #{double_conv.4} parent=27 // pred_fallthru
        _
      // Predicated region
      $region33: #{double_conv.4} parent=27 // pred_check
        %p2160 = pneg %p123
      $region34: #{double_conv.4} parent=27 // pred_check_branch
        %2162 = sbr.rel (%p2160) target = $region36
      $region35: #{double_conv.4} parent=27 // pred_region
        _
      $region36: #{double_conv.4} parent=27 // pred_fallthru
        _
      // Predicated region
      $region37: #{double_conv.4} parent=27 // pred_check
        %p2163 = pneg %p151
      $region38: #{double_conv.4} parent=27 // pred_check_branch
        %2165 = sbr.rel (%p2163) target = $region40
      $region39: #{double_conv.4} parent=27 // pred_region
        _
      $region40: #{double_conv.4} parent=27 // pred_fallthru
        _
    $region28: #{double_conv.4} parent=5 // pred_fallthru
      _
    %p2166 = scmp.le.s32.totalorder 2, %s11
    // Predicated region
    $region41: #{double_conv.4} parent=5 // pred_check
      %p2167 = pneg %p2166
    $region42: #{double_conv.4} parent=5 // pred_check_branch
      %2169 = sbr.rel (%p2167) target = $region44
    $region43: #{double_conv.4} parent=5 // pred_region
      %s2170 = ssub.s32 %s11, 2
      // Predicated region
      $region45: #{double_conv.4} parent=43 // pred_check
        %p2171 = pneg %p101
      $region46: #{double_conv.4} parent=43 // pred_check_branch
        %2173 = sbr.rel (%p2171) target = $region48
      $region47: #{double_conv.4} parent=43 // pred_region
        %s2174 = smul.u32 8, %s23
        %p2175 = scmp.lt.s32.totalorder %s22, 1
        %s2176 = scalar_select %p2175, %s22, 1
        %p2177 = scmp.lt.s32.totalorder %s2174, 15
        %s2178 = scalar_select %p2177, %s2174, 15
        %s2179 = smul.addr %s2178, 2
        %s2180 = smul.addr %s2176, 32
        %s2181 = sadd.s32 %s2179, %s2180
        %s2182 = smul.addr %s2181, 8
        %s2183 = scalar_lea.vmem %s2, %s2182
      $region48: #{double_conv.4} parent=43 // pred_fallthru
        _
      // Predicated region
      $region49: #{double_conv.4} parent=43 // pred_check
        %p2184 = pneg %p129
      $region50: #{double_conv.4} parent=43 // pred_check_branch
        %2186 = sbr.rel (%p2184) target = $region52
      $region51: #{double_conv.4} parent=43 // pred_region
        %p2187 = scmp.lt.s32.totalorder %s22, 1
        %s2188 = scalar_select %p2187, %s22, 1
        %p2189 = scmp.lt.s32.totalorder %s23, 1
        %s2190 = scalar_select %p2189, %s23, 1
        %s2191 = smul.addr %s2188, 2
        %s2192 = sadd.s32 %s2190, %s2191
        %s2193 = scalar_lea.vmem %s3, %s2192
      $region52: #{double_conv.4} parent=43 // pred_fallthru
        _
      // Predicated region
      $region53: #{double_conv.4} parent=43 // pred_check
        %p2194 = pneg %p157
      $region54: #{double_conv.4} parent=43 // pred_check_branch
        %2196 = sbr.rel (%p2194) target = $region56
      $region55: #{double_conv.4} parent=43 // pred_region
        %p2197 = scmp.lt.s32.totalorder %s22, 1
        %s2198 = scalar_select %p2197, %s22, 1
        %p2199 = scmp.lt.s32.totalorder %s23, 1
        %s2200 = scalar_select %p2199, %s23, 1
        %s2201 = smul.addr %s2198, 2
        %s2202 = sadd.s32 %s2200, %s2201
        %s2203 = scalar_lea.vmem %s4, %s2202
      $region56: #{double_conv.4} parent=43 // pred_fallthru
        _
    $region44: #{double_conv.4} parent=5 // pred_fallthru
      _
  $region6: #{double_conv.4} parent=0 // loop_footer
    %s15 = sadd.s32 1, %s11
  $region7: #{double_conv.4} parent=0 // loop_footer_branch
    %10 = sbr.rel target = $region3
  $region8: #{double_conv.4} parent=0 // loop_exit
    _

// kernel: double_conv.6
$region0: #{double_conv.6}
  #allocation0 [shape = 'u32[]', space=smem, size = 0x4, offset = 0x4, fixed_abs, tag = 'smem constant byte address 0x4 - core index']
  #allocation1 [shape = 'u32[144,128]{1,0:T(1,128)}', space=vmem, size = 0x12000, scoped, tag = 'internal scratch']
  %s0 = inlined_call_operand.vmem [shape: f32[2,18,18,128], index: 0, kind: input, shape index: {}]
  %s1 = inlined_call_operand.vmem [shape: f32[9,8,128], index: 1, kind: input, shape index: {}]
  %s2 = inlined_call_operand.vmem [shape: f32[2,16,16,128], index: 2, kind: output, shape index: {0}]
  %s3 = inlined_call_operand.vmem [shape: f32[2,2,1,128], index: 3, kind: output, shape index: {1}]
  %s4 = inlined_call_operand.vmem [shape: f32[2,2,1,128], index: 4, kind: output, shape index: {2}]
  %5 = xla_tuple %s2, %s3, %s4
  %s6 = sld [smem:[#allocation0]]
  $region57: #{double_conv.6} parent=0
    _
  %s8 = ssub.s32 1, %s6
  %s9 = scalar_select 0, %s8, %s6
  loop: start=0, step=1, limit=6
  $region2: #{double_conv.6} parent=0 // loop_pre_header
    _
  $region3: #{double_conv.6} parent=0 // loop_header
    %s11 = sphi 0, %s15
    %p12 = scmp.ge.s32.totalorder %s11, 6
    %s18 = sphi 0, %s30
    %s19 = sphi 0, %s26
    %s20 = sphi 0, %s18
    %s21 = sphi 0, %s19
    %s22 = sphi 0, %s20
    %s23 = sphi 0, %s21
    %s33 = sphi 0, %s35
    %s36 = sphi 0, %s33
    %s37 = sphi 0, %s36
    %s53 = sphi 0, %s37
    %s57 = sphi 0, %s57
    %s59 = sphi 0, %s57
    %s60 = sphi 0, %s59
    %s74 = sphi 0, %s60
    %s82 = sphi 0, %s84
    %s85 = sphi 0, %s82
    %s86 = sphi 0, %s85
    %s102 = sphi 0, %s86
    %s110 = sphi 0, %s112
    %s113 = sphi 0, %s110
    %s114 = sphi 0, %s113
    %s130 = sphi 0, %s114
    %s138 = sphi 0, %s140
    %s141 = sphi 0, %s138
    %s142 = sphi 0, %s141
    %s158 = sphi 0, %s142
  $region4: #{double_conv.6} parent=0 // loop_header_branch
    %14 = sbr.rel (%p12) target = $region8
  $region5: #{double_conv.6} parent=0 // loop_body
    %s16 = ssub.s32 %s11, 1
    %s17 = ssub.s32 %s11, 2
    %s24 = sadd.s32 1, %s19
    %p25 = scmp.ge.s32.totalorder %s24, 2
    %s26 = scalar_select %p25, 0, %s24
    %s27 = sadd.s32 1, %s18
    %s28 = scalar_select %p25, %s27, %s18
    %p29 = scmp.ge.s32.totalorder %s28, 2
    %s30 = scalar_select %p29, 0, %s28
    %s31 = ssub.s32 %s18, %s30
    %p32 = scmp.eq.s32.totalorder %s31, 0
    %s34 = sadd.s32 %s33, 1
    %s35 = scalar_select %p32, %s33, %s34
    %p38 = pneg %p32
    %p39 = scmp.eq.s32.totalorder %s11, 3
    %p40 = por %p38, %p39
    %p41 = scmp.ne.s32.totalorder %s33, %s36
    %p42 = scmp.eq.s32.totalorder %s11, 0
    %p43 = por %p41, %p42
    %p44 = scmp.ne.s32.totalorder %s33, %s36
    %p45 = scmp.eq.s32.totalorder %s16, 3
    %p46 = por %p44, %p45
    %p47 = scmp.ne.s32.totalorder %s36, %s37
    %p48 = scmp.eq.s32.totalorder %s16, 0
    %p49 = por %p47, %p48
    %p50 = scmp.ne.s32.totalorder %s36, %s37
    %p51 = scmp.eq.s32.totalorder %s17, 3
    %p52 = por %p50, %p51
    %p54 = scmp.ne.s32.totalorder %s37, %s53
    %p55 = scmp.eq.s32.totalorder %s17, 0
    %p56 = por %p54, %p55
    %s58 = sadd.s32 %s57, 1
    %p61 = scmp.eq.s32.totalorder %s11, 3
    %p62 = scmp.ne.s32.totalorder %s57, %s59
    %p63 = scmp.eq.s32.totalorder %s11, 0
    %p64 = por %p62, %p63
    %p65 = scmp.ne.s32.totalorder %s57, %s59
    %p66 = scmp.eq.s32.totalorder %s16, 3
    %p67 = por %p65, %p66
    %p68 = scmp.ne.s32.totalorder %s59, %s60
    %p69 = scmp.eq.s32.totalorder %s16, 0
    %p70 = por %p68, %p69
    %p71 = scmp.ne.s32.totalorder %s59, %s60
    %p72 = scmp.eq.s32.totalorder %s17, 3
    %p73 = por %p71, %p72
    %p75 = scmp.ne.s32.totalorder %s60, %s74
    %p76 = scmp.eq.s32.totalorder %s17, 0
    %p77 = por %p75, %p76
    %s78 = ssub.s32 %s18, %s30
    %s79 = ssub.s32 %s19, %s26
    %s80 = sor.u32 %s78, %s79
    %p81 = scmp.eq.s32.totalorder %s80, 0
    %s83 = sadd.s32 %s82, 1
    %s84 = scalar_select %p81, %s82, %s83
    %p87 = pneg %p81
    %p88 = scmp.eq.s32.totalorder %s11, 3
    %p89 = por %p87, %p88
    %p90 = scmp.ne.s32.totalorder %s82, %s85
    %p91 = scmp.eq.s32.totalorder %s11, 0
    %p92 = por %p90, %p91
    %p93 = scmp.ne.s32.totalorder %s82, %s85
    %p94 = scmp.eq.s32.totalorder %s16, 3
    %p95 = por %p93, %p94
    %p96 = scmp.ne.s32.totalorder %s85, %s86
    %p97 = scmp.eq.s32.totalorder %s16, 0
    %p98 = por %p96, %p97
    %p99 = scmp.ne.s32.totalorder %s85, %s86
    %p100 = scmp.eq.s32.totalorder %s17, 3
    %p101 = por %p99, %p100
    %p103 = scmp.ne.s32.totalorder %s86, %s102
    %p104 = scmp.eq.s32.totalorder %s17, 0
    %p105 = por %p103, %p104
    %s106 = ssub.s32 %s18, %s30
    %s107 = ssub.s32 %s19, %s26
    %s108 = sor.u32 %s106, %s107
    %p109 = scmp.eq.s32.totalorder %s108, 0
    %s111 = sadd.s32 %s110, 1
    %s112 = scalar_select %p109, %s110, %s111
    %p115 = pneg %p109
    %p116 = scmp.eq.s32.totalorder %s11, 3
    %p117 = por %p115, %p116
    %p118 = scmp.ne.s32.totalorder %s110, %s113
    %p119 = scmp.eq.s32.totalorder %s11, 0
    %p120 = por %p118, %p119
    %p121 = scmp.ne.s32.totalorder %s110, %s113
    %p122 = scmp.eq.s32.totalorder %s16, 3
    %p123 = por %p121, %p122
    %p124 = scmp.ne.s32.totalorder %s113, %s114
    %p125 = scmp.eq.s32.totalorder %s16, 0
    %p126 = por %p124, %p125
    %p127 = scmp.ne.s32.totalorder %s113, %s114
    %p128 = scmp.eq.s32.totalorder %s17, 3
    %p129 = por %p127, %p128
    %p131 = scmp.ne.s32.totalorder %s114, %s130
    %p132 = scmp.eq.s32.totalorder %s17, 0
    %p133 = por %p131, %p132
    %s134 = ssub.s32 %s18, %s30
    %s135 = ssub.s32 %s19, %s26
    %s136 = sor.u32 %s134, %s135
    %p137 = scmp.eq.s32.totalorder %s136, 0
    %s139 = sadd.s32 %s138, 1
    %s140 = scalar_select %p137, %s138, %s139
    %p143 = pneg %p137
    %p144 = scmp.eq.s32.totalorder %s11, 3
    %p145 = por %p143, %p144
    %p146 = scmp.ne.s32.totalorder %s138, %s141
    %p147 = scmp.eq.s32.totalorder %s11, 0
    %p148 = por %p146, %p147
    %p149 = scmp.ne.s32.totalorder %s138, %s141
    %p150 = scmp.eq.s32.totalorder %s16, 3
    %p151 = por %p149, %p150
    %p152 = scmp.ne.s32.totalorder %s141, %s142
    %p153 = scmp.eq.s32.totalorder %s16, 0
    %p154 = por %p152, %p153
    %p155 = scmp.ne.s32.totalorder %s141, %s142
    %p156 = scmp.eq.s32.totalorder %s17, 3
    %p157 = por %p155, %p156
    %p159 = scmp.ne.s32.totalorder %s142, %s158
    %p160 = scmp.eq.s32.totalorder %s17, 0
    %p161 = por %p159, %p160
    %p162 = scmp.le.s32.totalorder 1, %s11
    %p163 = scmp.lt.s32.totalorder %s11, 5
    %p164 = pnand %p162, %p163
    %p165 = pneg %p164
    // Predicated region
    $region9: #{double_conv.6} parent=5 // pred_check
      _
    $region10: #{double_conv.6} parent=5 // pred_check_branch
      %167 = sbr.rel (%p164) target = $region12
    $region11: #{double_conv.6} parent=5 // pred_region
      %s168 = ssub.s32 %s11, 1
      // Predicated region
      $region13: #{double_conv.6} parent=11 // pred_check
        %p169 = pneg %p70
      $region14: #{double_conv.6} parent=11 // pred_check_branch
        %171 = sbr.rel (%p169) target = $region16
      $region15: #{double_conv.6} parent=11 // pred_region
        _
      $region16: #{double_conv.6} parent=11 // pred_fallthru
        _
    $region12: #{double_conv.6} parent=5 // pred_fallthru
      _
    %p172 = scmp.lt.s32.totalorder %s11, 4
    // Predicated region
    $region17: #{double_conv.6} parent=5 // pred_check
      %p173 = pneg %p172
    $region18: #{double_conv.6} parent=5 // pred_check_branch
      %175 = sbr.rel (%p173) target = $region20
    $region19: #{double_conv.6} parent=5 // pred_region
      // Predicated region
      $region21: #{double_conv.6} parent=19 // pred_check
        %p176 = pneg %p43
      $region22: #{double_conv.6} parent=19 // pred_check_branch
        %178 = sbr.rel (%p176) target = $region24
      $region23: #{double_conv.6} parent=19 // pred_region
        %p179 = scmp.lt.s32.totalorder %s18, 1
        %s180 = scalar_select %p179, %s18, 1
        %s181 = smul.addr %s180, 54
        %s182 = smul.addr %s181, 8
        %s183 = scalar_lea.vmem %s0, %s182
      $region24: #{double_conv.6} parent=19 // pred_fallthru
        _
    $region20: #{double_conv.6} parent=5 // pred_fallthru
      _
    %p184 = scmp.le.s32.totalorder 1, %s11
    %p185 = scmp.lt.s32.totalorder %s11, 5
    %p186 = pnand %p184, %p185
    %p187 = pneg %p186
    // Predicated region
    $region25: #{double_conv.6} parent=5 // pred_check
      _
    $region26: #{double_conv.6} parent=5 // pred_check_branch
      %189 = sbr.rel (%p186) target = $region28
    $region27: #{double_conv.6} parent=5 // pred_region
      %s190 = ssub.s32 %s11, 1
      %p191 = scmp.lt.s32.totalorder %s20, 1
      %s192 = scalar_select %p191, %s20, 1
      %s193 = smul.addr %s192, 54
      %s194 = smul.addr %s193, 8
      %s195 = scalar_lea.vmem %s0, %s194
      %p196 = pneg %p49
      %p197 = pneg %p46
      %p198 = pneg %p70
      %p199 = pneg %p67
      %p200 = pneg %p98
      %p201 = pneg %p95
      %s202 = smul.u32 8, %s21
      %p203 = scmp.lt.s32.totalorder %s20, 1
      %s204 = scalar_select %p203, %s20, 1
      %p205 = scmp.lt.s32.totalorder %s202, 15
      %s206 = scalar_select %p205, %s202, 15
      %s207 = smul.addr %s206, 2
      %s208 = smul.addr %s204, 32
      %s209 = sadd.s32 %s207, %s208
      %s210 = smul.addr %s209, 8
      %s211 = scalar_lea.vmem %s2, %s210
      %p212 = pneg %p126
      %p213 = pneg %p123
      %p214 = scmp.lt.s32.totalorder %s20, 1
      %s215 = scalar_select %p214, %s20, 1
      %p216 = scmp.lt.s32.totalorder %s21, 1
      %s217 = scalar_select %p216, %s21, 1
      %s218 = smul.addr %s215, 2
      %s219 = sadd.s32 %s217, %s218
      %s220 = scalar_lea.vmem %s3, %s219
      %p221 = pneg %p154
      %p222 = pneg %p151
      %p223 = scmp.lt.s32.totalorder %s20, 1
      %s224 = scalar_select %p223, %s20, 1
      %p225 = scmp.lt.s32.totalorder %s21, 1
      %s226 = scalar_select %p225, %s21, 1
      %s227 = smul.addr %s224, 2
      %s228 = sadd.s32 %s226, %s227
      %s229 = scalar_lea.vmem %s4, %s228
      %p230 = scmp.lt.s32.totalorder %s20, 1
      %s231 = scalar_select %p230, %s20, 1
      %s232 = smul.addr %s231, 54
      %s233 = smul.addr %s232, 8
      %s234 = scalar_lea.vmem %s0, %s233
      %s235 = smul.u32 8, %s21
      %p236 = scmp.lt.s32.totalorder %s20, 1
      %s237 = scalar_select %p236, %s20, 1
      %p238 = scmp.lt.s32.totalorder %s235, 15
      %s239 = scalar_select %p238, %s235, 15
      %s240 = smul.addr %s239, 2
      %s241 = smul.addr %s237, 32
      %s242 = sadd.s32 %s240, %s241
      %s243 = smul.addr %s242, 8
      %s244 = scalar_lea.vmem %s2, %s243
      %s245 = smul.u32 8, %s21
      %p246 = scmp.lt.s32.totalorder %s20, 1
      %s247 = scalar_select %p246, %s20, 1
      %p248 = scmp.lt.s32.totalorder %s21, 1
      %s249 = scalar_select %p248, %s21, 1
      %s250 = smul.addr %s247, 2
      %s251 = sadd.s32 %s249, %s250
      %s252 = scalar_lea.vmem %s3, %s251
      %p253 = scmp.lt.s32.totalorder %s20, 1
      %s254 = scalar_select %p253, %s20, 1
      %p255 = scmp.lt.s32.totalorder %s21, 1
      %s256 = scalar_select %p255, %s21, 1
      %s257 = smul.addr %s254, 2
      %s258 = sadd.s32 %s256, %s257
      %s259 = scalar_lea.vmem %s4, %s258
      %s260 = smul.u32 %s21, 8
      %s261 = smul.u32 %s260, 24
      %s262 = scalar_lea.vmem %s234, %s261
      %v263 = vld [vmem:[%s262] sm:$0xff]
      %v264 = vld [vmem:[%s262 + $0x8] sm:$0xff]
      %v265 = vld [vmem:[%s262 + $0x10] sm:$0x3]
      %v266 = vld [vmem:[%s262 + $0x18] sm:$0xff]
      %v267 = vld [vmem:[%s262 + $0x20] sm:$0xff]
      %v268 = vld [vmem:[%s262 + $0x28] sm:$0x3]
      %v269 = vld [vmem:[%s262 + $0x30] sm:$0xff]
      %v270 = vld [vmem:[%s262 + $0x38] sm:$0xff]
      %v271 = vld [vmem:[%s262 + $0x40] sm:$0x3]
      %v272 = vld [vmem:[%s262 + $0x48] sm:$0xff]
      %v273 = vld [vmem:[%s262 + $0x50] sm:$0xff]
      %v274 = vld [vmem:[%s262 + $0x58] sm:$0x3]
      %v275 = vld [vmem:[%s262 + $0x60] sm:$0xff]
      %v276 = vld [vmem:[%s262 + $0x68] sm:$0xff]
      %v277 = vld [vmem:[%s262 + $0x70] sm:$0x3]
      %v278 = vld [vmem:[%s262 + $0x78] sm:$0xff]
      %v279 = vld [vmem:[%s262 + $0x80] sm:$0xff]
      %v280 = vld [vmem:[%s262 + $0x88] sm:$0x3]
      %v281 = vld [vmem:[%s262 + $0x90] sm:$0xff]
      %v282 = vld [vmem:[%s262 + $0x98] sm:$0xff]
      %v283 = vld [vmem:[%s262 + $0xa0] sm:$0x3]
      %v284 = vld [vmem:[%s262 + $0xa8] sm:$0xff]
      %v285 = vld [vmem:[%s262 + $0xb0] sm:$0xff]
      %v286 = vld [vmem:[%s262 + $0xb8] sm:$0x3]
      %v287 = vld [vmem:[%s262 + $0xc0] sm:$0xff]
      %v288 = vld [vmem:[%s262 + $0xc8] sm:$0xff]
      %v289 = vld [vmem:[%s262 + $0xd0] sm:$0x3]
      %v290 = vld [vmem:[%s262 + $0xd8] sm:$0xff]
      %v291 = vld [vmem:[%s262 + $0xe0] sm:$0xff]
      %v292 = vld [vmem:[%s262 + $0xe8] sm:$0x3]
      %v293 = vld [vmem:[%s1] sm:$0xff]
      %vm318 = vcmask 1046528
      %v319 = vrot.slane %v263, 1
      %v320 = vrot.slane %v264, 1
      %v321 = vsel %vm318, %v319, %v320
      %v322 = vrot.slane %v265, 1
      %v323 = vsel %vm318, %v320, %v322
      %v324 = vrot.slane %v266, 1
      %v325 = vrot.slane %v267, 1
      %v326 = vsel %vm318, %v324, %v325
      %v327 = vrot.slane %v268, 1
      %v328 = vsel %vm318, %v325, %v327
      %v329 = vrot.slane %v269, 1
      %v330 = vrot.slane %v270, 1
      %v331 = vsel %vm318, %v329, %v330
      %v332 = vrot.slane %v271, 1
      %v333 = vsel %vm318, %v330, %v332
      %v334 = vrot.slane %v272, 1
      %v335 = vrot.slane %v273, 1
      %v336 = vsel %vm318, %v334, %v335
      %v337 = vrot.slane %v274, 1
      %v338 = vsel %vm318, %v335, %v337
      %v339 = vrot.slane %v275, 1
      %v340 = vrot.slane %v276, 1
      %v341 = vsel %vm318, %v339, %v340
      %v342 = vrot.slane %v277, 1
      %v343 = vsel %vm318, %v340, %v342
      %v344 = vrot.slane %v278, 1
      %v345 = vrot.slane %v279, 1
      %v346 = vsel %vm318, %v344, %v345
      %v347 = vrot.slane %v280, 1
      %v348 = vsel %vm318, %v345, %v347
      %v349 = vrot.slane %v281, 1
      %v350 = vrot.slane %v282, 1
      %v351 = vsel %vm318, %v349, %v350
      %v352 = vrot.slane %v283, 1
      %v353 = vsel %vm318, %v350, %v352
      %v354 = vrot.slane %v284, 1
      %v355 = vrot.slane %v285, 1
      %v356 = vsel %vm318, %v354, %v355
      %v357 = vrot.slane %v286, 1
      %v358 = vsel %vm318, %v355, %v357
      %s359 = scalar_lea.vmem %s1, 8
      %v360 = vld [vmem:[%s359] sm:$0xff]
      %vm361 = vcmask 64512
      %v362 = vsel %vm361, %v321, 0
      %v364 = vsel %vm361, %v323, 0
      %v366 = vsel %vm361, %v326, 0
      %v368 = vsel %vm361, %v328, 0
      %v370 = vsel %vm361, %v331, 0
      %v372 = vsel %vm361, %v333, 0
      %v374 = vsel %vm361, %v336, 0
      %v376 = vsel %vm361, %v338, 0
      %v378 = vsel %vm361, %v341, 0
      %v380 = vsel %vm361, %v343, 0
      %v382 = vsel %vm361, %v346, 0
      %v384 = vsel %vm361, %v348, 0
      %v386 = vsel %vm361, %v351, 0
      %v388 = vsel %vm361, %v353, 0
      %v390 = vsel %vm361, %v356, 0
      %v392 = vsel %vm361, %v358, 0
      %394 = vmatprep.subr.mxu0 0.0
      %395 = vmatpush1.msra.mxu0 %v360
      %396 = vmatprep.subr.mxu0 0.0
      %397 = vmatpush1.msra.mxu0 0.0
      %398 = vmatprep.subr.mxu0 0.0
      %399 = vmatpush1.msra.mxu0 0.0
      %400 = vmatprep.subr.mxu0 0.0
      %401 = vmatpush1.msra.mxu0 0.0
      %402 = vmatprep.subr.mxu0 0.0
      %403 = vmatpush1.msra.mxu0 0.0
      %404 = vmatprep.subr.mxu0 0.0
      %405 = vmatpush1.msra.mxu0 0.0
      %406 = vmatprep.subr.mxu0 0.0
      %407 = vmatpush1.msra.mxu0 0.0
      %408 = vmatprep.subr.mxu0 0.0
      %409 = vmatpush1.msra.mxu0 0.0
      %410 = vmatprep.subr.mxu0 0.0
      %411 = vmatpush1.msra.mxu0 0.0
      %412 = vmatprep.subr.mxu0 0.0
      %413 = vmatpush1.msra.mxu0 0.0
      %414 = vmatprep.subr.mxu0 0.0
      %415 = vmatpush1.msra.mxu0 0.0
      %416 = vmatprep.subr.mxu0 0.0
      %417 = vmatpush1.msra.mxu0 0.0
      %418 = vmatprep.subr.mxu0 0.0
      %419 = vmatpush1.msra.mxu0 0.0
      %420 = vmatprep.subr.mxu0 0.0
      %421 = vmatpush1.msra.mxu0 0.0
      %422 = vmatprep.subr.mxu0 0.0
      %423 = vmatpush1.msra.mxu0 0.0
      %424 = vmatprep.subr.mxu0 0.0
      %425 = vmatpush1.msra.mxu0 0.0
      %426 = vmatprep.subr.mxu0 0.0
      %427 = vmatpush1.msra.mxu0 0.0
      %428 = vmatprep.subr.mxu0 0.0
      %429 = vmatpush1.msra.mxu0 0.0
      %430 = vmatprep.subr.mxu0 0.0
      %431 = vmatpush1.msra.mxu0 0.0
      %432 = vmatprep.subr.mxu0 0.0
      %433 = vmatpush1.msra.mxu0 0.0
      %434 = vmatprep.subr.mxu0 0.0
      %435 = vmatpush1.msra.mxu0 0.0
      %436 = vmatprep.subr.mxu0 0.0
      %437 = vmatpush1.msra.mxu0 0.0
      %438 = vmatprep.subr.mxu0 0.0
      %439 = vmatpush1.msra.mxu0 0.0
      %440 = vmatprep.subr.mxu0 0.0
      %441 = vmatpush1.msra.mxu0 0.0
      %442 = vmatprep.subr.mxu0 0.0
      %443 = vmatpush1.msra.mxu0 0.0
      %444 = vmatprep.subr.mxu0 0.0
      %445 = vmatpush1.msra.mxu0 0.0
      %446 = vmatprep.subr.mxu0 0.0
      %447 = vmatpush1.msra.mxu0 0.0
      %448 = vmatprep.subr.mxu0 0.0
      %449 = vmatpush1.msra.mxu0 0.0
      %450 = vmatprep.subr.mxu0 0.0
      %451 = vmatpush1.msra.mxu0 0.0
      %452 = vmatprep.subr.mxu0 0.0
      %453 = vmatpush1.msra.mxu0 0.0
      %454 = vmatprep.subr.mxu0 0.0
      %455 = vmatpush1.msra.mxu0 0.0
      %456 = vmatprep.subr.mxu0 0.0
      %457 = vmatpush1.msra.mxu0 0.0
      %458 = vmatprep.mubr.f32.mxu0 0.0
      %459 = vmatmul.mubr.f32.gmra.mrb[0].mxu0 %v362
      %v460 = vpop.f32.mrb[0].mxu0
      %v461 = vadd.f32 0.0, %v460
      %v462 = vpop.f32.mrb[0].mxu0
      %463 = vmatprep.mubr.f32.mxu0 0.0
      %464 = vmatmul.mubr.f32.gmra.mrb[0].mxu0 %v364
      %v465 = vpop.f32.mrb[0].mxu0
      %v466 = vadd.f32 0.0, %v465
      %v467 = vpop.f32.mrb[0].mxu0
      %468 = vmatprep.mubr.f32.mxu0 0.0
      %469 = vmatmul.mubr.f32.gmra.mrb[0].mxu0 %v366
      %v470 = vpop.f32.mrb[0].mxu0
      %v471 = vadd.f32 0.0, %v470
      %v472 = vpop.f32.mrb[0].mxu0
      %473 = vmatprep.mubr.f32.mxu0 0.0
      %474 = vmatmul.mubr.f32.gmra.mrb[0].mxu0 %v368
      %v475 = vpop.f32.mrb[0].mxu0
      %v476 = vadd.f32 0.0, %v475
      %v477 = vpop.f32.mrb[0].mxu0
      %478 = vmatprep.mubr.f32.mxu0 0.0
      %479 = vmatmul.mubr.f32.gmra.mrb[0].mxu0 %v370
      %v480 = vpop.f32.mrb[0].mxu0
      %v481 = vadd.f32 0.0, %v480
      %v482 = vpop.f32.mrb[0].mxu0
      %483 = vmatprep.mubr.f32.mxu0 0.0
      %484 = vmatmul.mubr.f32.gmra.mrb[0].mxu0 %v372
      %v485 = vpop.f32.mrb[0].mxu0
      %v486 = vadd.f32 0.0, %v485
      %v487 = vpop.f32.mrb[0].mxu0
      %488 = vmatprep.mubr.f32.mxu0 0.0
      %489 = vmatmul.mubr.f32.gmra.mrb[0].mxu0 %v374
      %v490 = vpop.f32.mrb[0].mxu0
      %v491 = vadd.f32 0.0, %v490
      %v492 = vpop.f32.mrb[0].mxu0
      %493 = vmatprep.mubr.f32.mxu0 0.0
      %494 = vmatmul.mubr.f32.gmra.mrb[0].mxu0 %v376
      %v495 = vpop.f32.mrb[0].mxu0
      %v496 = vadd.f32 0.0, %v495
      %v497 = vpop.f32.mrb[0].mxu0
      %498 = vmatprep.mubr.f32.mxu0 0.0
      %499 = vmatmul.mubr.f32.gmra.mrb[0].mxu0 %v378
      %v500 = vpop.f32.mrb[0].mxu0
      %v501 = vadd.f32 0.0, %v500
      %v502 = vpop.f32.mrb[0].mxu0
      %503 = vmatprep.mubr.f32.mxu0 0.0
      %504 = vmatmul.mubr.f32.gmra.mrb[0].mxu0 %v380
      %v505 = vpop.f32.mrb[0].mxu0
      %v506 = vadd.f32 0.0, %v505
      %v507 = vpop.f32.mrb[0].mxu0
      %508 = vmatprep.mubr.f32.mxu0 0.0
      %509 = vmatmul.mubr.f32.gmra.mrb[0].mxu0 %v382
      %v510 = vpop.f32.mrb[0].mxu0
      %v511 = vadd.f32 0.0, %v510
      %v512 = vpop.f32.mrb[0].mxu0
      %513 = vmatprep.mubr.f32.mxu0 0.0
      %514 = vmatmul.mubr.f32.gmra.mrb[0].mxu0 %v384
      %v515 = vpop.f32.mrb[0].mxu0
      %v516 = vadd.f32 0.0, %v515
      %v517 = vpop.f32.mrb[0].mxu0
      %518 = vmatprep.mubr.f32.mxu0 0.0
      %519 = vmatmul.mubr.f32.gmra.mrb[0].mxu0 %v386
      %v520 = vpop.f32.mrb[0].mxu0
      %v521 = vadd.f32 0.0, %v520
      %v522 = vpop.f32.mrb[0].mxu0
      %523 = vmatprep.mubr.f32.mxu0 0.0
      %524 = vmatmul.mubr.f32.gmra.mrb[0].mxu0 %v388
      %v525 = vpop.f32.mrb[0].mxu0
      %v526 = vadd.f32 0.0, %v525
      %v527 = vpop.f32.mrb[0].mxu0
      %528 = vmatprep.mubr.f32.mxu0 0.0
      %529 = vmatmul.mubr.f32.gmra.mrb[0].mxu0 %v390
      %v530 = vpop.f32.mrb[0].mxu0
      %v531 = vadd.f32 0.0, %v530
      %v532 = vpop.f32.mrb[0].mxu0
      %533 = vmatprep.mubr.f32.mxu0 0.0
      %534 = vmatmul.mubr.f32.gmra.mrb[0].mxu0 %v392
      %v535 = vpop.f32.mrb[0].mxu0
      %v536 = vadd.f32 0.0, %v535
      %v537 = vpop.f32.mrb[0].mxu0
      %538 = vdwg.mxu0
      %v539 = vsel %vm361, %v263, 0
      %v541 = vsel %vm361, %v264, 0
      %v543 = vsel %vm361, %v266, 0
      %v545 = vsel %vm361, %v267, 0
      %v547 = vsel %vm361, %v269, 0
      %v549 = vsel %vm361, %v270, 0
      %v551 = vsel %vm361, %v272, 0
      %v553 = vsel %vm361, %v273, 0
      %v555 = vsel %vm361, %v275, 0
      %v557 = vsel %vm361, %v276, 0
      %v559 = vsel %vm361, %v278, 0
      %v561 = vsel %vm361, %v279, 0
      %v563 = vsel %vm361, %v281, 0
      %v565 = vsel %vm361, %v282, 0
      %v567 = vsel %vm361, %v284, 0
      %v569 = vsel %vm361, %v285, 0
      %571 = vmatprep.subr.mxu0 0.0
      %572 = vmatpush1.msra.mxu0 %v293
      %573 = vmatprep.subr.mxu0 0.0
      %574 = vmatpush1.msra.mxu0 0.0
      %575 = vmatprep.subr.mxu0 0.0
      %576 = vmatpush1.msra.mxu0 0.0
      %577 = vmatprep.subr.mxu0 0.0
      %578 = vmatpush1.msra.mxu0 0.0
      %579 = vmatprep.subr.mxu0 0.0
      %580 = vmatpush1.msra.mxu0 0.0
      %581 = vmatprep.subr.mxu0 0.0
      %582 = vmatpush1.msra.mxu0 0.0
      %583 = vmatprep.subr.mxu0 0.0
      %584 = vmatpush1.msra.mxu0 0.0
      %585 = vmatprep.subr.mxu0 0.0
      %586 = vmatpush1.msra.mxu0 0.0
      %587 = vmatprep.subr.mxu0 0.0
      %588 = vmatpush1.msra.mxu0 0.0
      %589 = vmatprep.subr.mxu0 0.0
      %590 = vmatpush1.msra.mxu0 0.0
      %591 = vmatprep.subr.mxu0 0.0
      %592 = vmatpush1.msra.mxu0 0.0
      %593 = vmatprep.subr.mxu0 0.0
      %594 = vmatpush1.msra.mxu0 0.0
      %595 = vmatprep.subr.mxu0 0.0
      %596 = vmatpush1.msra.mxu0 0.0
      %597 = vmatprep.subr.mxu0 0.0
      %598 = vmatpush1.msra.mxu0 0.0
      %599 = vmatprep.subr.mxu0 0.0
      %600 = vmatpush1.msra.mxu0 0.0
      %601 = vmatprep.subr.mxu0 0.0
      %602 = vmatpush1.msra.mxu0 0.0
      %603 = vmatprep.subr.mxu0 0.0
      %604 = vmatpush1.msra.mxu0 0.0
      %605 = vmatprep.subr.mxu0 0.0
      %606 = vmatpush1.msra.mxu0 0.0
      %607 = vmatprep.subr.mxu0 0.0
      %608 = vmatpush1.msra.mxu0 0.0
      %609 = vmatprep.subr.mxu0 0.0
      %610 = vmatpush1.msra.mxu0 0.0
      %611 = vmatprep.subr.mxu0 0.0
      %612 = vmatpush1.msra.mxu0 0.0
      %613 = vmatprep.subr.mxu0 0.0
      %614 = vmatpush1.msra.mxu0 0.0
      %615 = vmatprep.subr.mxu0 0.0
      %616 = vmatpush1.msra.mxu0 0.0
      %617 = vmatprep.subr.mxu0 0.0
      %618 = vmatpush1.msra.mxu0 0.0
      %619 = vmatprep.subr.mxu0 0.0
      %620 = vmatpush1.msra.mxu0 0.0
      %621 = vmatprep.subr.mxu0 0.0
      %622 = vmatpush1.msra.mxu0 0.0
      %623 = vmatprep.subr.mxu0 0.0
      %624 = vmatpush1.msra.mxu0 0.0
      %625 = vmatprep.subr.mxu0 0.0
      %626 = vmatpush1.msra.mxu0 0.0
      %627 = vmatprep.subr.mxu0 0.0
      %628 = vmatpush1.msra.mxu0 0.0
      %629 = vmatprep.subr.mxu0 0.0
      %630 = vmatpush1.msra.mxu0 0.0
      %631 = vmatprep.subr.mxu0 0.0
      %632 = vmatpush1.msra.mxu0 0.0
      %633 = vmatprep.subr.mxu0 0.0
      %634 = vmatpush1.msra.mxu0 0.0
      %635 = vmatprep.mubr.f32.mxu0 0.0
      %636 = vmatmul.mubr.f32.gmra.mrb[0].mxu0 %v539
      %v637 = vpop.f32.mrb[0].mxu0
      %v638 = vadd.f32 %v461, %v637
      %v639 = vpop.f32.mrb[0].mxu0
      %640 = vmatprep.mubr.f32.mxu0 0.0
      %641 = vmatmul.mubr.f32.gmra.mrb[0].mxu0 %v541
      %v642 = vpop.f32.mrb[0].mxu0
      %v643 = vadd.f32 %v466, %v642
      %v644 = vpop.f32.mrb[0].mxu0
      %645 = vmatprep.mubr.f32.mxu0 0.0
      %646 = vmatmul.mubr.f32.gmra.mrb[0].mxu0 %v543
      %v647 = vpop.f32.mrb[0].mxu0
      %v648 = vadd.f32 %v471, %v647
      %v649 = vpop.f32.mrb[0].mxu0
      %650 = vmatprep.mubr.f32.mxu0 0.0
      %651 = vmatmul.mubr.f32.gmra.mrb[0].mxu0 %v545
      %v652 = vpop.f32.mrb[0].mxu0
      %v653 = vadd.f32 %v476, %v652
      %v654 = vpop.f32.mrb[0].mxu0
      %655 = vmatprep.mubr.f32.mxu0 0.0
      %656 = vmatmul.mubr.f32.gmra.mrb[0].mxu0 %v547
      %v657 = vpop.f32.mrb[0].mxu0
      %v658 = vadd.f32 %v481, %v657
      %v659 = vpop.f32.mrb[0].mxu0
      %660 = vmatprep.mubr.f32.mxu0 0.0
      %661 = vmatmul.mubr.f32.gmra.mrb[0].mxu0 %v549
      %v662 = vpop.f32.mrb[0].mxu0
      %v663 = vadd.f32 %v486, %v662
      %v664 = vpop.f32.mrb[0].mxu0
      %665 = vmatprep.mubr.f32.mxu0 0.0
      %666 = vmatmul.mubr.f32.gmra.mrb[0].mxu0 %v551
      %v667 = vpop.f32.mrb[0].mxu0
      %v668 = vadd.f32 %v491, %v667
      %v669 = vpop.f32.mrb[0].mxu0
      %670 = vmatprep.mubr.f32.mxu0 0.0
      %671 = vmatmul.mubr.f32.gmra.mrb[0].mxu0 %v553
      %v672 = vpop.f32.mrb[0].mxu0
      %v673 = vadd.f32 %v496, %v672
      %v674 = vpop.f32.mrb[0].mxu0
      %675 = vmatprep.mubr.f32.mxu0 0.0
      %676 = vmatmul.mubr.f32.gmra.mrb[0].mxu0 %v555
      %v677 = vpop.f32.mrb[0].mxu0
      %v678 = vadd.f32 %v501, %v677
      %v679 = vpop.f32.mrb[0].mxu0
      %680 = vmatprep.mubr.f32.mxu0 0.0
      %681 = vmatmul.mubr.f32.gmra.mrb[0].mxu0 %v557
      %v682 = vpop.f32.mrb[0].mxu0
      %v683 = vadd.f32 %v506, %v682
      %v684 = vpop.f32.mrb[0].mxu0
      %685 = vmatprep.mubr.f32.mxu0 0.0
      %686 = vmatmul.mubr.f32.gmra.mrb[0].mxu0 %v559
      %v687 = vpop.f32.mrb[0].mxu0
      %v688 = vadd.f32 %v511, %v687
      %v689 = vpop.f32.mrb[0].mxu0
      %690 = vmatprep.mubr.f32.mxu0 0.0
      %691 = vmatmul.mubr.f32.gmra.mrb[0].mxu0 %v561
      %v692 = vpop.f32.mrb[0].mxu0
      %v693 = vadd.f32 %v516, %v692
      %v694 = vpop.f32.mrb[0].mxu0
      %695 = vmatprep.mubr.f32.mxu0 0.0
      %696 = vmatmul.mubr.f32.gmra.mrb[0].mxu0 %v563
      %v697 = vpop.f32.mrb[0].mxu0
      %v698 = vadd.f32 %v521, %v697
      %v699 = vpop.f32.mrb[0].mxu0
      %700 = vmatprep.mubr.f32.mxu0 0.0
      %701 = vmatmul.mubr.f32.gmra.mrb[0].mxu0 %v565
      %v702 = vpop.f32.mrb[0].mxu0
      %v703 = vadd.f32 %v526, %v702
      %v704 = vpop.f32.mrb[0].mxu0
      %705 = vmatprep.mubr.f32.mxu0 0.0
      %706 = vmatmul.mubr.f32.gmra.mrb[0].mxu0 %v567
      %v707 = vpop.f32.mrb[0].mxu0
      %v708 = vadd.f32 %v531, %v707
      %v709 = vpop.f32.mrb[0].mxu0
      %710 = vmatprep.mubr.f32.mxu0 0.0
      %711 = vmatmul.mubr.f32.gmra.mrb[0].mxu0 %v569
      %v712 = vpop.f32.mrb[0].mxu0
      %v713 = vadd.f32 %v536, %v712
      %v714 = vpop.f32.mrb[0].mxu0
      %715 = vdwg.mxu0
      %vm716 = vcmask 1045504
      %v717 = vrot.slane %v263, 2
      %v718 = vrot.slane %v264, 2
      %v719 = vsel %vm716, %v717, %v718
      %v720 = vrot.slane %v265, 2
      %v721 = vsel %vm716, %v718, %v720
      %v722 = vrot.slane %v266, 2
      %v723 = vrot.slane %v267, 2
      %v724 = vsel %vm716, %v722, %v723
      %v725 = vrot.slane %v268, 2
      %v726 = vsel %vm716, %v723, %v725
      %v727 = vrot.slane %v269, 2
      %v728 = vrot.slane %v270, 2
      %v729 = vsel %vm716, %v727, %v728
      %v730 = vrot.slane %v271, 2
      %v731 = vsel %vm716, %v728, %v730
      %v732 = vrot.slane %v272, 2
      %v733 = vrot.slane %v273, 2
      %v734 = vsel %vm716, %v732, %v733
      %v735 = vrot.slane %v274, 2
      %v736 = vsel %vm716, %v733, %v735
      %v737 = vrot.slane %v275, 2
      %v738 = vrot.slane %v276, 2
      %v739 = vsel %vm716, %v737, %v738
      %v740 = vrot.slane %v277, 2
      %v741 = vsel %vm716, %v738, %v740
      %v742 = vrot.slane %v278, 2
      %v743 = vrot.slane %v279, 2
      %v744 = vsel %vm716, %v742, %v743
      %v745 = vrot.slane %v280, 2
      %v746 = vsel %vm716, %v743, %v745
      %v747 = vrot.slane %v281, 2
      %v748 = vrot.slane %v282, 2
      %v749 = vsel %vm716, %v747, %v748
      %v750 = vrot.slane %v283, 2
      %v751 = vsel %vm716, %v748, %v750
      %v752 = vrot.slane %v284, 2
      %v753 = vrot.slane %v285, 2
      %v754 = vsel %vm716, %v752, %v753
      %v755 = vrot.slane %v286, 2
      %v756 = vsel %vm716, %v753, %v755
      %s757 = scalar_lea.vmem %s1, 16
      %v758 = vld [vmem:[%s757] sm:$0xff]
      %v759 = vsel %vm361, %v719, 0
      %v761 = vsel %vm361, %v721, 0
      %v763 = vsel %vm361, %v724, 0
      %v765 = vsel %vm361, %v726, 0
      %v767 = vsel %vm361, %v729, 0
      %v769 = vsel %vm361, %v731, 0
      %v771 = vsel %vm361, %v734, 0
      %v773 = vsel %vm361, %v736, 0
      %v775 = vsel %vm361, %v739, 0
      %v777 = vsel %vm361, %v741, 0
      %v779 = vsel %vm361, %v744, 0
      %v781 = vsel %vm361, %v746, 0
      %v783 = vsel %vm361, %v749, 0
      %v785 = vsel %vm361, %v751, 0
      %v787 = vsel %vm361, %v754, 0
      %v789 = vsel %vm361, %v756, 0
      %791 = vmatprep.subr.mxu0 0.0
      %792 = vmatpush1.msra.mxu0 %v758
      %793 = vmatprep.subr.mxu0 0.0
      %794 = vmatpush1.msra.mxu0 0.0
      %795 = vmatprep.subr.mxu0 0.0
      %796 = vmatpush1.msra.mxu0 0.0
      %797 = vmatprep.subr.mxu0 0.0
      %798 = vmatpush1.msra.mxu0 0.0
      %799 = vmatprep.subr.mxu0 0.0
      %800 = vmatpush1.msra.mxu0 0.0
      %801 = vmatprep.subr.mxu0 0.0
      %802 = vmatpush1.msra.mxu0 0.0
      %803 = vmatprep.subr.mxu0 0.0
      %804 = vmatpush1.msra.mxu0 0.0
      %805 = vmatprep.subr.mxu0 0.0
      %806 = vmatpush1.msra.mxu0 0.0
      %807 = vmatprep.subr.mxu0 0.0
      %808 = vmatpush1.msra.mxu0 0.0
      %809 = vmatprep.subr.mxu0 0.0
      %810 = vmatpush1.msra.mxu0 0.0
      %811 = vmatprep.subr.mxu0 0.0
      %812 = vmatpush1.msra.mxu0 0.0
      %813 = vmatprep.subr.mxu0 0.0
      %814 = vmatpush1.msra.mxu0 0.0
      %815 = vmatprep.subr.mxu0 0.0
      %816 = vmatpush1.msra.mxu0 0.0
      %817 = vmatprep.subr.mxu0 0.0
      %818 = vmatpush1.msra.mxu0 0.0
      %819 = vmatprep.subr.mxu0 0.0
      %820 = vmatpush1.msra.mxu0 0.0
      %821 = vmatprep.subr.mxu0 0.0
      %822 = vmatpush1.msra.mxu0 0.0
      %823 = vmatprep.subr.mxu0 0.0
      %824 = vmatpush1.msra.mxu0 0.0
      %825 = vmatprep.subr.mxu0 0.0
      %826 = vmatpush1.msra.mxu0 0.0
      %827 = vmatprep.subr.mxu0 0.0
      %828 = vmatpush1.msra.mxu0 0.0
      %829 = vmatprep.subr.mxu0 0.0
      %830 = vmatpush1.msra.mxu0 0.0
      %831 = vmatprep.subr.mxu0 0.0
      %832 = vmatpush1.msra.mxu0 0.0
      %833 = vmatprep.subr.mxu0 0.0
      %834 = vmatpush1.msra.mxu0 0.0
      %835 = vmatprep.subr.mxu0 0.0
      %836 = vmatpush1.msra.mxu0 0.0
      %837 = vmatprep.subr.mxu0 0.0
      %838 = vmatpush1.msra.mxu0 0.0
      %839 = vmatprep.subr.mxu0 0.0
      %840 = vmatpush1.msra.mxu0 0.0
      %841 = vmatprep.subr.mxu0 0.0
      %842 = vmatpush1.msra.mxu0 0.0
      %843 = vmatprep.subr.mxu0 0.0
      %844 = vmatpush1.msra.mxu0 0.0
      %845 = vmatprep.subr.mxu0 0.0
      %846 = vmatpush1.msra.mxu0 0.0
      %847 = vmatprep.subr.mxu0 0.0
      %848 = vmatpush1.msra.mxu0 0.0
      %849 = vmatprep.subr.mxu0 0.0
      %850 = vmatpush1.msra.mxu0 0.0
      %851 = vmatprep.subr.mxu0 0.0
      %852 = vmatpush1.msra.mxu0 0.0
      %853 = vmatprep.subr.mxu0 0.0
      %854 = vmatpush1.msra.mxu0 0.0
      %855 = vmatprep.mubr.f32.mxu0 0.0
      %856 = vmatmul.mubr.f32.gmra.mrb[0].mxu0 %v759
      %v857 = vpop.f32.mrb[0].mxu0
      %v858 = vadd.f32 0.0, %v857
      %v859 = vpop.f32.mrb[0].mxu0
      %860 = vmatprep.mubr.f32.mxu0 0.0
      %861 = vmatmul.mubr.f32.gmra.mrb[0].mxu0 %v761
      %v862 = vpop.f32.mrb[0].mxu0
      %v863 = vadd.f32 0.0, %v862
      %v864 = vpop.f32.mrb[0].mxu0
      %865 = vmatprep.mubr.f32.mxu0 0.0
      %866 = vmatmul.mubr.f32.gmra.mrb[0].mxu0 %v763
      %v867 = vpop.f32.mrb[0].mxu0
      %v868 = vadd.f32 0.0, %v867
      %v869 = vpop.f32.mrb[0].mxu0
      %870 = vmatprep.mubr.f32.mxu0 0.0
      %871 = vmatmul.mubr.f32.gmra.mrb[0].mxu0 %v765
      %v872 = vpop.f32.mrb[0].mxu0
      %v873 = vadd.f32 0.0, %v872
      %v874 = vpop.f32.mrb[0].mxu0
      %875 = vmatprep.mubr.f32.mxu0 0.0
      %876 = vmatmul.mubr.f32.gmra.mrb[0].mxu0 %v767
      %v877 = vpop.f32.mrb[0].mxu0
      %v878 = vadd.f32 0.0, %v877
      %v879 = vpop.f32.mrb[0].mxu0
      %880 = vmatprep.mubr.f32.mxu0 0.0
      %881 = vmatmul.mubr.f32.gmra.mrb[0].mxu0 %v769
      %v882 = vpop.f32.mrb[0].mxu0
      %v883 = vadd.f32 0.0, %v882
      %v884 = vpop.f32.mrb[0].mxu0
      %885 = vmatprep.mubr.f32.mxu0 0.0
      %886 = vmatmul.mubr.f32.gmra.mrb[0].mxu0 %v771
      %v887 = vpop.f32.mrb[0].mxu0
      %v888 = vadd.f32 0.0, %v887
      %v889 = vpop.f32.mrb[0].mxu0
      %890 = vmatprep.mubr.f32.mxu0 0.0
      %891 = vmatmul.mubr.f32.gmra.mrb[0].mxu0 %v773
      %v892 = vpop.f32.mrb[0].mxu0
      %v893 = vadd.f32 0.0, %v892
      %v894 = vpop.f32.mrb[0].mxu0
      %895 = vmatprep.mubr.f32.mxu0 0.0
      %896 = vmatmul.mubr.f32.gmra.mrb[0].mxu0 %v775
      %v897 = vpop.f32.mrb[0].mxu0
      %v898 = vadd.f32 0.0, %v897
      %v899 = vpop.f32.mrb[0].mxu0
      %900 = vmatprep.mubr.f32.mxu0 0.0
      %901 = vmatmul.mubr.f32.gmra.mrb[0].mxu0 %v777
      %v902 = vpop.f32.mrb[0].mxu0
      %v903 = vadd.f32 0.0, %v902
      %v904 = vpop.f32.mrb[0].mxu0
      %905 = vmatprep.mubr.f32.mxu0 0.0
      %906 = vmatmul.mubr.f32.gmra.mrb[0].mxu0 %v779
      %v907 = vpop.f32.mrb[0].mxu0
      %v908 = vadd.f32 0.0, %v907
      %v909 = vpop.f32.mrb[0].mxu0
      %910 = vmatprep.mubr.f32.mxu0 0.0
      %911 = vmatmul.mubr.f32.gmra.mrb[0].mxu0 %v781
      %v912 = vpop.f32.mrb[0].mxu0
      %v913 = vadd.f32 0.0, %v912
      %v914 = vpop.f32.mrb[0].mxu0
      %915 = vmatprep.mubr.f32.mxu0 0.0
      %916 = vmatmul.mubr.f32.gmra.mrb[0].mxu0 %v783
      %v917 = vpop.f32.mrb[0].mxu0
      %v918 = vadd.f32 0.0, %v917
      %v919 = vpop.f32.mrb[0].mxu0
      %920 = vmatprep.mubr.f32.mxu0 0.0
      %921 = vmatmul.mubr.f32.gmra.mrb[0].mxu0 %v785
      %v922 = vpop.f32.mrb[0].mxu0
      %v923 = vadd.f32 0.0, %v922
      %v924 = vpop.f32.mrb[0].mxu0
      %925 = vmatprep.mubr.f32.mxu0 0.0
      %926 = vmatmul.mubr.f32.gmra.mrb[0].mxu0 %v787
      %v927 = vpop.f32.mrb[0].mxu0
      %v928 = vadd.f32 0.0, %v927
      %v929 = vpop.f32.mrb[0].mxu0
      %930 = vmatprep.mubr.f32.mxu0 0.0
      %931 = vmatmul.mubr.f32.gmra.mrb[0].mxu0 %v789
      %v932 = vpop.f32.mrb[0].mxu0
      %v933 = vadd.f32 0.0, %v932
      %v934 = vpop.f32.mrb[0].mxu0
      %935 = vdwg.mxu0
      %v936 = vadd.f32 %v638, %v858
      %v937 = vadd.f32 %v643, %v863
      %v938 = vadd.f32 %v648, %v868
      %v939 = vadd.f32 %v653, %v873
      %v940 = vadd.f32 %v658, %v878
      %v941 = vadd.f32 %v663, %v883
      %v942 = vadd.f32 %v668, %v888
      %v943 = vadd.f32 %v673, %v893
      %v944 = vadd.f32 %v678, %v898
      %v945 = vadd.f32 %v683, %v903
      %v946 = vadd.f32 %v688, %v908
      %v947 = vadd.f32 %v693, %v913
      %v948 = vadd.f32 %v698, %v918
      %v949 = vadd.f32 %v703, %v923
      %v950 = vadd.f32 %v708, %v928
      %v951 = vadd.f32 %v713, %v933
      %s952 = scalar_lea.vmem %s1, 24
      %v953 = vld [vmem:[%s952] sm:$0xff]
      %v955 = vsel %vm361, %v287, 0
      %v958 = vsel %vm361, %v288, 0
      %960 = vmatprep.subr.mxu0 0.0
      %961 = vmatpush1.msra.mxu0 %v953
      %962 = vmatprep.subr.mxu0 0.0
      %963 = vmatpush1.msra.mxu0 0.0
      %964 = vmatprep.subr.mxu0 0.0
      %965 = vmatpush1.msra.mxu0 0.0
      %966 = vmatprep.subr.mxu0 0.0
      %967 = vmatpush1.msra.mxu0 0.0
      %968 = vmatprep.subr.mxu0 0.0
      %969 = vmatpush1.msra.mxu0 0.0
      %970 = vmatprep.subr.mxu0 0.0
      %971 = vmatpush1.msra.mxu0 0.0
      %972 = vmatprep.subr.mxu0 0.0
      %973 = vmatpush1.msra.mxu0 0.0
      %974 = vmatprep.subr.mxu0 0.0
      %975 = vmatpush1.msra.mxu0 0.0
      %976 = vmatprep.subr.mxu0 0.0
      %977 = vmatpush1.msra.mxu0 0.0
      %978 = vmatprep.subr.mxu0 0.0
      %979 = vmatpush1.msra.mxu0 0.0
      %980 = vmatprep.subr.mxu0 0.0
      %981 = vmatpush1.msra.mxu0 0.0
      %982 = vmatprep.subr.mxu0 0.0
      %983 = vmatpush1.msra.mxu0 0.0
      %984 = vmatprep.subr.mxu0 0.0
      %985 = vmatpush1.msra.mxu0 0.0
      %986 = vmatprep.subr.mxu0 0.0
      %987 = vmatpush1.msra.mxu0 0.0
      %988 = vmatprep.subr.mxu0 0.0
      %989 = vmatpush1.msra.mxu0 0.0
      %990 = vmatprep.subr.mxu0 0.0
      %991 = vmatpush1.msra.mxu0 0.0
      %992 = vmatprep.subr.mxu0 0.0
      %993 = vmatpush1.msra.mxu0 0.0
      %994 = vmatprep.subr.mxu0 0.0
      %995 = vmatpush1.msra.mxu0 0.0
      %996 = vmatprep.subr.mxu0 0.0
      %997 = vmatpush1.msra.mxu0 0.0
      %998 = vmatprep.subr.mxu0 0.0
      %999 = vmatpush1.msra.mxu0 0.0
      %1000 = vmatprep.subr.mxu0 0.0
      %1001 = vmatpush1.msra.mxu0 0.0
      %1002 = vmatprep.subr.mxu0 0.0
      %1003 = vmatpush1.msra.mxu0 0.0
      %1004 = vmatprep.subr.mxu0 0.0
      %1005 = vmatpush1.msra.mxu0 0.0
      %1006 = vmatprep.subr.mxu0 0.0
      %1007 = vmatpush1.msra.mxu0 0.0
      %1008 = vmatprep.subr.mxu0 0.0
      %1009 = vmatpush1.msra.mxu0 0.0
      %1010 = vmatprep.subr.mxu0 0.0
      %1011 = vmatpush1.msra.mxu0 0.0
      %1012 = vmatprep.subr.mxu0 0.0
      %1013 = vmatpush1.msra.mxu0 0.0
      %1014 = vmatprep.subr.mxu0 0.0
      %1015 = vmatpush1.msra.mxu0 0.0
      %1016 = vmatprep.subr.mxu0 0.0
      %1017 = vmatpush1.msra.mxu0 0.0
      %1018 = vmatprep.subr.mxu0 0.0
      %1019 = vmatpush1.msra.mxu0 0.0
      %1020 = vmatprep.subr.mxu0 0.0
      %1021 = vmatpush1.msra.mxu0 0.0
      %1022 = vmatprep.subr.mxu0 0.0
      %1023 = vmatpush1.msra.mxu0 0.0
      %1024 = vmatprep.mubr.f32.mxu0 0.0
      %1025 = vmatmul.mubr.f32.gmra.mrb[0].mxu0 %v543
      %v1026 = vpop.f32.mrb[0].mxu0
      %v1027 = vadd.f32 0.0, %v1026
      %v1028 = vpop.f32.mrb[0].mxu0
      %1029 = vmatprep.mubr.f32.mxu0 0.0
      %1030 = vmatmul.mubr.f32.gmra.mrb[0].mxu0 %v545
      %v1031 = vpop.f32.mrb[0].mxu0
      %v1032 = vadd.f32 0.0, %v1031
      %v1033 = vpop.f32.mrb[0].mxu0
      %1034 = vmatprep.mubr.f32.mxu0 0.0
      %1035 = vmatmul.mubr.f32.gmra.mrb[0].mxu0 %v547
      %v1036 = vpop.f32.mrb[0].mxu0
      %v1037 = vadd.f32 0.0, %v1036
      %v1038 = vpop.f32.mrb[0].mxu0
      %1039 = vmatprep.mubr.f32.mxu0 0.0
      %1040 = vmatmul.mubr.f32.gmra.mrb[0].mxu0 %v549
      %v1041 = vpop.f32.mrb[0].mxu0
      %v1042 = vadd.f32 0.0, %v1041
      %v1043 = vpop.f32.mrb[0].mxu0
      %1044 = vmatprep.mubr.f32.mxu0 0.0
      %1045 = vmatmul.mubr.f32.gmra.mrb[0].mxu0 %v551
      %v1046 = vpop.f32.mrb[0].mxu0
      %v1047 = vadd.f32 0.0, %v1046
      %v1048 = vpop.f32.mrb[0].mxu0
      %1049 = vmatprep.mubr.f32.mxu0 0.0
      %1050 = vmatmul.mubr.f32.gmra.mrb[0].mxu0 %v553
      %v1051 = vpop.f32.mrb[0].mxu0
      %v1052 = vadd.f32 0.0, %v1051
      %v1053 = vpop.f32.mrb[0].mxu0
      %1054 = vmatprep.mubr.f32.mxu0 0.0
      %1055 = vmatmul.mubr.f32.gmra.mrb[0].mxu0 %v555
      %v1056 = vpop.f32.mrb[0].mxu0
      %v1057 = vadd.f32 0.0, %v1056
      %v1058 = vpop.f32.mrb[0].mxu0
      %1059 = vmatprep.mubr.f32.mxu0 0.0
      %1060 = vmatmul.mubr.f32.gmra.mrb[0].mxu0 %v557
      %v1061 = vpop.f32.mrb[0].mxu0
      %v1062 = vadd.f32 0.0, %v1061
      %v1063 = vpop.f32.mrb[0].mxu0
      %1064 = vmatprep.mubr.f32.mxu0 0.0
      %1065 = vmatmul.mubr.f32.gmra.mrb[0].mxu0 %v559
      %v1066 = vpop.f32.mrb[0].mxu0
      %v1067 = vadd.f32 0.0, %v1066
      %v1068 = vpop.f32.mrb[0].mxu0
      %1069 = vmatprep.mubr.f32.mxu0 0.0
      %1070 = vmatmul.mubr.f32.gmra.mrb[0].mxu0 %v561
      %v1071 = vpop.f32.mrb[0].mxu0
      %v1072 = vadd.f32 0.0, %v1071
      %v1073 = vpop.f32.mrb[0].mxu0
      %1074 = vmatprep.mubr.f32.mxu0 0.0
      %1075 = vmatmul.mubr.f32.gmra.mrb[0].mxu0 %v563
      %v1076 = vpop.f32.mrb[0].mxu0
      %v1077 = vadd.f32 0.0, %v1076
      %v1078 = vpop.f32.mrb[0].mxu0
      %1079 = vmatprep.mubr.f32.mxu0 0.0
      %1080 = vmatmul.mubr.f32.gmra.mrb[0].mxu0 %v565
      %v1081 = vpop.f32.mrb[0].mxu0
      %v1082 = vadd.f32 0.0, %v1081
      %v1083 = vpop.f32.mrb[0].mxu0
      %1084 = vmatprep.mubr.f32.mxu0 0.0
      %1085 = vmatmul.mubr.f32.gmra.mrb[0].mxu0 %v567
      %v1086 = vpop.f32.mrb[0].mxu0
      %v1087 = vadd.f32 0.0, %v1086
      %v1088 = vpop.f32.mrb[0].mxu0
      %1089 = vmatprep.mubr.f32.mxu0 0.0
      %1090 = vmatmul.mubr.f32.gmra.mrb[0].mxu0 %v569
      %v1091 = vpop.f32.mrb[0].mxu0
      %v1092 = vadd.f32 0.0, %v1091
      %v1093 = vpop.f32.mrb[0].mxu0
      %1094 = vmatprep.mubr.f32.mxu0 0.0
      %1095 = vmatmul.mubr.f32.gmra.mrb[0].mxu0 %v955
      %v1096 = vpop.f32.mrb[0].mxu0
      %v1097 = vadd.f32 0.0, %v1096
      %v1098 = vpop.f32.mrb[0].mxu0
      %1099 = vmatprep.mubr.f32.mxu0 0.0
      %1100 = vmatmul.mubr.f32.gmra.mrb[0].mxu0 %v958
      %v1101 = vpop.f32.mrb[0].mxu0
      %v1102 = vadd.f32 0.0, %v1101
      %v1103 = vpop.f32.mrb[0].mxu0
      %1104 = vdwg.mxu0
      %v1105 = vadd.f32 %v936, %v1027
      %v1106 = vadd.f32 %v937, %v1032
      %v1107 = vadd.f32 %v938, %v1037
      %v1108 = vadd.f32 %v939, %v1042
      %v1109 = vadd.f32 %v940, %v1047
      %v1110 = vadd.f32 %v941, %v1052
      %v1111 = vadd.f32 %v942, %v1057
      %v1112 = vadd.f32 %v943, %v1062
      %v1113 = vadd.f32 %v944, %v1067
      %v1114 = vadd.f32 %v945, %v1072
      %v1115 = vadd.f32 %v946, %v1077
      %v1116 = vadd.f32 %v947, %v1082
      %v1117 = vadd.f32 %v948, %v1087
      %v1118 = vadd.f32 %v949, %v1092
      %v1119 = vadd.f32 %v950, %v1097
      %v1120 = vadd.f32 %v951, %v1102
      %v1122 = vrot.slane %v287, 1
      %v1123 = vrot.slane %v288, 1
      %v1124 = vsel %vm318, %v1122, %v1123
      %v1125 = vrot.slane %v289, 1
      %v1126 = vsel %vm318, %v1123, %v1125
      %s1127 = scalar_lea.vmem %s1, 32
      %v1128 = vld [vmem:[%s1127] sm:$0xff]
      %v1129 = vsel %vm361, %v1124, 0
      %v1131 = vsel %vm361, %v1126, 0
      %1133 = vmatprep.subr.mxu0 0.0
      %1134 = vmatpush1.msra.mxu0 %v1128
      %1135 = vmatprep.subr.mxu0 0.0
      %1136 = vmatpush1.msra.mxu0 0.0
      %1137 = vmatprep.subr.mxu0 0.0
      %1138 = vmatpush1.msra.mxu0 0.0
      %1139 = vmatprep.subr.mxu0 0.0
      %1140 = vmatpush1.msra.mxu0 0.0
      %1141 = vmatprep.subr.mxu0 0.0
      %1142 = vmatpush1.msra.mxu0 0.0
      %1143 = vmatprep.subr.mxu0 0.0
      %1144 = vmatpush1.msra.mxu0 0.0
      %1145 = vmatprep.subr.mxu0 0.0
      %1146 = vmatpush1.msra.mxu0 0.0
      %1147 = vmatprep.subr.mxu0 0.0
      %1148 = vmatpush1.msra.mxu0 0.0
      %1149 = vmatprep.subr.mxu0 0.0
      %1150 = vmatpush1.msra.mxu0 0.0
      %1151 = vmatprep.subr.mxu0 0.0
      %1152 = vmatpush1.msra.mxu0 0.0
      %1153 = vmatprep.subr.mxu0 0.0
      %1154 = vmatpush1.msra.mxu0 0.0
      %1155 = vmatprep.subr.mxu0 0.0
      %1156 = vmatpush1.msra.mxu0 0.0
      %1157 = vmatprep.subr.mxu0 0.0
      %1158 = vmatpush1.msra.mxu0 0.0
      %1159 = vmatprep.subr.mxu0 0.0
      %1160 = vmatpush1.msra.mxu0 0.0
      %1161 = vmatprep.subr.mxu0 0.0
      %1162 = vmatpush1.msra.mxu0 0.0
      %1163 = vmatprep.subr.mxu0 0.0
      %1164 = vmatpush1.msra.mxu0 0.0
      %1165 = vmatprep.subr.mxu0 0.0
      %1166 = vmatpush1.msra.mxu0 0.0
      %1167 = vmatprep.subr.mxu0 0.0
      %1168 = vmatpush1.msra.mxu0 0.0
      %1169 = vmatprep.subr.mxu0 0.0
      %1170 = vmatpush1.msra.mxu0 0.0
      %1171 = vmatprep.subr.mxu0 0.0
      %1172 = vmatpush1.msra.mxu0 0.0
      %1173 = vmatprep.subr.mxu0 0.0
      %1174 = vmatpush1.msra.mxu0 0.0
      %1175 = vmatprep.subr.mxu0 0.0
      %1176 = vmatpush1.msra.mxu0 0.0
      %1177 = vmatprep.subr.mxu0 0.0
      %1178 = vmatpush1.msra.mxu0 0.0
      %1179 = vmatprep.subr.mxu0 0.0
      %1180 = vmatpush1.msra.mxu0 0.0
      %1181 = vmatprep.subr.mxu0 0.0
      %1182 = vmatpush1.msra.mxu0 0.0
      %1183 = vmatprep.subr.mxu0 0.0
      %1184 = vmatpush1.msra.mxu0 0.0
      %1185 = vmatprep.subr.mxu0 0.0
      %1186 = vmatpush1.msra.mxu0 0.0
      %1187 = vmatprep.subr.mxu0 0.0
      %1188 = vmatpush1.msra.mxu0 0.0
      %1189 = vmatprep.subr.mxu0 0.0
      %1190 = vmatpush1.msra.mxu0 0.0
      %1191 = vmatprep.subr.mxu0 0.0
      %1192 = vmatpush1.msra.mxu0 0.0
      %1193 = vmatprep.subr.mxu0 0.0
      %1194 = vmatpush1.msra.mxu0 0.0
      %1195 = vmatprep.subr.mxu0 0.0
      %1196 = vmatpush1.msra.mxu0 0.0
      %1197 = vmatprep.mubr.f32.mxu0 0.0
      %1198 = vmatmul.mubr.f32.gmra.mrb[0].mxu0 %v366
      %v1199 = vpop.f32.mrb[0].mxu0
      %v1200 = vadd.f32 0.0, %v1199
      %v1201 = vpop.f32.mrb[0].mxu0
      %1202 = vmatprep.mubr.f32.mxu0 0.0
      %1203 = vmatmul.mubr.f32.gmra.mrb[0].mxu0 %v368
      %v1204 = vpop.f32.mrb[0].mxu0
      %v1205 = vadd.f32 0.0, %v1204
      %v1206 = vpop.f32.mrb[0].mxu0
      %1207 = vmatprep.mubr.f32.mxu0 0.0
      %1208 = vmatmul.mubr.f32.gmra.mrb[0].mxu0 %v370
      %v1209 = vpop.f32.mrb[0].mxu0
      %v1210 = vadd.f32 0.0, %v1209
      %v1211 = vpop.f32.mrb[0].mxu0
      %1212 = vmatprep.mubr.f32.mxu0 0.0
      %1213 = vmatmul.mubr.f32.gmra.mrb[0].mxu0 %v372
      %v1214 = vpop.f32.mrb[0].mxu0
      %v1215 = vadd.f32 0.0, %v1214
      %v1216 = vpop.f32.mrb[0].mxu0
      %1217 = vmatprep.mubr.f32.mxu0 0.0
      %1218 = vmatmul.mubr.f32.gmra.mrb[0].mxu0 %v374
      %v1219 = vpop.f32.mrb[0].mxu0
      %v1220 = vadd.f32 0.0, %v1219
      %v1221 = vpop.f32.mrb[0].mxu0
      %1222 = vmatprep.mubr.f32.mxu0 0.0
      %1223 = vmatmul.mubr.f32.gmra.mrb[0].mxu0 %v376
      %v1224 = vpop.f32.mrb[0].mxu0
      %v1225 = vadd.f32 0.0, %v1224
      %v1226 = vpop.f32.mrb[0].mxu0
      %1227 = vmatprep.mubr.f32.mxu0 0.0
      %1228 = vmatmul.mubr.f32.gmra.mrb[0].mxu0 %v378
      %v1229 = vpop.f32.mrb[0].mxu0
      %v1230 = vadd.f32 0.0, %v1229
      %v1231 = vpop.f32.mrb[0].mxu0
      %1232 = vmatprep.mubr.f32.mxu0 0.0
      %1233 = vmatmul.mubr.f32.gmra.mrb[0].mxu0 %v380
      %v1234 = vpop.f32.mrb[0].mxu0
      %v1235 = vadd.f32 0.0, %v1234
      %v1236 = vpop.f32.mrb[0].mxu0
      %1237 = vmatprep.mubr.f32.mxu0 0.0
      %1238 = vmatmul.mubr.f32.gmra.mrb[0].mxu0 %v382
      %v1239 = vpop.f32.mrb[0].mxu0
      %v1240 = vadd.f32 0.0, %v1239
      %v1241 = vpop.f32.mrb[0].mxu0
      %1242 = vmatprep.mubr.f32.mxu0 0.0
      %1243 = vmatmul.mubr.f32.gmra.mrb[0].mxu0 %v384
      %v1244 = vpop.f32.mrb[0].mxu0
      %v1245 = vadd.f32 0.0, %v1244
      %v1246 = vpop.f32.mrb[0].mxu0
      %1247 = vmatprep.mubr.f32.mxu0 0.0
      %1248 = vmatmul.mubr.f32.gmra.mrb[0].mxu0 %v386
      %v1249 = vpop.f32.mrb[0].mxu0
      %v1250 = vadd.f32 0.0, %v1249
      %v1251 = vpop.f32.mrb[0].mxu0
      %1252 = vmatprep.mubr.f32.mxu0 0.0
      %1253 = vmatmul.mubr.f32.gmra.mrb[0].mxu0 %v388
      %v1254 = vpop.f32.mrb[0].mxu0
      %v1255 = vadd.f32 0.0, %v1254
      %v1256 = vpop.f32.mrb[0].mxu0
      %1257 = vmatprep.mubr.f32.mxu0 0.0
      %1258 = vmatmul.mubr.f32.gmra.mrb[0].mxu0 %v390
      %v1259 = vpop.f32.mrb[0].mxu0
      %v1260 = vadd.f32 0.0, %v1259
      %v1261 = vpop.f32.mrb[0].mxu0
      %1262 = vmatprep.mubr.f32.mxu0 0.0
      %1263 = vmatmul.mubr.f32.gmra.mrb[0].mxu0 %v392
      %v1264 = vpop.f32.mrb[0].mxu0
      %v1265 = vadd.f32 0.0, %v1264
      %v1266 = vpop.f32.mrb[0].mxu0
      %1267 = vmatprep.mubr.f32.mxu0 0.0
      %1268 = vmatmul.mubr.f32.gmra.mrb[0].mxu0 %v1129
      %v1269 = vpop.f32.mrb[0].mxu0
      %v1270 = vadd.f32 0.0, %v1269
      %v1271 = vpop.f32.mrb[0].mxu0
      %1272 = vmatprep.mubr.f32.mxu0 0.0
      %1273 = vmatmul.mubr.f32.gmra.mrb[0].mxu0 %v1131
      %v1274 = vpop.f32.mrb[0].mxu0
      %v1275 = vadd.f32 0.0, %v1274
      %v1276 = vpop.f32.mrb[0].mxu0
      %1277 = vdwg.mxu0
      %v1278 = vadd.f32 %v1105, %v1200
      %v1279 = vadd.f32 %v1106, %v1205
      %v1280 = vadd.f32 %v1107, %v1210
      %v1281 = vadd.f32 %v1108, %v1215
      %v1282 = vadd.f32 %v1109, %v1220
      %v1283 = vadd.f32 %v1110, %v1225
      %v1284 = vadd.f32 %v1111, %v1230
      %v1285 = vadd.f32 %v1112, %v1235
      %v1286 = vadd.f32 %v1113, %v1240
      %v1287 = vadd.f32 %v1114, %v1245
      %v1288 = vadd.f32 %v1115, %v1250
      %v1289 = vadd.f32 %v1116, %v1255
      %v1290 = vadd.f32 %v1117, %v1260
      %v1291 = vadd.f32 %v1118, %v1265
      %v1292 = vadd.f32 %v1119, %v1270
      %v1293 = vadd.f32 %v1120, %v1275
      %v1294 = vrot.slane %v287, 2
      %v1295 = vrot.slane %v288, 2
      %v1296 = vsel %vm716, %v1294, %v1295
      %v1297 = vrot.slane %v289, 2
      %v1298 = vsel %vm716, %v1295, %v1297
      %s1299 = scalar_lea.vmem %s1, 40
      %v1300 = vld [vmem:[%s1299] sm:$0xff]
      %v1301 = vsel %vm361, %v1296, 0
      %v1303 = vsel %vm361, %v1298, 0
      %1305 = vmatprep.subr.mxu0 0.0
      %1306 = vmatpush1.msra.mxu0 %v1300
      %1307 = vmatprep.subr.mxu0 0.0
      %1308 = vmatpush1.msra.mxu0 0.0
      %1309 = vmatprep.subr.mxu0 0.0
      %1310 = vmatpush1.msra.mxu0 0.0
      %1311 = vmatprep.subr.mxu0 0.0
      %1312 = vmatpush1.msra.mxu0 0.0
      %1313 = vmatprep.subr.mxu0 0.0
      %1314 = vmatpush1.msra.mxu0 0.0
      %1315 = vmatprep.subr.mxu0 0.0
      %1316 = vmatpush1.msra.mxu0 0.0
      %1317 = vmatprep.subr.mxu0 0.0
      %1318 = vmatpush1.msra.mxu0 0.0
      %1319 = vmatprep.subr.mxu0 0.0
      %1320 = vmatpush1.msra.mxu0 0.0
      %1321 = vmatprep.subr.mxu0 0.0
      %1322 = vmatpush1.msra.mxu0 0.0
      %1323 = vmatprep.subr.mxu0 0.0
      %1324 = vmatpush1.msra.mxu0 0.0
      %1325 = vmatprep.subr.mxu0 0.0
      %1326 = vmatpush1.msra.mxu0 0.0
      %1327 = vmatprep.subr.mxu0 0.0
      %1328 = vmatpush1.msra.mxu0 0.0
      %1329 = vmatprep.subr.mxu0 0.0
      %1330 = vmatpush1.msra.mxu0 0.0
      %1331 = vmatprep.subr.mxu0 0.0
      %1332 = vmatpush1.msra.mxu0 0.0
      %1333 = vmatprep.subr.mxu0 0.0
      %1334 = vmatpush1.msra.mxu0 0.0
      %1335 = vmatprep.subr.mxu0 0.0
      %1336 = vmatpush1.msra.mxu0 0.0
      %1337 = vmatprep.subr.mxu0 0.0
      %1338 = vmatpush1.msra.mxu0 0.0
      %1339 = vmatprep.subr.mxu0 0.0
      %1340 = vmatpush1.msra.mxu0 0.0
      %1341 = vmatprep.subr.mxu0 0.0
      %1342 = vmatpush1.msra.mxu0 0.0
      %1343 = vmatprep.subr.mxu0 0.0
      %1344 = vmatpush1.msra.mxu0 0.0
      %1345 = vmatprep.subr.mxu0 0.0
      %1346 = vmatpush1.msra.mxu0 0.0
      %1347 = vmatprep.subr.mxu0 0.0
      %1348 = vmatpush1.msra.mxu0 0.0
      %1349 = vmatprep.subr.mxu0 0.0
      %1350 = vmatpush1.msra.mxu0 0.0
      %1351 = vmatprep.subr.mxu0 0.0
      %1352 = vmatpush1.msra.mxu0 0.0
      %1353 = vmatprep.subr.mxu0 0.0
      %1354 = vmatpush1.msra.mxu0 0.0
      %1355 = vmatprep.subr.mxu0 0.0
      %1356 = vmatpush1.msra.mxu0 0.0
      %1357 = vmatprep.subr.mxu0 0.0
      %1358 = vmatpush1.msra.mxu0 0.0
      %1359 = vmatprep.subr.mxu0 0.0
      %1360 = vmatpush1.msra.mxu0 0.0
      %1361 = vmatprep.subr.mxu0 0.0
      %1362 = vmatpush1.msra.mxu0 0.0
      %1363 = vmatprep.subr.mxu0 0.0
      %1364 = vmatpush1.msra.mxu0 0.0
      %1365 = vmatprep.subr.mxu0 0.0
      %1366 = vmatpush1.msra.mxu0 0.0
      %1367 = vmatprep.subr.mxu0 0.0
      %1368 = vmatpush1.msra.mxu0 0.0
      %1369 = vmatprep.mubr.f32.mxu0 0.0
      %1370 = vmatmul.mubr.f32.gmra.mrb[0].mxu0 %v763
      %v1371 = vpop.f32.mrb[0].mxu0
      %v1372 = vadd.f32 0.0, %v1371
      %v1373 = vpop.f32.mrb[0].mxu0
      %1374 = vmatprep.mubr.f32.mxu0 0.0
      %1375 = vmatmul.mubr.f32.gmra.mrb[0].mxu0 %v765
      %v1376 = vpop.f32.mrb[0].mxu0
      %v1377 = vadd.f32 0.0, %v1376
      %v1378 = vpop.f32.mrb[0].mxu0
      %1379 = vmatprep.mubr.f32.mxu0 0.0
      %1380 = vmatmul.mubr.f32.gmra.mrb[0].mxu0 %v767
      %v1381 = vpop.f32.mrb[0].mxu0
      %v1382 = vadd.f32 0.0, %v1381
      %v1383 = vpop.f32.mrb[0].mxu0
      %1384 = vmatprep.mubr.f32.mxu0 0.0
      %1385 = vmatmul.mubr.f32.gmra.mrb[0].mxu0 %v769
      %v1386 = vpop.f32.mrb[0].mxu0
      %v1387 = vadd.f32 0.0, %v1386
      %v1388 = vpop.f32.mrb[0].mxu0
      %1389 = vmatprep.mubr.f32.mxu0 0.0
      %1390 = vmatmul.mubr.f32.gmra.mrb[0].mxu0 %v771
      %v1391 = vpop.f32.mrb[0].mxu0
      %v1392 = vadd.f32 0.0, %v1391
      %v1393 = vpop.f32.mrb[0].mxu0
      %1394 = vmatprep.mubr.f32.mxu0 0.0
      %1395 = vmatmul.mubr.f32.gmra.mrb[0].mxu0 %v773
      %v1396 = vpop.f32.mrb[0].mxu0
      %v1397 = vadd.f32 0.0, %v1396
      %v1398 = vpop.f32.mrb[0].mxu0
      %1399 = vmatprep.mubr.f32.mxu0 0.0
      %1400 = vmatmul.mubr.f32.gmra.mrb[0].mxu0 %v775
      %v1401 = vpop.f32.mrb[0].mxu0
      %v1402 = vadd.f32 0.0, %v1401
      %v1403 = vpop.f32.mrb[0].mxu0
      %1404 = vmatprep.mubr.f32.mxu0 0.0
      %1405 = vmatmul.mubr.f32.gmra.mrb[0].mxu0 %v777
      %v1406 = vpop.f32.mrb[0].mxu0
      %v1407 = vadd.f32 0.0, %v1406
      %v1408 = vpop.f32.mrb[0].mxu0
      %1409 = vmatprep.mubr.f32.mxu0 0.0
      %1410 = vmatmul.mubr.f32.gmra.mrb[0].mxu0 %v779
      %v1411 = vpop.f32.mrb[0].mxu0
      %v1412 = vadd.f32 0.0, %v1411
      %v1413 = vpop.f32.mrb[0].mxu0
      %1414 = vmatprep.mubr.f32.mxu0 0.0
      %1415 = vmatmul.mubr.f32.gmra.mrb[0].mxu0 %v781
      %v1416 = vpop.f32.mrb[0].mxu0
      %v1417 = vadd.f32 0.0, %v1416
      %v1418 = vpop.f32.mrb[0].mxu0
      %1419 = vmatprep.mubr.f32.mxu0 0.0
      %1420 = vmatmul.mubr.f32.gmra.mrb[0].mxu0 %v783
      %v1421 = vpop.f32.mrb[0].mxu0
      %v1422 = vadd.f32 0.0, %v1421
      %v1423 = vpop.f32.mrb[0].mxu0
      %1424 = vmatprep.mubr.f32.mxu0 0.0
      %1425 = vmatmul.mubr.f32.gmra.mrb[0].mxu0 %v785
      %v1426 = vpop.f32.mrb[0].mxu0
      %v1427 = vadd.f32 0.0, %v1426
      %v1428 = vpop.f32.mrb[0].mxu0
      %1429 = vmatprep.mubr.f32.mxu0 0.0
      %1430 = vmatmul.mubr.f32.gmra.mrb[0].mxu0 %v787
      %v1431 = vpop.f32.mrb[0].mxu0
      %v1432 = vadd.f32 0.0, %v1431
      %v1433 = vpop.f32.mrb[0].mxu0
      %1434 = vmatprep.mubr.f32.mxu0 0.0
      %1435 = vmatmul.mubr.f32.gmra.mrb[0].mxu0 %v789
      %v1436 = vpop.f32.mrb[0].mxu0
      %v1437 = vadd.f32 0.0, %v1436
      %v1438 = vpop.f32.mrb[0].mxu0
      %1439 = vmatprep.mubr.f32.mxu0 0.0
      %1440 = vmatmul.mubr.f32.gmra.mrb[0].mxu0 %v1301
      %v1441 = vpop.f32.mrb[0].mxu0
      %v1442 = vadd.f32 0.0, %v1441
      %v1443 = vpop.f32.mrb[0].mxu0
      %1444 = vmatprep.mubr.f32.mxu0 0.0
      %1445 = vmatmul.mubr.f32.gmra.mrb[0].mxu0 %v1303
      %v1446 = vpop.f32.mrb[0].mxu0
      %v1447 = vadd.f32 0.0, %v1446
      %v1448 = vpop.f32.mrb[0].mxu0
      %1449 = vdwg.mxu0
      %v1450 = vadd.f32 %v1278, %v1372
      %v1451 = vadd.f32 %v1279, %v1377
      %v1452 = vadd.f32 %v1280, %v1382
      %v1453 = vadd.f32 %v1281, %v1387
      %v1454 = vadd.f32 %v1282, %v1392
      %v1455 = vadd.f32 %v1283, %v1397
      %v1456 = vadd.f32 %v1284, %v1402
      %v1457 = vadd.f32 %v1285, %v1407
      %v1458 = vadd.f32 %v1286, %v1412
      %v1459 = vadd.f32 %v1287, %v1417
      %v1460 = vadd.f32 %v1288, %v1422
      %v1461 = vadd.f32 %v1289, %v1427
      %v1462 = vadd.f32 %v1290, %v1432
      %v1463 = vadd.f32 %v1291, %v1437
      %v1464 = vadd.f32 %v1292, %v1442
      %v1465 = vadd.f32 %v1293, %v1447
      %s1466 = scalar_lea.vmem %s1, 48
      %v1467 = vld [vmem:[%s1466] sm:$0xff]
      %v1469 = vsel %vm361, %v290, 0
      %v1472 = vsel %vm361, %v291, 0
      %1474 = vmatprep.subr.mxu0 0.0
      %1475 = vmatpush1.msra.mxu0 %v1467
      %1476 = vmatprep.subr.mxu0 0.0
      %1477 = vmatpush1.msra.mxu0 0.0
      %1478 = vmatprep.subr.mxu0 0.0
      %1479 = vmatpush1.msra.mxu0 0.0
      %1480 = vmatprep.subr.mxu0 0.0
      %1481 = vmatpush1.msra.mxu0 0.0
      %1482 = vmatprep.subr.mxu0 0.0
      %1483 = vmatpush1.msra.mxu0 0.0
      %1484 = vmatprep.subr.mxu0 0.0
      %1485 = vmatpush1.msra.mxu0 0.0
      %1486 = vmatprep.subr.mxu0 0.0
      %1487 = vmatpush1.msra.mxu0 0.0
      %1488 = vmatprep.subr.mxu0 0.0
      %1489 = vmatpush1.msra.mxu0 0.0
      %1490 = vmatprep.subr.mxu0 0.0
      %1491 = vmatpush1.msra.mxu0 0.0
      %1492 = vmatprep.subr.mxu0 0.0
      %1493 = vmatpush1.msra.mxu0 0.0
      %1494 = vmatprep.subr.mxu0 0.0
      %1495 = vmatpush1.msra.mxu0 0.0
      %1496 = vmatprep.subr.mxu0 0.0
      %1497 = vmatpush1.msra.mxu0 0.0
      %1498 = vmatprep.subr.mxu0 0.0
      %1499 = vmatpush1.msra.mxu0 0.0
      %1500 = vmatprep.subr.mxu0 0.0
      %1501 = vmatpush1.msra.mxu0 0.0
      %1502 = vmatprep.subr.mxu0 0.0
      %1503 = vmatpush1.msra.mxu0 0.0
      %1504 = vmatprep.subr.mxu0 0.0
      %1505 = vmatpush1.msra.mxu0 0.0
      %1506 = vmatprep.subr.mxu0 0.0
      %1507 = vmatpush1.msra.mxu0 0.0
      %1508 = vmatprep.subr.mxu0 0.0
      %1509 = vmatpush1.msra.mxu0 0.0
      %1510 = vmatprep.subr.mxu0 0.0
      %1511 = vmatpush1.msra.mxu0 0.0
      %1512 = vmatprep.subr.mxu0 0.0
      %1513 = vmatpush1.msra.mxu0 0.0
      %1514 = vmatprep.subr.mxu0 0.0
      %1515 = vmatpush1.msra.mxu0 0.0
      %1516 = vmatprep.subr.mxu0 0.0
      %1517 = vmatpush1.msra.mxu0 0.0
      %1518 = vmatprep.subr.mxu0 0.0
      %1519 = vmatpush1.msra.mxu0 0.0
      %1520 = vmatprep.subr.mxu0 0.0
      %1521 = vmatpush1.msra.mxu0 0.0
      %1522 = vmatprep.subr.mxu0 0.0
      %1523 = vmatpush1.msra.mxu0 0.0
      %1524 = vmatprep.subr.mxu0 0.0
      %1525 = vmatpush1.msra.mxu0 0.0
      %1526 = vmatprep.subr.mxu0 0.0
      %1527 = vmatpush1.msra.mxu0 0.0
      %1528 = vmatprep.subr.mxu0 0.0
      %1529 = vmatpush1.msra.mxu0 0.0
      %1530 = vmatprep.subr.mxu0 0.0
      %1531 = vmatpush1.msra.mxu0 0.0
      %1532 = vmatprep.subr.mxu0 0.0
      %1533 = vmatpush1.msra.mxu0 0.0
      %1534 = vmatprep.subr.mxu0 0.0
      %1535 = vmatpush1.msra.mxu0 0.0
      %1536 = vmatprep.subr.mxu0 0.0
      %1537 = vmatpush1.msra.mxu0 0.0
      %1538 = vmatprep.mubr.f32.mxu0 0.0
      %1539 = vmatmul.mubr.f32.gmra.mrb[0].mxu0 %v547
      %v1540 = vpop.f32.mrb[0].mxu0
      %v1541 = vadd.f32 0.0, %v1540
      %v1542 = vpop.f32.mrb[0].mxu0
      %1543 = vmatprep.mubr.f32.mxu0 0.0
      %1544 = vmatmul.mubr.f32.gmra.mrb[0].mxu0 %v549
      %v1545 = vpop.f32.mrb[0].mxu0
      %v1546 = vadd.f32 0.0, %v1545
      %v1547 = vpop.f32.mrb[0].mxu0
      %1548 = vmatprep.mubr.f32.mxu0 0.0
      %1549 = vmatmul.mubr.f32.gmra.mrb[0].mxu0 %v551
      %v1550 = vpop.f32.mrb[0].mxu0
      %v1551 = vadd.f32 0.0, %v1550
      %v1552 = vpop.f32.mrb[0].mxu0
      %1553 = vmatprep.mubr.f32.mxu0 0.0
      %1554 = vmatmul.mubr.f32.gmra.mrb[0].mxu0 %v553
      %v1555 = vpop.f32.mrb[0].mxu0
      %v1556 = vadd.f32 0.0, %v1555
      %v1557 = vpop.f32.mrb[0].mxu0
      %1558 = vmatprep.mubr.f32.mxu0 0.0
      %1559 = vmatmul.mubr.f32.gmra.mrb[0].mxu0 %v555
      %v1560 = vpop.f32.mrb[0].mxu0
      %v1561 = vadd.f32 0.0, %v1560
      %v1562 = vpop.f32.mrb[0].mxu0
      %1563 = vmatprep.mubr.f32.mxu0 0.0
      %1564 = vmatmul.mubr.f32.gmra.mrb[0].mxu0 %v557
      %v1565 = vpop.f32.mrb[0].mxu0
      %v1566 = vadd.f32 0.0, %v1565
      %v1567 = vpop.f32.mrb[0].mxu0
      %1568 = vmatprep.mubr.f32.mxu0 0.0
      %1569 = vmatmul.mubr.f32.gmra.mrb[0].mxu0 %v559
      %v1570 = vpop.f32.mrb[0].mxu0
      %v1571 = vadd.f32 0.0, %v1570
      %v1572 = vpop.f32.mrb[0].mxu0
      %1573 = vmatprep.mubr.f32.mxu0 0.0
      %1574 = vmatmul.mubr.f32.gmra.mrb[0].mxu0 %v561
      %v1575 = vpop.f32.mrb[0].mxu0
      %v1576 = vadd.f32 0.0, %v1575
      %v1577 = vpop.f32.mrb[0].mxu0
      %1578 = vmatprep.mubr.f32.mxu0 0.0
      %1579 = vmatmul.mubr.f32.gmra.mrb[0].mxu0 %v563
      %v1580 = vpop.f32.mrb[0].mxu0
      %v1581 = vadd.f32 0.0, %v1580
      %v1582 = vpop.f32.mrb[0].mxu0
      %1583 = vmatprep.mubr.f32.mxu0 0.0
      %1584 = vmatmul.mubr.f32.gmra.mrb[0].mxu0 %v565
      %v1585 = vpop.f32.mrb[0].mxu0
      %v1586 = vadd.f32 0.0, %v1585
      %v1587 = vpop.f32.mrb[0].mxu0
      %1588 = vmatprep.mubr.f32.mxu0 0.0
      %1589 = vmatmul.mubr.f32.gmra.mrb[0].mxu0 %v567
      %v1590 = vpop.f32.mrb[0].mxu0
      %v1591 = vadd.f32 0.0, %v1590
      %v1592 = vpop.f32.mrb[0].mxu0
      %1593 = vmatprep.mubr.f32.mxu0 0.0
      %1594 = vmatmul.mubr.f32.gmra.mrb[0].mxu0 %v569
      %v1595 = vpop.f32.mrb[0].mxu0
      %v1596 = vadd.f32 0.0, %v1595
      %v1597 = vpop.f32.mrb[0].mxu0
      %1598 = vmatprep.mubr.f32.mxu0 0.0
      %1599 = vmatmul.mubr.f32.gmra.mrb[0].mxu0 %v955
      %v1600 = vpop.f32.mrb[0].mxu0
      %v1601 = vadd.f32 0.0, %v1600
      %v1602 = vpop.f32.mrb[0].mxu0
      %1603 = vmatprep.mubr.f32.mxu0 0.0
      %1604 = vmatmul.mubr.f32.gmra.mrb[0].mxu0 %v958
      %v1605 = vpop.f32.mrb[0].mxu0
      %v1606 = vadd.f32 0.0, %v1605
      %v1607 = vpop.f32.mrb[0].mxu0
      %1608 = vmatprep.mubr.f32.mxu0 0.0
      %1609 = vmatmul.mubr.f32.gmra.mrb[0].mxu0 %v1469
      %v1610 = vpop.f32.mrb[0].mxu0
      %v1611 = vadd.f32 0.0, %v1610
      %v1612 = vpop.f32.mrb[0].mxu0
      %1613 = vmatprep.mubr.f32.mxu0 0.0
      %1614 = vmatmul.mubr.f32.gmra.mrb[0].mxu0 %v1472
      %v1615 = vpop.f32.mrb[0].mxu0
      %v1616 = vadd.f32 0.0, %v1615
      %v1617 = vpop.f32.mrb[0].mxu0
      %1618 = vdwg.mxu0
      %v1619 = vadd.f32 %v1450, %v1541
      %v1620 = vadd.f32 %v1451, %v1546
      %v1621 = vadd.f32 %v1452, %v1551
      %v1622 = vadd.f32 %v1453, %v1556
      %v1623 = vadd.f32 %v1454, %v1561
      %v1624 = vadd.f32 %v1455, %v1566
      %v1625 = vadd.f32 %v1456, %v1571
      %v1626 = vadd.f32 %v1457, %v1576
      %v1627 = vadd.f32 %v1458, %v1581
      %v1628 = vadd.f32 %v1459, %v1586
      %v1629 = vadd.f32 %v1460, %v1591
      %v1630 = vadd.f32 %v1461, %v1596
      %v1631 = vadd.f32 %v1462, %v1601
      %v1632 = vadd.f32 %v1463, %v1606
      %v1633 = vadd.f32 %v1464, %v1611
      %v1634 = vadd.f32 %v1465, %v1616
      %v1636 = vrot.slane %v290, 1
      %v1637 = vrot.slane %v291, 1
      %v1638 = vsel %vm318, %v1636, %v1637
      %v1639 = vrot.slane %v292, 1
      %v1640 = vsel %vm318, %v1637, %v1639
      %s1641 = scalar_lea.vmem %s1, 56
      %v1642 = vld [vmem:[%s1641] sm:$0xff]
      %v1643 = vsel %vm361, %v1638, 0
      %v1645 = vsel %vm361, %v1640, 0
      %1647 = vmatprep.subr.mxu0 0.0
      %1648 = vmatpush1.msra.mxu0 %v1642
      %1649 = vmatprep.subr.mxu0 0.0
      %1650 = vmatpush1.msra.mxu0 0.0
      %1651 = vmatprep.subr.mxu0 0.0
      %1652 = vmatpush1.msra.mxu0 0.0
      %1653 = vmatprep.subr.mxu0 0.0
      %1654 = vmatpush1.msra.mxu0 0.0
      %1655 = vmatprep.subr.mxu0 0.0
      %1656 = vmatpush1.msra.mxu0 0.0
      %1657 = vmatprep.subr.mxu0 0.0
      %1658 = vmatpush1.msra.mxu0 0.0
      %1659 = vmatprep.subr.mxu0 0.0
      %1660 = vmatpush1.msra.mxu0 0.0
      %1661 = vmatprep.subr.mxu0 0.0
      %1662 = vmatpush1.msra.mxu0 0.0
      %1663 = vmatprep.subr.mxu0 0.0
      %1664 = vmatpush1.msra.mxu0 0.0
      %1665 = vmatprep.subr.mxu0 0.0
      %1666 = vmatpush1.msra.mxu0 0.0
      %1667 = vmatprep.subr.mxu0 0.0
      %1668 = vmatpush1.msra.mxu0 0.0
      %1669 = vmatprep.subr.mxu0 0.0
      %1670 = vmatpush1.msra.mxu0 0.0
      %1671 = vmatprep.subr.mxu0 0.0
      %1672 = vmatpush1.msra.mxu0 0.0
      %1673 = vmatprep.subr.mxu0 0.0
      %1674 = vmatpush1.msra.mxu0 0.0
      %1675 = vmatprep.subr.mxu0 0.0
      %1676 = vmatpush1.msra.mxu0 0.0
      %1677 = vmatprep.subr.mxu0 0.0
      %1678 = vmatpush1.msra.mxu0 0.0
      %1679 = vmatprep.subr.mxu0 0.0
      %1680 = vmatpush1.msra.mxu0 0.0
      %1681 = vmatprep.subr.mxu0 0.0
      %1682 = vmatpush1.msra.mxu0 0.0
      %1683 = vmatprep.subr.mxu0 0.0
      %1684 = vmatpush1.msra.mxu0 0.0
      %1685 = vmatprep.subr.mxu0 0.0
      %1686 = vmatpush1.msra.mxu0 0.0
      %1687 = vmatprep.subr.mxu0 0.0
      %1688 = vmatpush1.msra.mxu0 0.0
      %1689 = vmatprep.subr.mxu0 0.0
      %1690 = vmatpush1.msra.mxu0 0.0
      %1691 = vmatprep.subr.mxu0 0.0
      %1692 = vmatpush1.msra.mxu0 0.0
      %1693 = vmatprep.subr.mxu0 0.0
      %1694 = vmatpush1.msra.mxu0 0.0
      %1695 = vmatprep.subr.mxu0 0.0
      %1696 = vmatpush1.msra.mxu0 0.0
      %1697 = vmatprep.subr.mxu0 0.0
      %1698 = vmatpush1.msra.mxu0 0.0
      %1699 = vmatprep.subr.mxu0 0.0
      %1700 = vmatpush1.msra.mxu0 0.0
      %1701 = vmatprep.subr.mxu0 0.0
      %1702 = vmatpush1.msra.mxu0 0.0
      %1703 = vmatprep.subr.mxu0 0.0
      %1704 = vmatpush1.msra.mxu0 0.0
      %1705 = vmatprep.subr.mxu0 0.0
      %1706 = vmatpush1.msra.mxu0 0.0
      %1707 = vmatprep.subr.mxu0 0.0
      %1708 = vmatpush1.msra.mxu0 0.0
      %1709 = vmatprep.subr.mxu0 0.0
      %1710 = vmatpush1.msra.mxu0 0.0
      %1711 = vmatprep.mubr.f32.mxu0 0.0
      %1712 = vmatmul.mubr.f32.gmra.mrb[0].mxu0 %v370
      %v1713 = vpop.f32.mrb[0].mxu0
      %v1714 = vadd.f32 0.0, %v1713
      %v1715 = vpop.f32.mrb[0].mxu0
      %1716 = vmatprep.mubr.f32.mxu0 0.0
      %1717 = vmatmul.mubr.f32.gmra.mrb[0].mxu0 %v372
      %v1718 = vpop.f32.mrb[0].mxu0
      %v1719 = vadd.f32 0.0, %v1718
      %v1720 = vpop.f32.mrb[0].mxu0
      %1721 = vmatprep.mubr.f32.mxu0 0.0
      %1722 = vmatmul.mubr.f32.gmra.mrb[0].mxu0 %v374
      %v1723 = vpop.f32.mrb[0].mxu0
      %v1724 = vadd.f32 0.0, %v1723
      %v1725 = vpop.f32.mrb[0].mxu0
      %1726 = vmatprep.mubr.f32.mxu0 0.0
      %1727 = vmatmul.mubr.f32.gmra.mrb[0].mxu0 %v376
      %v1728 = vpop.f32.mrb[0].mxu0
      %v1729 = vadd.f32 0.0, %v1728
      %v1730 = vpop.f32.mrb[0].mxu0
      %1731 = vmatprep.mubr.f32.mxu0 0.0
      %1732 = vmatmul.mubr.f32.gmra.mrb[0].mxu0 %v378
      %v1733 = vpop.f32.mrb[0].mxu0
      %v1734 = vadd.f32 0.0, %v1733
      %v1735 = vpop.f32.mrb[0].mxu0
      %1736 = vmatprep.mubr.f32.mxu0 0.0
      %1737 = vmatmul.mubr.f32.gmra.mrb[0].mxu0 %v380
      %v1738 = vpop.f32.mrb[0].mxu0
      %v1739 = vadd.f32 0.0, %v1738
      %v1740 = vpop.f32.mrb[0].mxu0
      %1741 = vmatprep.mubr.f32.mxu0 0.0
      %1742 = vmatmul.mubr.f32.gmra.mrb[0].mxu0 %v382
      %v1743 = vpop.f32.mrb[0].mxu0
      %v1744 = vadd.f32 0.0, %v1743
      %v1745 = vpop.f32.mrb[0].mxu0
      %1746 = vmatprep.mubr.f32.mxu0 0.0
      %1747 = vmatmul.mubr.f32.gmra.mrb[0].mxu0 %v384
      %v1748 = vpop.f32.mrb[0].mxu0
      %v1749 = vadd.f32 0.0, %v1748
      %v1750 = vpop.f32.mrb[0].mxu0
      %1751 = vmatprep.mubr.f32.mxu0 0.0
      %1752 = vmatmul.mubr.f32.gmra.mrb[0].mxu0 %v386
      %v1753 = vpop.f32.mrb[0].mxu0
      %v1754 = vadd.f32 0.0, %v1753
      %v1755 = vpop.f32.mrb[0].mxu0
      %1756 = vmatprep.mubr.f32.mxu0 0.0
      %1757 = vmatmul.mubr.f32.gmra.mrb[0].mxu0 %v388
      %v1758 = vpop.f32.mrb[0].mxu0
      %v1759 = vadd.f32 0.0, %v1758
      %v1760 = vpop.f32.mrb[0].mxu0
      %1761 = vmatprep.mubr.f32.mxu0 0.0
      %1762 = vmatmul.mubr.f32.gmra.mrb[0].mxu0 %v390
      %v1763 = vpop.f32.mrb[0].mxu0
      %v1764 = vadd.f32 0.0, %v1763
      %v1765 = vpop.f32.mrb[0].mxu0
      %1766 = vmatprep.mubr.f32.mxu0 0.0
      %1767 = vmatmul.mubr.f32.gmra.mrb[0].mxu0 %v392
      %v1768 = vpop.f32.mrb[0].mxu0
      %v1769 = vadd.f32 0.0, %v1768
      %v1770 = vpop.f32.mrb[0].mxu0
      %1771 = vmatprep.mubr.f32.mxu0 0.0
      %1772 = vmatmul.mubr.f32.gmra.mrb[0].mxu0 %v1129
      %v1773 = vpop.f32.mrb[0].mxu0
      %v1774 = vadd.f32 0.0, %v1773
      %v1775 = vpop.f32.mrb[0].mxu0
      %1776 = vmatprep.mubr.f32.mxu0 0.0
      %1777 = vmatmul.mubr.f32.gmra.mrb[0].mxu0 %v1131
      %v1778 = vpop.f32.mrb[0].mxu0
      %v1779 = vadd.f32 0.0, %v1778
      %v1780 = vpop.f32.mrb[0].mxu0
      %1781 = vmatprep.mubr.f32.mxu0 0.0
      %1782 = vmatmul.mubr.f32.gmra.mrb[0].mxu0 %v1643
      %v1783 = vpop.f32.mrb[0].mxu0
      %v1784 = vadd.f32 0.0, %v1783
      %v1785 = vpop.f32.mrb[0].mxu0
      %1786 = vmatprep.mubr.f32.mxu0 0.0
      %1787 = vmatmul.mubr.f32.gmra.mrb[0].mxu0 %v1645
      %v1788 = vpop.f32.mrb[0].mxu0
      %v1789 = vadd.f32 0.0, %v1788
      %v1790 = vpop.f32.mrb[0].mxu0
      %1791 = vdwg.mxu0
      %v1792 = vadd.f32 %v1619, %v1714
      %v1793 = vadd.f32 %v1620, %v1719
      %v1794 = vadd.f32 %v1621, %v1724
      %v1795 = vadd.f32 %v1622, %v1729
      %v1796 = vadd.f32 %v1623, %v1734
      %v1797 = vadd.f32 %v1624, %v1739
      %v1798 = vadd.f32 %v1625, %v1744
      %v1799 = vadd.f32 %v1626, %v1749
      %v1800 = vadd.f32 %v1627, %v1754
      %v1801 = vadd.f32 %v1628, %v1759
      %v1802 = vadd.f32 %v1629, %v1764
      %v1803 = vadd.f32 %v1630, %v1769
      %v1804 = vadd.f32 %v1631, %v1774
      %v1805 = vadd.f32 %v1632, %v1779
      %v1806 = vadd.f32 %v1633, %v1784
      %v1807 = vadd.f32 %v1634, %v1789
      %v1808 = vrot.slane %v290, 2
      %v1809 = vrot.slane %v291, 2
      %v1810 = vsel %vm716, %v1808, %v1809
      %v1811 = vrot.slane %v292, 2
      %v1812 = vsel %vm716, %v1809, %v1811
      %s1813 = scalar_lea.vmem %s1, 64
      %v1814 = vld [vmem:[%s1813] sm:$0xff]
      %v1815 = vsel %vm361, %v1810, 0
      %v1817 = vsel %vm361, %v1812, 0
      %1819 = vmatprep.subr.mxu0 0.0
      %1820 = vmatpush1.msra.mxu0 %v1814
      %1821 = vmatprep.subr.mxu0 0.0
      %1822 = vmatpush1.msra.mxu0 0.0
      %1823 = vmatprep.subr.mxu0 0.0
      %1824 = vmatpush1.msra.mxu0 0.0
      %1825 = vmatprep.subr.mxu0 0.0
      %1826 = vmatpush1.msra.mxu0 0.0
      %1827 = vmatprep.subr.mxu0 0.0
      %1828 = vmatpush1.msra.mxu0 0.0
      %1829 = vmatprep.subr.mxu0 0.0
      %1830 = vmatpush1.msra.mxu0 0.0
      %1831 = vmatprep.subr.mxu0 0.0
      %1832 = vmatpush1.msra.mxu0 0.0
      %1833 = vmatprep.subr.mxu0 0.0
      %1834 = vmatpush1.msra.mxu0 0.0
      %1835 = vmatprep.subr.mxu0 0.0
      %1836 = vmatpush1.msra.mxu0 0.0
      %1837 = vmatprep.subr.mxu0 0.0
      %1838 = vmatpush1.msra.mxu0 0.0
      %1839 = vmatprep.subr.mxu0 0.0
      %1840 = vmatpush1.msra.mxu0 0.0
      %1841 = vmatprep.subr.mxu0 0.0
      %1842 = vmatpush1.msra.mxu0 0.0
      %1843 = vmatprep.subr.mxu0 0.0
      %1844 = vmatpush1.msra.mxu0 0.0
      %1845 = vmatprep.subr.mxu0 0.0
      %1846 = vmatpush1.msra.mxu0 0.0
      %1847 = vmatprep.subr.mxu0 0.0
      %1848 = vmatpush1.msra.mxu0 0.0
      %1849 = vmatprep.subr.mxu0 0.0
      %1850 = vmatpush1.msra.mxu0 0.0
      %1851 = vmatprep.subr.mxu0 0.0
      %1852 = vmatpush1.msra.mxu0 0.0
      %1853 = vmatprep.subr.mxu0 0.0
      %1854 = vmatpush1.msra.mxu0 0.0
      %1855 = vmatprep.subr.mxu0 0.0
      %1856 = vmatpush1.msra.mxu0 0.0
      %1857 = vmatprep.subr.mxu0 0.0
      %1858 = vmatpush1.msra.mxu0 0.0
      %1859 = vmatprep.subr.mxu0 0.0
      %1860 = vmatpush1.msra.mxu0 0.0
      %1861 = vmatprep.subr.mxu0 0.0
      %1862 = vmatpush1.msra.mxu0 0.0
      %1863 = vmatprep.subr.mxu0 0.0
      %1864 = vmatpush1.msra.mxu0 0.0
      %1865 = vmatprep.subr.mxu0 0.0
      %1866 = vmatpush1.msra.mxu0 0.0
      %1867 = vmatprep.subr.mxu0 0.0
      %1868 = vmatpush1.msra.mxu0 0.0
      %1869 = vmatprep.subr.mxu0 0.0
      %1870 = vmatpush1.msra.mxu0 0.0
      %1871 = vmatprep.subr.mxu0 0.0
      %1872 = vmatpush1.msra.mxu0 0.0
      %1873 = vmatprep.subr.mxu0 0.0
      %1874 = vmatpush1.msra.mxu0 0.0
      %1875 = vmatprep.subr.mxu0 0.0
      %1876 = vmatpush1.msra.mxu0 0.0
      %1877 = vmatprep.subr.mxu0 0.0
      %1878 = vmatpush1.msra.mxu0 0.0
      %1879 = vmatprep.subr.mxu0 0.0
      %1880 = vmatpush1.msra.mxu0 0.0
      %1881 = vmatprep.subr.mxu0 0.0
      %1882 = vmatpush1.msra.mxu0 0.0
      %1883 = vmatprep.mubr.f32.mxu0 0.0
      %1884 = vmatmul.mubr.f32.gmra.mrb[0].mxu0 %v767
      %v1885 = vpop.f32.mrb[0].mxu0
      %v1886 = vadd.f32 0.0, %v1885
      %v1887 = vpop.f32.mrb[0].mxu0
      %1888 = vmatprep.mubr.f32.mxu0 0.0
      %1889 = vmatmul.mubr.f32.gmra.mrb[0].mxu0 %v769
      %v1890 = vpop.f32.mrb[0].mxu0
      %v1891 = vadd.f32 0.0, %v1890
      %v1892 = vpop.f32.mrb[0].mxu0
      %1893 = vmatprep.mubr.f32.mxu0 0.0
      %1894 = vmatmul.mubr.f32.gmra.mrb[0].mxu0 %v771
      %v1895 = vpop.f32.mrb[0].mxu0
      %v1896 = vadd.f32 0.0, %v1895
      %v1897 = vpop.f32.mrb[0].mxu0
      %1898 = vmatprep.mubr.f32.mxu0 0.0
      %1899 = vmatmul.mubr.f32.gmra.mrb[0].mxu0 %v773
      %v1900 = vpop.f32.mrb[0].mxu0
      %v1901 = vadd.f32 0.0, %v1900
      %v1902 = vpop.f32.mrb[0].mxu0
      %1903 = vmatprep.mubr.f32.mxu0 0.0
      %1904 = vmatmul.mubr.f32.gmra.mrb[0].mxu0 %v775
      %v1905 = vpop.f32.mrb[0].mxu0
      %v1906 = vadd.f32 0.0, %v1905
      %v1907 = vpop.f32.mrb[0].mxu0
      %1908 = vmatprep.mubr.f32.mxu0 0.0
      %1909 = vmatmul.mubr.f32.gmra.mrb[0].mxu0 %v777
      %v1910 = vpop.f32.mrb[0].mxu0
      %v1911 = vadd.f32 0.0, %v1910
      %v1912 = vpop.f32.mrb[0].mxu0
      %1913 = vmatprep.mubr.f32.mxu0 0.0
      %1914 = vmatmul.mubr.f32.gmra.mrb[0].mxu0 %v779
      %v1915 = vpop.f32.mrb[0].mxu0
      %v1916 = vadd.f32 0.0, %v1915
      %v1917 = vpop.f32.mrb[0].mxu0
      %1918 = vmatprep.mubr.f32.mxu0 0.0
      %1919 = vmatmul.mubr.f32.gmra.mrb[0].mxu0 %v781
      %v1920 = vpop.f32.mrb[0].mxu0
      %v1921 = vadd.f32 0.0, %v1920
      %v1922 = vpop.f32.mrb[0].mxu0
      %1923 = vmatprep.mubr.f32.mxu0 0.0
      %1924 = vmatmul.mubr.f32.gmra.mrb[0].mxu0 %v783
      %v1925 = vpop.f32.mrb[0].mxu0
      %v1926 = vadd.f32 0.0, %v1925
      %v1927 = vpop.f32.mrb[0].mxu0
      %1928 = vmatprep.mubr.f32.mxu0 0.0
      %1929 = vmatmul.mubr.f32.gmra.mrb[0].mxu0 %v785
      %v1930 = vpop.f32.mrb[0].mxu0
      %v1931 = vadd.f32 0.0, %v1930
      %v1932 = vpop.f32.mrb[0].mxu0
      %1933 = vmatprep.mubr.f32.mxu0 0.0
      %1934 = vmatmul.mubr.f32.gmra.mrb[0].mxu0 %v787
      %v1935 = vpop.f32.mrb[0].mxu0
      %v1936 = vadd.f32 0.0, %v1935
      %v1937 = vpop.f32.mrb[0].mxu0
      %1938 = vmatprep.mubr.f32.mxu0 0.0
      %1939 = vmatmul.mubr.f32.gmra.mrb[0].mxu0 %v789
      %v1940 = vpop.f32.mrb[0].mxu0
      %v1941 = vadd.f32 0.0, %v1940
      %v1942 = vpop.f32.mrb[0].mxu0
      %1943 = vmatprep.mubr.f32.mxu0 0.0
      %1944 = vmatmul.mubr.f32.gmra.mrb[0].mxu0 %v1301
      %v1945 = vpop.f32.mrb[0].mxu0
      %v1946 = vadd.f32 0.0, %v1945
      %v1947 = vpop.f32.mrb[0].mxu0
      %1948 = vmatprep.mubr.f32.mxu0 0.0
      %1949 = vmatmul.mubr.f32.gmra.mrb[0].mxu0 %v1303
      %v1950 = vpop.f32.mrb[0].mxu0
      %v1951 = vadd.f32 0.0, %v1950
      %v1952 = vpop.f32.mrb[0].mxu0
      %1953 = vmatprep.mubr.f32.mxu0 0.0
      %1954 = vmatmul.mubr.f32.gmra.mrb[0].mxu0 %v1815
      %v1955 = vpop.f32.mrb[0].mxu0
      %v1956 = vadd.f32 0.0, %v1955
      %v1957 = vpop.f32.mrb[0].mxu0
      %1958 = vmatprep.mubr.f32.mxu0 0.0
      %1959 = vmatmul.mubr.f32.gmra.mrb[0].mxu0 %v1817
      %v1960 = vpop.f32.mrb[0].mxu0
      %v1961 = vadd.f32 0.0, %v1960
      %v1962 = vpop.f32.mrb[0].mxu0
      %1963 = vdwg.mxu0
      %v1964 = vadd.f32 %v1792, %v1886
      %v1965 = vadd.f32 %v1793, %v1891
      %v1966 = vadd.f32 %v1794, %v1896
      %v1967 = vadd.f32 %v1795, %v1901
      %v1968 = vadd.f32 %v1796, %v1906
      %v1969 = vadd.f32 %v1797, %v1911
      %v1970 = vadd.f32 %v1798, %v1916
      %v1971 = vadd.f32 %v1799, %v1921
      %v1972 = vadd.f32 %v1800, %v1926
      %v1973 = vadd.f32 %v1801, %v1931
      %v1974 = vadd.f32 %v1802, %v1936
      %v1975 = vadd.f32 %v1803, %v1941
      %v1976 = vadd.f32 %v1804, %v1946
      %v1977 = vadd.f32 %v1805, %v1951
      %v1978 = vadd.f32 %v1806, %v1956
      %v1979 = vadd.f32 %v1807, %v1961
      %vm1980 = vcmp.ge.f32.partialorder %v1964, 0.0
      %vm1981 = vcmp.ge.f32.partialorder %v1965, 0.0
      %vm1982 = vcmp.ge.f32.partialorder %v1966, 0.0
      %vm1983 = vcmp.ge.f32.partialorder %v1967, 0.0
      %vm1984 = vcmp.ge.f32.partialorder %v1968, 0.0
      %vm1985 = vcmp.ge.f32.partialorder %v1969, 0.0
      %vm1986 = vcmp.ge.f32.partialorder %v1970, 0.0
      %vm1987 = vcmp.ge.f32.partialorder %v1971, 0.0
      %vm1988 = vcmp.ge.f32.partialorder %v1972, 0.0
      %vm1989 = vcmp.ge.f32.partialorder %v1973, 0.0
      %vm1990 = vcmp.ge.f32.partialorder %v1974, 0.0
      %vm1991 = vcmp.ge.f32.partialorder %v1975, 0.0
      %vm1992 = vcmp.ge.f32.partialorder %v1976, 0.0
      %vm1993 = vcmp.ge.f32.partialorder %v1977, 0.0
      %vm1994 = vcmp.ge.f32.partialorder %v1978, 0.0
      %vm1995 = vcmp.ge.f32.partialorder %v1979, 0.0
      %v1996 = vmul.f32 %v1964, 0.01
      %v1997 = vmul.f32 %v1965, 0.01
      %v1998 = vmul.f32 %v1966, 0.01
      %v1999 = vmul.f32 %v1967, 0.01
      %v2000 = vmul.f32 %v1968, 0.01
      %v2001 = vmul.f32 %v1969, 0.01
      %v2002 = vmul.f32 %v1970, 0.01
      %v2003 = vmul.f32 %v1971, 0.01
      %v2004 = vmul.f32 %v1972, 0.01
      %v2005 = vmul.f32 %v1973, 0.01
      %v2006 = vmul.f32 %v1974, 0.01
      %v2007 = vmul.f32 %v1975, 0.01
      %v2008 = vmul.f32 %v1976, 0.01
      %v2009 = vmul.f32 %v1977, 0.01
      %v2010 = vmul.f32 %v1978, 0.01
      %v2011 = vmul.f32 %v1979, 0.01
      %v2012 = vsel %vm1980, %v1964, %v1996
      %v2013 = vsel %vm1981, %v1965, %v1997
      %v2014 = vsel %vm1982, %v1966, %v1998
      %v2015 = vsel %vm1983, %v1967, %v1999
      %v2016 = vsel %vm1984, %v1968, %v2000
      %v2017 = vsel %vm1985, %v1969, %v2001
      %v2018 = vsel %vm1986, %v1970, %v2002
      %v2019 = vsel %vm1987, %v1971, %v2003
      %v2020 = vsel %vm1988, %v1972, %v2004
      %v2021 = vsel %vm1989, %v1973, %v2005
      %v2022 = vsel %vm1990, %v1974, %v2006
      %v2023 = vsel %vm1991, %v1975, %v2007
      %v2024 = vsel %vm1992, %v1976, %v2008
      %v2025 = vsel %vm1993, %v1977, %v2009
      %v2026 = vsel %vm1994, %v1978, %v2010
      %v2027 = vsel %vm1995, %v1979, %v2011
      %2028 = vst [vmem:[%s244] sm:$0xff] %v2012
      %2029 = vst [vmem:[%s244 + $0x8] sm:$0xff] %v2013
      %2030 = vst [vmem:[%s244 + $0x10] sm:$0xff] %v2014
      %2031 = vst [vmem:[%s244 + $0x18] sm:$0xff] %v2015
      %2032 = vst [vmem:[%s244 + $0x20] sm:$0xff] %v2016
      %2033 = vst [vmem:[%s244 + $0x28] sm:$0xff] %v2017
      %2034 = vst [vmem:[%s244 + $0x30] sm:$0xff] %v2018
      %2035 = vst [vmem:[%s244 + $0x38] sm:$0xff] %v2019
      %2036 = vst [vmem:[%s244 + $0x40] sm:$0xff] %v2020
      %2037 = vst [vmem:[%s244 + $0x48] sm:$0xff] %v2021
      %2038 = vst [vmem:[%s244 + $0x50] sm:$0xff] %v2022
      %2039 = vst [vmem:[%s244 + $0x58] sm:$0xff] %v2023
      %2040 = vst [vmem:[%s244 + $0x60] sm:$0xff] %v2024
      %2041 = vst [vmem:[%s244 + $0x68] sm:$0xff] %v2025
      %2042 = vst [vmem:[%s244 + $0x70] sm:$0xff] %v2026
      %2043 = vst [vmem:[%s244 + $0x78] sm:$0xff] %v2027
      %v2044 = vadd.f32 %v2012, %v2013
      %v2045 = vadd.f32 %v2044, %v2014
      %v2046 = vadd.f32 %v2045, %v2015
      %v2047 = vadd.f32 %v2046, %v2016
      %v2048 = vadd.f32 %v2047, %v2017
      %v2049 = vadd.f32 %v2048, %v2018
      %v2050 = vadd.f32 %v2049, %v2019
      %v2051 = vadd.f32 %v2050, %v2020
      %v2052 = vadd.f32 %v2051, %v2021
      %v2053 = vadd.f32 %v2052, %v2022
      %v2054 = vadd.f32 %v2053, %v2023
      %v2055 = vadd.f32 %v2054, %v2024
      %v2056 = vadd.f32 %v2055, %v2025
      %v2057 = vadd.f32 %v2056, %v2026
      %v2058 = vadd.f32 %v2057, %v2027
      %v2059 = vrot.slane %v2058, 4
      %v2060 = vadd.f32 %v2058, %v2059
      %v2061 = vrot.slane %v2060, 2
      %v2062 = vadd.f32 %v2060, %v2061
      %v2063 = vrot.slane %v2062, 1
      %v2064 = vadd.f32 %v2062, %v2063
      %2065 = vst [vmem:[%s252] sm:$0x1] %v2064
      %v2066 = vmul.f32 %v2012, %v2012
      %v2067 = vmul.f32 %v2013, %v2013
      %v2068 = vmul.f32 %v2014, %v2014
      %v2069 = vmul.f32 %v2015, %v2015
      %v2070 = vmul.f32 %v2016, %v2016
      %v2071 = vmul.f32 %v2017, %v2017
      %v2072 = vmul.f32 %v2018, %v2018
      %v2073 = vmul.f32 %v2019, %v2019
      %v2074 = vmul.f32 %v2020, %v2020
      %v2075 = vmul.f32 %v2021, %v2021
      %v2076 = vmul.f32 %v2022, %v2022
      %v2077 = vmul.f32 %v2023, %v2023
      %v2078 = vmul.f32 %v2024, %v2024
      %v2079 = vmul.f32 %v2025, %v2025
      %v2080 = vmul.f32 %v2026, %v2026
      %v2081 = vmul.f32 %v2027, %v2027
      %v2082 = vadd.f32 %v2066, %v2067
      %v2083 = vadd.f32 %v2082, %v2068
      %v2084 = vadd.f32 %v2083, %v2069
      %v2085 = vadd.f32 %v2084, %v2070
      %v2086 = vadd.f32 %v2085, %v2071
      %v2087 = vadd.f32 %v2086, %v2072
      %v2088 = vadd.f32 %v2087, %v2073
      %v2089 = vadd.f32 %v2088, %v2074
      %v2090 = vadd.f32 %v2089, %v2075
      %v2091 = vadd.f32 %v2090, %v2076
      %v2092 = vadd.f32 %v2091, %v2077
      %v2093 = vadd.f32 %v2092, %v2078
      %v2094 = vadd.f32 %v2093, %v2079
      %v2095 = vadd.f32 %v2094, %v2080
      %v2096 = vadd.f32 %v2095, %v2081
      %v2097 = vrot.slane %v2096, 4
      %v2098 = vadd.f32 %v2096, %v2097
      %v2099 = vrot.slane %v2098, 2
      %v2100 = vadd.f32 %v2098, %v2099
      %v2101 = vrot.slane %v2100, 1
      %v2102 = vadd.f32 %v2100, %v2101
      %2103 = vst [vmem:[%s259] sm:$0x1] %v2102
      %s2104 = smul.u32 8, %s21
      %p2105 = scmp.lt.s32.totalorder %s20, 1
      %s2106 = scalar_select %p2105, %s20, 1
      %p2107 = scmp.lt.s32.totalorder %s2104, 15
      %s2108 = scalar_select %p2107, %s2104, 15
      %s2109 = smul.addr %s2108, 2
      %s2110 = smul.addr %s2106, 32
      %s2111 = sadd.s32 %s2109, %s2110
      %s2112 = smul.addr %s2111, 8
      %s2113 = scalar_lea.vmem %s2, %s2112
      %p2114 = scmp.lt.s32.totalorder %s20, 1
      %s2115 = scalar_select %p2114, %s20, 1
      %p2116 = scmp.lt.s32.totalorder %s21, 1
      %s2117 = scalar_select %p2116, %s21, 1
      %s2118 = smul.addr %s2115, 2
      %s2119 = sadd.s32 %s2117, %s2118
      %s2120 = scalar_lea.vmem %s3, %s2119
      %p2121 = scmp.lt.s32.totalorder %s20, 1
      %s2122 = scalar_select %p2121, %s20, 1
      %p2123 = scmp.lt.s32.totalorder %s21, 1
      %s2124 = scalar_select %p2123, %s21, 1
      %s2125 = smul.addr %s2122, 2
      %s2126 = sadd.s32 %s2124, %s2125
      %s2127 = scalar_lea.vmem %s4, %s2126
      // Predicated region
      $region29: #{double_conv.6} parent=27 // pred_check
        %p2128 = pneg %p95
      $region30: #{double_conv.6} parent=27 // pred_check_branch
        %2130 = sbr.rel (%p2128) target = $region32
      $region31: #{double_conv.6} parent=27 // pred_region
        %s2131 = smul.u32 8, %s21
      $region32: #{double_conv.6} parent=27 // pred_fallthru
        _
      // Predicated region
      $region33: #{double_conv.6} parent=27 // pred_check
        %p2132 = pneg %p123
      $region34: #{double_conv.6} parent=27 // pred_check_branch
        %2134 = sbr.rel (%p2132) target = $region36
      $region35: #{double_conv.6} parent=27 // pred_region
        _
      $region36: #{double_conv.6} parent=27 // pred_fallthru
        _
      // Predicated region
      $region37: #{double_conv.6} parent=27 // pred_check
        %p2135 = pneg %p151
      $region38: #{double_conv.6} parent=27 // pred_check_branch
        %2137 = sbr.rel (%p2135) target = $region40
      $region39: #{double_conv.6} parent=27 // pred_region
        _
      $region40: #{double_conv.6} parent=27 // pred_fallthru
        _
    $region28: #{double_conv.6} parent=5 // pred_fallthru
      _
    %p2138 = scmp.le.s32.totalorder 2, %s11
    // Predicated region
    $region41: #{double_conv.6} parent=5 // pred_check
      %p2139 = pneg %p2138
    $region42: #{double_conv.6} parent=5 // pred_check_branch
      %2141 = sbr.rel (%p2139) target = $region44
    $region43: #{double_conv.6} parent=5 // pred_region
      %s2142 = ssub.s32 %s11, 2
      // Predicated region
      $region45: #{double_conv.6} parent=43 // pred_check
        %p2143 = pneg %p101
      $region46: #{double_conv.6} parent=43 // pred_check_branch
        %2145 = sbr.rel (%p2143) target = $region48
      $region47: #{double_conv.6} parent=43 // pred_region
        %s2146 = smul.u32 8, %s23
        %p2147 = scmp.lt.s32.totalorder %s22, 1
        %s2148 = scalar_select %p2147, %s22, 1
        %p2149 = scmp.lt.s32.totalorder %s2146, 15
        %s2150 = scalar_select %p2149, %s2146, 15
        %s2151 = smul.addr %s2150, 2
        %s2152 = smul.addr %s2148, 32
        %s2153 = sadd.s32 %s2151, %s2152
        %s2154 = smul.addr %s2153, 8
        %s2155 = scalar_lea.vmem %s2, %s2154
      $region48: #{double_conv.6} parent=43 // pred_fallthru
        _
      // Predicated region
      $region49: #{double_conv.6} parent=43 // pred_check
        %p2156 = pneg %p129
      $region50: #{double_conv.6} parent=43 // pred_check_branch
        %2158 = sbr.rel (%p2156) target = $region52
      $region51: #{double_conv.6} parent=43 // pred_region
        %p2159 = scmp.lt.s32.totalorder %s22, 1
        %s2160 = scalar_select %p2159, %s22, 1
        %p2161 = scmp.lt.s32.totalorder %s23, 1
        %s2162 = scalar_select %p2161, %s23, 1
        %s2163 = smul.addr %s2160, 2
        %s2164 = sadd.s32 %s2162, %s2163
        %s2165 = scalar_lea.vmem %s3, %s2164
      $region52: #{double_conv.6} parent=43 // pred_fallthru
        _
      // Predicated region
      $region53: #{double_conv.6} parent=43 // pred_check
        %p2166 = pneg %p157
      $region54: #{double_conv.6} parent=43 // pred_check_branch
        %2168 = sbr.rel (%p2166) target = $region56
      $region55: #{double_conv.6} parent=43 // pred_region
        %p2169 = scmp.lt.s32.totalorder %s22, 1
        %s2170 = scalar_select %p2169, %s22, 1
        %p2171 = scmp.lt.s32.totalorder %s23, 1
        %s2172 = scalar_select %p2171, %s23, 1
        %s2173 = smul.addr %s2170, 2
        %s2174 = sadd.s32 %s2172, %s2173
        %s2175 = scalar_lea.vmem %s4, %s2174
      $region56: #{double_conv.6} parent=43 // pred_fallthru
        _
    $region44: #{double_conv.6} parent=5 // pred_fallthru
      _
  $region6: #{double_conv.6} parent=0 // loop_footer
    %s15 = sadd.s32 1, %s11
  $region7: #{double_conv.6} parent=0 // loop_footer_branch
    %10 = sbr.rel target = $region3
  $region8: #{double_conv.6} parent=0 // loop_exit
    _

</llo_original>
